<compile_context>
chip_gen: v5e
topology: v5e:2x2
jax: 0.10.0
libtpu: 0.0.40
codegen_flags: <defaults>
</compile_context>

<pallas_src>
import jax
import jax.numpy as jnp
from jax.experimental import pallas as pl
from jax.experimental.pallas import tpu as pltpu


# ----------------------------------------------------------------------------
# Fused kernel: 2-layer bidirectional LSTM, both directions interleaved.
# ----------------------------------------------------------------------------
def _make_fused_bilstm2_kernel(T, B, H):
    G = 4 * H
    H3 = 3 * H

    def lstm_cell(gates, h, c, valid):
        # Gate layout is (i, f, o, g): sigmoid over the first 3H lanes, tanh
        # only over the last H lanes (half the EUP work of sig+tanh on 4H).
        sig = jax.nn.sigmoid(gates[:, :H3])
        g_g = jnp.tanh(gates[:, H3:])
        i_g = sig[:, 0 * H:1 * H]
        f_g = sig[:, 1 * H:2 * H]
        o_g = sig[:, 2 * H:3 * H]
        c_new = f_g * c + i_g * g_g
        h_new = o_g * jnp.tanh(c_new)
        # Packed-sequence semantics: freeze (h, c) past the valid length; the
        # emitted sequence value is zero there (pad_packed_sequence).
        c_out = jnp.where(valid, c_new, c)
        h_out = jnp.where(valid, h_new, h)
        y_out = jnp.where(valid, h_new, 0.0)
        return h_out, c_out, y_out

    def kernel(len_ref, gx1f_ref, gx1b_ref, whh1_ref, wih2_ref, b2_ref,
               whh2_ref, hfin_ref, y1f_ref, y1b_ref):
        f32 = jnp.float32
        lengths = len_ref[...]                      # (B, 1) int32, loaded once

        # Loop-invariant recurrent weights, loaded once.
        w1f = whh1_ref[0]                           # (H, 4H) bf16
        w1b = whh1_ref[1]

        zeros = jnp.zeros((B, H), f32)
        h_f, c_f, h_b, c_b = zeros, zeros, zeros, zeros

        # ---- Layer 1: forward & backward chains interleaved in ONE loop ----
        for s in range(T):                          # static -> immediate offsets
            tb = T - 1 - s                          # backward walks T-1 .. 0
            gates_f = gx1f_ref[s] + jnp.dot(h_f.astype(w1f.dtype), w1f,
                                            preferred_element_type=f32)
            gates_b = gx1b_ref[tb] + jnp.dot(h_b.astype(w1b.dtype), w1b,
                                             preferred_element_type=f32)
            h_f, c_f, yf = lstm_cell(gates_f, h_f, c_f, s < lengths)
            h_b, c_b, yb = lstm_cell(gates_b, h_b, c_b, tb < lengths)
            # Store at the true time slot (rows t*B .. t*B+B-1), VMEM only.
            y1f_ref[pl.ds(s * B, B), :] = yf
            y1b_ref[pl.ds(tb * B, B), :] = yb

        # ---- Layer-2 input projection: big block matmuls over all T steps,
        #      off the serial critical path, never touching HBM. ----
        y1f = y1f_ref[...]                          # (T*B, H) f32
        y1b = y1b_ref[...]
        w2f = wih2_ref[0]                           # (2H, 4H) f32
        w2b = wih2_ref[1]
        gx2f = (jnp.dot(y1f, w2f[:H], preferred_element_type=f32)
                + jnp.dot(y1b, w2f[H:], preferred_element_type=f32)
                + b2_ref[0])                        # (T*B, 4H)
        gx2b = (jnp.dot(y1f, w2b[:H], preferred_element_type=f32)
                + jnp.dot(y1b, w2b[H:], preferred_element_type=f32)
                + b2_ref[1])

        # ---- Layer 2 recurrence (directions interleaved again) ----
        w2hf = whh2_ref[0]                          # (H, 4H) bf16
        w2hb = whh2_ref[1]
        h_f, c_f, h_b, c_b = zeros, zeros, zeros, zeros
        for s in range(T):
            tb = T - 1 - s
            gates_f = gx2f[s * B:(s + 1) * B] + jnp.dot(
                h_f.astype(w2hf.dtype), w2hf, preferred_element_type=f32)
            gates_b = gx2b[tb * B:(tb + 1) * B] + jnp.dot(
                h_b.astype(w2hb.dtype), w2hb, preferred_element_type=f32)
            h_f, c_f, _ = lstm_cell(gates_f, h_f, c_f, s < lengths)
            h_b, c_b, _ = lstm_cell(gates_b, h_b, c_b, tb < lengths)

        # After the masked loops, h_f/h_b equal PyTorch's final hiddens of the
        # last layer (fwd: state at last valid step; bwd: state after t == 0).
        hfin_ref[0] = h_f
        hfin_ref[1] = h_b

    return kernel


def fused_bilstm2(gx1f, gx1b, whh1, wih2, b2, whh2, lengths_col):
    """Fused 2-layer bidirectional LSTM.

    gx1f/gx1b:   (T, B, 4H) f32  precomputed x @ W_ih1 + b1 per direction
    whh1, whh2:  (2, H, 4H)  bf16 recurrent weights per direction
    wih2:        (2, 2H, 4H) f32  layer-2 input weights per direction
    b2:          (2, 1, 4H)  f32  layer-2 input bias per direction
    lengths_col: (B, 1)      i32  per-sequence valid lengths
    Returns (2, B, H): final hidden of the last layer (0 = fwd, 1 = bwd).
    """
    T, B, G = gx1f.shape
    H = G // 4
    return pl.pallas_call(
        _make_fused_bilstm2_kernel(T, B, H),
        out_shape=jax.ShapeDtypeStruct((2, B, H), jnp.float32),
        grid_spec=pltpu.PrefetchScalarGridSpec(
            num_scalar_prefetch=0,
            grid=(1,),
            in_specs=[
                pl.BlockSpec((B, 1), lambda i: (0, 0)),             # lengths
                pl.BlockSpec((T, B, G), lambda i: (0, 0, 0)),       # gx1 fwd
                pl.BlockSpec((T, B, G), lambda i: (0, 0, 0)),       # gx1 bwd
                pl.BlockSpec((2, H, G), lambda i: (0, 0, 0)),       # W_hh L1
                pl.BlockSpec((2, 2 * H, G), lambda i: (0, 0, 0)),   # W_ih L2
                pl.BlockSpec((2, 1, G), lambda i: (0, 0, 0)),       # b L2
                pl.BlockSpec((2, H, G), lambda i: (0, 0, 0)),       # W_hh L2
            ],
            out_specs=pl.BlockSpec((2, B, H), lambda i: (0, 0, 0)),
            scratch_shapes=[
                pltpu.VMEM((T * B, H), jnp.float32),   # layer-1 fwd sequence
                pltpu.VMEM((T * B, H), jnp.float32),   # layer-1 bwd sequence
            ],
        ),
        compiler_params=pltpu.CompilerParams(
            dimension_semantics=("arbitrary",),
            vmem_limit_bytes=32 * 1024 * 1024,
        ),
    )(lengths_col, gx1f, gx1b, whh1, wih2, b2, whh2)


# ----------------------------------------------------------------------------
# Full forward pass (eval mode: dropout = identity)
# ----------------------------------------------------------------------------
def rnn_forward(params, text, text_lengths):
    # TODO(synk): dropout is identity (eval mode); training-mode dropout masks
    # are not implemented.
    assert len(params["lstm"]) == 2, "fused kernel is specialized to 2 layers"
    T, B = text.shape
    B_pad = ((B + 7) // 8) * 8                       # sublane-pad the batch
    if B_pad != B:
        # Padding rows get token 0 and length 0; they are fully masked in the
        # kernel and dropped from the result, so the dummy token never matters.
        text = jnp.pad(text, ((0, 0), (0, B_pad - B)))
        text_lengths = jnp.pad(text_lengths, (0, B_pad - B))

    l1, l2 = params["lstm"]
    embedded = params["embedding"][text]                       # (T, B_pad, E)
    lengths_col = text_lengths.astype(jnp.int32)[:, None]      # (B_pad, 1)

    # Layer-1 input projection hoisted out of the recurrence (one XLA matmul).
    gx1 = jnp.einsum("tbe,deg->dtbg", embedded, l1["w_ih"]) + l1["b"][:, None]

    h_fin = fused_bilstm2(gx1[0], gx1[1], l1["w_hh"],
                          l2["w_ih"], l2["b"], l2["w_hh"],
                          lengths_col)                         # (2, B_pad, H)

    hidden = jnp.concatenate([h_fin[0], h_fin[1]], axis=-1)    # (B_pad, 2H)
    # Final Linear in plain XLA: a standalone tiny Pallas FC call costs more in
    # launch overhead than its compute.  Dropout = identity.
    res = hidden @ params["fc_w"] + params["fc_b"]
    return res[:B]


# ----------------------------------------------------------------------------
# Deterministic parameter init (shapes from the module's __init__)
# ----------------------------------------------------------------------------
def _reorder_gates(w):
    # PyTorch LSTM gate order along the 4H axis is (i, f, g, o); the kernel
    # wants (i, f, o, g) so tanh is applied only to the last contiguous H lanes.
    i, f, g, o = jnp.split(w, 4, axis=-1)
    return jnp.concatenate([i, f, o, g], axis=-1)


def init_params(key, vocab_size, embedding_dim, hidden_dim, output_dim,
                n_layers, pad_idx):
    keys = jax.random.split(key, 3 + 4 * n_layers)
    k_iter = iter(keys)

    emb = 0.1 * jax.random.normal(next(k_iter), (vocab_size, embedding_dim),
                                  dtype=jnp.float32)
    emb = emb.at[pad_idx].set(0.0)                   # padding_idx row is zero

    def unif(k, shape, bound):
        return jax.random.uniform(k, shape, dtype=jnp.float32,
                                  minval=-bound, maxval=bound)

    bound = 1.0 / float(hidden_dim) ** 0.5
    lstm_params = []
    for layer in range(n_layers):
        d_in = embedding_dim if layer == 0 else 2 * hidden_dim
        w_ih = _reorder_gates(
            unif(next(k_iter), (2, d_in, 4 * hidden_dim), bound))
        w_hh = _reorder_gates(
            unif(next(k_iter), (2, hidden_dim, 4 * hidden_dim), bound))
        # b_ih + b_hh: sum of two independent uniforms, as in PyTorch.
        b = _reorder_gates(
            unif(next(k_iter), (2, 1, 4 * hidden_dim), bound)
            + unif(next(k_iter), (2, 1, 4 * hidden_dim), bound))
        lstm_params.append({
            "w_ih": w_ih,                            # f32 (L1: XLA, L2: in-kernel)
            "w_hh": w_hh.astype(jnp.bfloat16),       # bf16 stream, f32 MXU accum
            "b": b,
        })

    fc_bound = 1.0 / float(2 * hidden_dim) ** 0.5
    fc_w = unif(next(k_iter), (2 * hidden_dim, output_dim), fc_bound)
    fc_b = unif(next(k_iter), (output_dim,), fc_bound)

    return {"embedding": emb, "lstm": lstm_params, "fc_w": fc_w, "fc_b": fc_b}


# ----------------------------------------------------------------------------
# Main
# ----------------------------------------------------------------------------
if __name__ == "__main__":
    VOCAB_SIZE = 100
    EMBEDDING_DIM = 32
    HIDDEN_DIM = 32
    OUTPUT_DIM = 2
    N_LAYERS = 2
    PAD_IDX = 1
    T, B = 8, 4   # seq_len, batch

    key = jax.random.PRNGKey(0)
    k_param, k_text = jax.random.split(key)

    params = init_params(k_param, VOCAB_SIZE, EMBEDDING_DIM, HIDDEN_DIM,
                         OUTPUT_DIM, N_LAYERS, PAD_IDX)

    # lengths sorted descending (pack_padded_sequence default requirement)
    text_lengths = jnp.array([8, 7, 5, 3], dtype=jnp.int32)
    text = jax.random.randint(k_text, (T, B), 2, VOCAB_SIZE, dtype=jnp.int32)
    pad_mask = jnp.arange(T)[:, None] >= text_lengths[None, :]
    text = jnp.where(pad_mask, PAD_IDX, text)

    fwd = jax.jit(lambda txt, lens: rnn_forward(params, txt, lens))
    res = fwd(text, text_lengths)
    jax.block_until_ready(res)

    assert res.shape == (B, OUTPUT_DIM)
    assert bool(jnp.all(jnp.isfinite(res)))
    print("KERNEL_OK")
</pallas_src>

<mosaic_0001>
module attributes {stable_mosaic.version = 11 : i64} {
  func.func @kernel(%arg0: i32, %arg1: memref<8x1xi32, #tpu.memory_space<vmem>>, %arg2: memref<8x8x128xf32, #tpu.memory_space<vmem>>, %arg3: memref<8x8x128xf32, #tpu.memory_space<vmem>>, %arg4: memref<2x32x128xbf16, #tpu.memory_space<vmem>>, %arg5: memref<2x64x128xf32, #tpu.memory_space<vmem>>, %arg6: memref<2x1x128xf32, #tpu.memory_space<vmem>>, %arg7: memref<2x32x128xbf16, #tpu.memory_space<vmem>>, %arg8: memref<2x8x32xf32, #tpu.memory_space<vmem>>, %arg9: memref<64x32xf32, #tpu.memory_space<vmem>>, %arg10: memref<64x32xf32, #tpu.memory_space<vmem>>) attributes {dimension_semantics = [#tpu.dimension_semantics<arbitrary>], iteration_bounds = array<i64: 1>, scalar_prefetch = 0 : i64, scratch_operands = 2 : i64, tpu.core_type = #tpu.core_type<tc>, window_params = [{pipeline_mode = #tpu.pipeline_mode<synchronous>, transform_indices = @transform_0, window_bounds = array<i64: 8, 1>}, {pipeline_mode = #tpu.pipeline_mode<synchronous>, transform_indices = @transform_1, window_bounds = array<i64: 8, 8, 128>}, {pipeline_mode = #tpu.pipeline_mode<synchronous>, transform_indices = @transform_2, window_bounds = array<i64: 8, 8, 128>}, {pipeline_mode = #tpu.pipeline_mode<synchronous>, transform_indices = @transform_3, window_bounds = array<i64: 2, 32, 128>}, {pipeline_mode = #tpu.pipeline_mode<synchronous>, transform_indices = @transform_4, window_bounds = array<i64: 2, 64, 128>}, {pipeline_mode = #tpu.pipeline_mode<synchronous>, transform_indices = @transform_5, window_bounds = array<i64: 2, 1, 128>}, {pipeline_mode = #tpu.pipeline_mode<synchronous>, transform_indices = @transform_6, window_bounds = array<i64: 2, 32, 128>}, {pipeline_mode = #tpu.pipeline_mode<synchronous>, transform_indices = @transform_7, window_bounds = array<i64: 2, 8, 32>}]} {
    %c0 = arith.constant 0 : index
    %c0_0 = arith.constant 0 : index
    %0 = vector.load %arg1[%c0, %c0_0] : memref<8x1xi32, #tpu.memory_space<vmem>>, vector<8x1xi32>
    %c0_1 = arith.constant 0 : index
    %c0_2 = arith.constant 0 : index
    %c0_3 = arith.constant 0 : index
    %1 = vector.load %arg4[%c0_1, %c0_2, %c0_3] : memref<2x32x128xbf16, #tpu.memory_space<vmem>>, vector<1x32x128xbf16>
    %2 = vector.shape_cast %1 : vector<1x32x128xbf16> to vector<32x128xbf16>
    %c1 = arith.constant 1 : index
    %c0_4 = arith.constant 0 : index
    %c0_5 = arith.constant 0 : index
    %3 = vector.load %arg4[%c1, %c0_4, %c0_5] : memref<2x32x128xbf16, #tpu.memory_space<vmem>>, vector<1x32x128xbf16>
    %4 = vector.shape_cast %3 : vector<1x32x128xbf16> to vector<32x128xbf16>
    %cst = arith.constant 0.000000e+00 : f32
    %5 = vector.broadcast %cst : f32 to vector<8x32xf32>
    %c0_6 = arith.constant 0 : index
    %c0_7 = arith.constant 0 : index
    %c0_8 = arith.constant 0 : index
    %6 = vector.load %arg2[%c0_6, %c0_7, %c0_8] : memref<8x8x128xf32, #tpu.memory_space<vmem>>, vector<1x8x128xf32>
    %7 = vector.shape_cast %6 : vector<1x8x128xf32> to vector<8x128xf32>
    %8 = arith.truncf %5 : vector<8x32xf32> to vector<8x32xbf16>
    %cst_9 = arith.constant dense<0.000000e+00> : vector<8x128xf32>
    %9 = tpu.matmul %8, %2, %cst_9 {dimension_numbers = #tpu.dot_dimension_numbers<[1], [0], [0], [1], [0, 0, 1, 1], [], []>} : vector<8x32xbf16>, vector<32x128xbf16>, vector<8x128xf32> -> vector<8x128xf32>
    %10 = arith.addf %7, %9 : vector<8x128xf32>
    %c7 = arith.constant 7 : index
    %c0_10 = arith.constant 0 : index
    %c0_11 = arith.constant 0 : index
    %11 = vector.load %arg3[%c7, %c0_10, %c0_11] : memref<8x8x128xf32, #tpu.memory_space<vmem>>, vector<1x8x128xf32>
    %12 = vector.shape_cast %11 : vector<1x8x128xf32> to vector<8x128xf32>
    %13 = arith.truncf %5 : vector<8x32xf32> to vector<8x32xbf16>
    %cst_12 = arith.constant dense<0.000000e+00> : vector<8x128xf32>
    %14 = tpu.matmul %13, %4, %cst_12 {dimension_numbers = #tpu.dot_dimension_numbers<[1], [0], [0], [1], [0, 0, 1, 1], [], []>} : vector<8x32xbf16>, vector<32x128xbf16>, vector<8x128xf32> -> vector<8x128xf32>
    %15 = arith.addf %12, %14 : vector<8x128xf32>
    %c0_i32 = arith.constant 0 : i32
    %16 = vector.broadcast %c0_i32 : i32 to vector<8x1xi32>
    %17 = arith.cmpi sgt, %0, %16 : vector<8x1xi32>
    %18 = vector.extract_strided_slice %10 {offsets = [0, 0], sizes = [8, 96], strides = [1, 1]} : vector<8x128xf32> to vector<8x96xf32>
    %19 = arith.negf %18 : vector<8x96xf32>
    %20 = math.exp %19 : vector<8x96xf32>
    %cst_13 = arith.constant 1.000000e+00 : f32
    %21 = vector.broadcast %cst_13 : f32 to vector<8x96xf32>
    %22 = arith.addf %21, %20 : vector<8x96xf32>
    %23 = arith.divf %21, %22 : vector<8x96xf32>
    %24 = vector.extract_strided_slice %10 {offsets = [0, 96], sizes = [8, 32], strides = [1, 1]} : vector<8x128xf32> to vector<8x32xf32>
    %25 = math.tanh %24 : vector<8x32xf32>
    %26 = vector.extract_strided_slice %23 {offsets = [0, 0], sizes = [8, 32], strides = [1, 1]} : vector<8x96xf32> to vector<8x32xf32>
    %27 = vector.extract_strided_slice %23 {offsets = [0, 32], sizes = [8, 32], strides = [1, 1]} : vector<8x96xf32> to vector<8x32xf32>
    %28 = vector.extract_strided_slice %23 {offsets = [0, 64], sizes = [8, 32], strides = [1, 1]} : vector<8x96xf32> to vector<8x32xf32>
    %29 = arith.mulf %27, %5 : vector<8x32xf32>
    %30 = arith.mulf %26, %25 : vector<8x32xf32>
    %31 = arith.addf %29, %30 : vector<8x32xf32>
    %32 = math.tanh %31 : vector<8x32xf32>
    %33 = arith.mulf %28, %32 : vector<8x32xf32>
    %34 = vector.shape_cast %17 : vector<8x1xi1> to vector<8x1xi1>
    %35 = vector.broadcast %34 : vector<8x1xi1> to vector<8x32xi1>
    %36 = arith.select %35, %31, %5 : vector<8x32xi1>, vector<8x32xf32>
    %37 = vector.shape_cast %17 : vector<8x1xi1> to vector<8x1xi1>
    %38 = vector.broadcast %37 : vector<8x1xi1> to vector<8x32xi1>
    %39 = arith.select %38, %33, %5 : vector<8x32xi1>, vector<8x32xf32>
    %cst_14 = arith.constant 0.000000e+00 : f32
    %40 = vector.shape_cast %17 : vector<8x1xi1> to vector<8x1xi1>
    %41 = vector.broadcast %40 : vector<8x1xi1> to vector<8x32xi1>
    %42 = vector.broadcast %cst_14 : f32 to vector<8x32xf32>
    %43 = arith.select %41, %33, %42 : vector<8x32xi1>, vector<8x32xf32>
    %c7_i32 = arith.constant 7 : i32
    %44 = vector.broadcast %c7_i32 : i32 to vector<8x1xi32>
    %45 = arith.cmpi sgt, %0, %44 : vector<8x1xi32>
    %46 = vector.extract_strided_slice %15 {offsets = [0, 0], sizes = [8, 96], strides = [1, 1]} : vector<8x128xf32> to vector<8x96xf32>
    %47 = arith.negf %46 : vector<8x96xf32>
    %48 = math.exp %47 : vector<8x96xf32>
    %cst_15 = arith.constant 1.000000e+00 : f32
    %49 = vector.broadcast %cst_15 : f32 to vector<8x96xf32>
    %50 = arith.addf %49, %48 : vector<8x96xf32>
    %51 = arith.divf %49, %50 : vector<8x96xf32>
    %52 = vector.extract_strided_slice %15 {offsets = [0, 96], sizes = [8, 32], strides = [1, 1]} : vector<8x128xf32> to vector<8x32xf32>
    %53 = math.tanh %52 : vector<8x32xf32>
    %54 = vector.extract_strided_slice %51 {offsets = [0, 0], sizes = [8, 32], strides = [1, 1]} : vector<8x96xf32> to vector<8x32xf32>
    %55 = vector.extract_strided_slice %51 {offsets = [0, 32], sizes = [8, 32], strides = [1, 1]} : vector<8x96xf32> to vector<8x32xf32>
    %56 = vector.extract_strided_slice %51 {offsets = [0, 64], sizes = [8, 32], strides = [1, 1]} : vector<8x96xf32> to vector<8x32xf32>
    %57 = arith.mulf %55, %5 : vector<8x32xf32>
    %58 = arith.mulf %54, %53 : vector<8x32xf32>
    %59 = arith.addf %57, %58 : vector<8x32xf32>
    %60 = math.tanh %59 : vector<8x32xf32>
    %61 = arith.mulf %56, %60 : vector<8x32xf32>
    %62 = vector.shape_cast %45 : vector<8x1xi1> to vector<8x1xi1>
    %63 = vector.broadcast %62 : vector<8x1xi1> to vector<8x32xi1>
    %64 = arith.select %63, %59, %5 : vector<8x32xi1>, vector<8x32xf32>
    %65 = vector.shape_cast %45 : vector<8x1xi1> to vector<8x1xi1>
    %66 = vector.broadcast %65 : vector<8x1xi1> to vector<8x32xi1>
    %67 = arith.select %66, %61, %5 : vector<8x32xi1>, vector<8x32xf32>
    %cst_16 = arith.constant 0.000000e+00 : f32
    %68 = vector.shape_cast %45 : vector<8x1xi1> to vector<8x1xi1>
    %69 = vector.broadcast %68 : vector<8x1xi1> to vector<8x32xi1>
    %70 = vector.broadcast %cst_16 : f32 to vector<8x32xf32>
    %71 = arith.select %69, %61, %70 : vector<8x32xi1>, vector<8x32xf32>
    %c0_17 = arith.constant 0 : index
    %c0_18 = arith.constant 0 : index
    %72 = vector.load %arg9[%c0_17, %c0_18] : memref<64x32xf32, #tpu.memory_space<vmem>>, vector<8x32xf32>
    tpu.vector_store %arg9[%c0_17, %c0_18], %43 {strides = array<i32>} : memref<64x32xf32, #tpu.memory_space<vmem>>, vector<8x32xf32>,
    %c56 = arith.constant 56 : index
    %c0_19 = arith.constant 0 : index
    %73 = vector.load %arg10[%c56, %c0_19] : memref<64x32xf32, #tpu.memory_space<vmem>>, vector<8x32xf32>
    tpu.vector_store %arg10[%c56, %c0_19], %71 {strides = array<i32>} : memref<64x32xf32, #tpu.memory_space<vmem>>, vector<8x32xf32>,
    %c1_20 = arith.constant 1 : index
    %c0_21 = arith.constant 0 : index
    %c0_22 = arith.constant 0 : index
    %74 = vector.load %arg2[%c1_20, %c0_21, %c0_22] : memref<8x8x128xf32, #tpu.memory_space<vmem>>, vector<1x8x128xf32>
    %75 = vector.shape_cast %74 : vector<1x8x128xf32> to vector<8x128xf32>
    %76 = arith.truncf %39 : vector<8x32xf32> to vector<8x32xbf16>
    %cst_23 = arith.constant dense<0.000000e+00> : vector<8x128xf32>
    %77 = tpu.matmul %76, %2, %cst_23 {dimension_numbers = #tpu.dot_dimension_numbers<[1], [0], [0], [1], [0, 0, 1, 1], [], []>} : vector<8x32xbf16>, vector<32x128xbf16>, vector<8x128xf32> -> vector<8x128xf32>
    %78 = arith.addf %75, %77 : vector<8x128xf32>
    %c6 = arith.constant 6 : index
    %c0_24 = arith.constant 0 : index
    %c0_25 = arith.constant 0 : index
    %79 = vector.load %arg3[%c6, %c0_24, %c0_25] : memref<8x8x128xf32, #tpu.memory_space<vmem>>, vector<1x8x128xf32>
    %80 = vector.shape_cast %79 : vector<1x8x128xf32> to vector<8x128xf32>
    %81 = arith.truncf %67 : vector<8x32xf32> to vector<8x32xbf16>
    %cst_26 = arith.constant dense<0.000000e+00> : vector<8x128xf32>
    %82 = tpu.matmul %81, %4, %cst_26 {dimension_numbers = #tpu.dot_dimension_numbers<[1], [0], [0], [1], [0, 0, 1, 1], [], []>} : vector<8x32xbf16>, vector<32x128xbf16>, vector<8x128xf32> -> vector<8x128xf32>
    %83 = arith.addf %80, %82 : vector<8x128xf32>
    %c1_i32 = arith.constant 1 : i32
    %84 = vector.broadcast %c1_i32 : i32 to vector<8x1xi32>
    %85 = arith.cmpi sgt, %0, %84 : vector<8x1xi32>
    %86 = vector.extract_strided_slice %78 {offsets = [0, 0], sizes = [8, 96], strides = [1, 1]} : vector<8x128xf32> to vector<8x96xf32>
    %87 = arith.negf %86 : vector<8x96xf32>
    %88 = math.exp %87 : vector<8x96xf32>
    %cst_27 = arith.constant 1.000000e+00 : f32
    %89 = vector.broadcast %cst_27 : f32 to vector<8x96xf32>
    %90 = arith.addf %89, %88 : vector<8x96xf32>
    %91 = arith.divf %89, %90 : vector<8x96xf32>
    %92 = vector.extract_strided_slice %78 {offsets = [0, 96], sizes = [8, 32], strides = [1, 1]} : vector<8x128xf32> to vector<8x32xf32>
    %93 = math.tanh %92 : vector<8x32xf32>
    %94 = vector.extract_strided_slice %91 {offsets = [0, 0], sizes = [8, 32], strides = [1, 1]} : vector<8x96xf32> to vector<8x32xf32>
    %95 = vector.extract_strided_slice %91 {offsets = [0, 32], sizes = [8, 32], strides = [1, 1]} : vector<8x96xf32> to vector<8x32xf32>
    %96 = vector.extract_strided_slice %91 {offsets = [0, 64], sizes = [8, 32], strides = [1, 1]} : vector<8x96xf32> to vector<8x32xf32>
    %97 = arith.mulf %95, %36 : vector<8x32xf32>
    %98 = arith.mulf %94, %93 : vector<8x32xf32>
    %99 = arith.addf %97, %98 : vector<8x32xf32>
    %100 = math.tanh %99 : vector<8x32xf32>
    %101 = arith.mulf %96, %100 : vector<8x32xf32>
    %102 = vector.shape_cast %85 : vector<8x1xi1> to vector<8x1xi1>
    %103 = vector.broadcast %102 : vector<8x1xi1> to vector<8x32xi1>
    %104 = arith.select %103, %99, %36 : vector<8x32xi1>, vector<8x32xf32>
    %105 = vector.shape_cast %85 : vector<8x1xi1> to vector<8x1xi1>
    %106 = vector.broadcast %105 : vector<8x1xi1> to vector<8x32xi1>
    %107 = arith.select %106, %101, %39 : vector<8x32xi1>, vector<8x32xf32>
    %cst_28 = arith.constant 0.000000e+00 : f32
    %108 = vector.shape_cast %85 : vector<8x1xi1> to vector<8x1xi1>
    %109 = vector.broadcast %108 : vector<8x1xi1> to vector<8x32xi1>
    %110 = vector.broadcast %cst_28 : f32 to vector<8x32xf32>
    %111 = arith.select %109, %101, %110 : vector<8x32xi1>, vector<8x32xf32>
    %c6_i32 = arith.constant 6 : i32
    %112 = vector.broadcast %c6_i32 : i32 to vector<8x1xi32>
    %113 = arith.cmpi sgt, %0, %112 : vector<8x1xi32>
    %114 = vector.extract_strided_slice %83 {offsets = [0, 0], sizes = [8, 96], strides = [1, 1]} : vector<8x128xf32> to vector<8x96xf32>
    %115 = arith.negf %114 : vector<8x96xf32>
    %116 = math.exp %115 : vector<8x96xf32>
    %cst_29 = arith.constant 1.000000e+00 : f32
    %117 = vector.broadcast %cst_29 : f32 to vector<8x96xf32>
    %118 = arith.addf %117, %116 : vector<8x96xf32>
    %119 = arith.divf %117, %118 : vector<8x96xf32>
    %120 = vector.extract_strided_slice %83 {offsets = [0, 96], sizes = [8, 32], strides = [1, 1]} : vector<8x128xf32> to vector<8x32xf32>
    %121 = math.tanh %120 : vector<8x32xf32>
    %122 = vector.extract_strided_slice %119 {offsets = [0, 0], sizes = [8, 32], strides = [1, 1]} : vector<8x96xf32> to vector<8x32xf32>
    %123 = vector.extract_strided_slice %119 {offsets = [0, 32], sizes = [8, 32], strides = [1, 1]} : vector<8x96xf32> to vector<8x32xf32>
    %124 = vector.extract_strided_slice %119 {offsets = [0, 64], sizes = [8, 32], strides = [1, 1]} : vector<8x96xf32> to vector<8x32xf32>
    %125 = arith.mulf %123, %64 : vector<8x32xf32>
    %126 = arith.mulf %122, %121 : vector<8x32xf32>
    %127 = arith.addf %125, %126 : vector<8x32xf32>
    %128 = math.tanh %127 : vector<8x32xf32>
    %129 = arith.mulf %124, %128 : vector<8x32xf32>
    %130 = vector.shape_cast %113 : vector<8x1xi1> to vector<8x1xi1>
    %131 = vector.broadcast %130 : vector<8x1xi1> to vector<8x32xi1>
    %132 = arith.select %131, %127, %64 : vector<8x32xi1>, vector<8x32xf32>
    %133 = vector.shape_cast %113 : vector<8x1xi1> to vector<8x1xi1>
    %134 = vector.broadcast %133 : vector<8x1xi1> to vector<8x32xi1>
    %135 = arith.select %134, %129, %67 : vector<8x32xi1>, vector<8x32xf32>
    %cst_30 = arith.constant 0.000000e+00 : f32
    %136 = vector.shape_cast %113 : vector<8x1xi1> to vector<8x1xi1>
    %137 = vector.broadcast %136 : vector<8x1xi1> to vector<8x32xi1>
    %138 = vector.broadcast %cst_30 : f32 to vector<8x32xf32>
    %139 = arith.select %137, %129, %138 : vector<8x32xi1>, vector<8x32xf32>
    %c8 = arith.constant 8 : index
    %c0_31 = arith.constant 0 : index
    %140 = vector.load %arg9[%c8, %c0_31] : memref<64x32xf32, #tpu.memory_space<vmem>>, vector<8x32xf32>
    tpu.vector_store %arg9[%c8, %c0_31], %111 {strides = array<i32>} : memref<64x32xf32, #tpu.memory_space<vmem>>, vector<8x32xf32>,
    %c48 = arith.constant 48 : index
    %c0_32 = arith.constant 0 : index
    %141 = vector.load %arg10[%c48, %c0_32] : memref<64x32xf32, #tpu.memory_space<vmem>>, vector<8x32xf32>
    tpu.vector_store %arg10[%c48, %c0_32], %139 {strides = array<i32>} : memref<64x32xf32, #tpu.memory_space<vmem>>, vector<8x32xf32>,
    %c2 = arith.constant 2 : index
    %c0_33 = arith.constant 0 : index
    %c0_34 = arith.constant 0 : index
    %142 = vector.load %arg2[%c2, %c0_33, %c0_34] : memref<8x8x128xf32, #tpu.memory_space<vmem>>, vector<1x8x128xf32>
    %143 = vector.shape_cast %142 : vector<1x8x128xf32> to vector<8x128xf32>
    %144 = arith.truncf %107 : vector<8x32xf32> to vector<8x32xbf16>
    %cst_35 = arith.constant dense<0.000000e+00> : vector<8x128xf32>
    %145 = tpu.matmul %144, %2, %cst_35 {dimension_numbers = #tpu.dot_dimension_numbers<[1], [0], [0], [1], [0, 0, 1, 1], [], []>} : vector<8x32xbf16>, vector<32x128xbf16>, vector<8x128xf32> -> vector<8x128xf32>
    %146 = arith.addf %143, %145 : vector<8x128xf32>
    %c5 = arith.constant 5 : index
    %c0_36 = arith.constant 0 : index
    %c0_37 = arith.constant 0 : index
    %147 = vector.load %arg3[%c5, %c0_36, %c0_37] : memref<8x8x128xf32, #tpu.memory_space<vmem>>, vector<1x8x128xf32>
    %148 = vector.shape_cast %147 : vector<1x8x128xf32> to vector<8x128xf32>
    %149 = arith.truncf %135 : vector<8x32xf32> to vector<8x32xbf16>
    %cst_38 = arith.constant dense<0.000000e+00> : vector<8x128xf32>
    %150 = tpu.matmul %149, %4, %cst_38 {dimension_numbers = #tpu.dot_dimension_numbers<[1], [0], [0], [1], [0, 0, 1, 1], [], []>} : vector<8x32xbf16>, vector<32x128xbf16>, vector<8x128xf32> -> vector<8x128xf32>
    %151 = arith.addf %148, %150 : vector<8x128xf32>
    %c2_i32 = arith.constant 2 : i32
    %152 = vector.broadcast %c2_i32 : i32 to vector<8x1xi32>
    %153 = arith.cmpi sgt, %0, %152 : vector<8x1xi32>
    %154 = vector.extract_strided_slice %146 {offsets = [0, 0], sizes = [8, 96], strides = [1, 1]} : vector<8x128xf32> to vector<8x96xf32>
    %155 = arith.negf %154 : vector<8x96xf32>
    %156 = math.exp %155 : vector<8x96xf32>
    %cst_39 = arith.constant 1.000000e+00 : f32
    %157 = vector.broadcast %cst_39 : f32 to vector<8x96xf32>
    %158 = arith.addf %157, %156 : vector<8x96xf32>
    %159 = arith.divf %157, %158 : vector<8x96xf32>
    %160 = vector.extract_strided_slice %146 {offsets = [0, 96], sizes = [8, 32], strides = [1, 1]} : vector<8x128xf32> to vector<8x32xf32>
    %161 = math.tanh %160 : vector<8x32xf32>
    %162 = vector.extract_strided_slice %159 {offsets = [0, 0], sizes = [8, 32], strides = [1, 1]} : vector<8x96xf32> to vector<8x32xf32>
    %163 = vector.extract_strided_slice %159 {offsets = [0, 32], sizes = [8, 32], strides = [1, 1]} : vector<8x96xf32> to vector<8x32xf32>
    %164 = vector.extract_strided_slice %159 {offsets = [0, 64], sizes = [8, 32], strides = [1, 1]} : vector<8x96xf32> to vector<8x32xf32>
    %165 = arith.mulf %163, %104 : vector<8x32xf32>
    %166 = arith.mulf %162, %161 : vector<8x32xf32>
    %167 = arith.addf %165, %166 : vector<8x32xf32>
    %168 = math.tanh %167 : vector<8x32xf32>
    %169 = arith.mulf %164, %168 : vector<8x32xf32>
    %170 = vector.shape_cast %153 : vector<8x1xi1> to vector<8x1xi1>
    %171 = vector.broadcast %170 : vector<8x1xi1> to vector<8x32xi1>
    %172 = arith.select %171, %167, %104 : vector<8x32xi1>, vector<8x32xf32>
    %173 = vector.shape_cast %153 : vector<8x1xi1> to vector<8x1xi1>
    %174 = vector.broadcast %173 : vector<8x1xi1> to vector<8x32xi1>
    %175 = arith.select %174, %169, %107 : vector<8x32xi1>, vector<8x32xf32>
    %cst_40 = arith.constant 0.000000e+00 : f32
    %176 = vector.shape_cast %153 : vector<8x1xi1> to vector<8x1xi1>
    %177 = vector.broadcast %176 : vector<8x1xi1> to vector<8x32xi1>
    %178 = vector.broadcast %cst_40 : f32 to vector<8x32xf32>
    %179 = arith.select %177, %169, %178 : vector<8x32xi1>, vector<8x32xf32>
    %c5_i32 = arith.constant 5 : i32
    %180 = vector.broadcast %c5_i32 : i32 to vector<8x1xi32>
    %181 = arith.cmpi sgt, %0, %180 : vector<8x1xi32>
    %182 = vector.extract_strided_slice %151 {offsets = [0, 0], sizes = [8, 96], strides = [1, 1]} : vector<8x128xf32> to vector<8x96xf32>
    %183 = arith.negf %182 : vector<8x96xf32>
    %184 = math.exp %183 : vector<8x96xf32>
    %cst_41 = arith.constant 1.000000e+00 : f32
    %185 = vector.broadcast %cst_41 : f32 to vector<8x96xf32>
    %186 = arith.addf %185, %184 : vector<8x96xf32>
    %187 = arith.divf %185, %186 : vector<8x96xf32>
    %188 = vector.extract_strided_slice %151 {offsets = [0, 96], sizes = [8, 32], strides = [1, 1]} : vector<8x128xf32> to vector<8x32xf32>
    %189 = math.tanh %188 : vector<8x32xf32>
    %190 = vector.extract_strided_slice %187 {offsets = [0, 0], sizes = [8, 32], strides = [1, 1]} : vector<8x96xf32> to vector<8x32xf32>
    %191 = vector.extract_strided_slice %187 {offsets = [0, 32], sizes = [8, 32], strides = [1, 1]} : vector<8x96xf32> to vector<8x32xf32>
    %192 = vector.extract_strided_slice %187 {offsets = [0, 64], sizes = [8, 32], strides = [1, 1]} : vector<8x96xf32> to vector<8x32xf32>
    %193 = arith.mulf %191, %132 : vector<8x32xf32>
    %194 = arith.mulf %190, %189 : vector<8x32xf32>
    %195 = arith.addf %193, %194 : vector<8x32xf32>
    %196 = math.tanh %195 : vector<8x32xf32>
    %197 = arith.mulf %192, %196 : vector<8x32xf32>
    %198 = vector.shape_cast %181 : vector<8x1xi1> to vector<8x1xi1>
    %199 = vector.broadcast %198 : vector<8x1xi1> to vector<8x32xi1>
    %200 = arith.select %199, %195, %132 : vector<8x32xi1>, vector<8x32xf32>
    %201 = vector.shape_cast %181 : vector<8x1xi1> to vector<8x1xi1>
    %202 = vector.broadcast %201 : vector<8x1xi1> to vector<8x32xi1>
    %203 = arith.select %202, %197, %135 : vector<8x32xi1>, vector<8x32xf32>
    %cst_42 = arith.constant 0.000000e+00 : f32
    %204 = vector.shape_cast %181 : vector<8x1xi1> to vector<8x1xi1>
    %205 = vector.broadcast %204 : vector<8x1xi1> to vector<8x32xi1>
    %206 = vector.broadcast %cst_42 : f32 to vector<8x32xf32>
    %207 = arith.select %205, %197, %206 : vector<8x32xi1>, vector<8x32xf32>
    %c16 = arith.constant 16 : index
    %c0_43 = arith.constant 0 : index
    %208 = vector.load %arg9[%c16, %c0_43] : memref<64x32xf32, #tpu.memory_space<vmem>>, vector<8x32xf32>
    tpu.vector_store %arg9[%c16, %c0_43], %179 {strides = array<i32>} : memref<64x32xf32, #tpu.memory_space<vmem>>, vector<8x32xf32>,
    %c40 = arith.constant 40 : index
    %c0_44 = arith.constant 0 : index
    %209 = vector.load %arg10[%c40, %c0_44] : memref<64x32xf32, #tpu.memory_space<vmem>>, vector<8x32xf32>
    tpu.vector_store %arg10[%c40, %c0_44], %207 {strides = array<i32>} : memref<64x32xf32, #tpu.memory_space<vmem>>, vector<8x32xf32>,
    %c3 = arith.constant 3 : index
    %c0_45 = arith.constant 0 : index
    %c0_46 = arith.constant 0 : index
    %210 = vector.load %arg2[%c3, %c0_45, %c0_46] : memref<8x8x128xf32, #tpu.memory_space<vmem>>, vector<1x8x128xf32>
    %211 = vector.shape_cast %210 : vector<1x8x128xf32> to vector<8x128xf32>
    %212 = arith.truncf %175 : vector<8x32xf32> to vector<8x32xbf16>
    %cst_47 = arith.constant dense<0.000000e+00> : vector<8x128xf32>
    %213 = tpu.matmul %212, %2, %cst_47 {dimension_numbers = #tpu.dot_dimension_numbers<[1], [0], [0], [1], [0, 0, 1, 1], [], []>} : vector<8x32xbf16>, vector<32x128xbf16>, vector<8x128xf32> -> vector<8x128xf32>
    %214 = arith.addf %211, %213 : vector<8x128xf32>
    %c4 = arith.constant 4 : index
    %c0_48 = arith.constant 0 : index
    %c0_49 = arith.constant 0 : index
    %215 = vector.load %arg3[%c4, %c0_48, %c0_49] : memref<8x8x128xf32, #tpu.memory_space<vmem>>, vector<1x8x128xf32>
    %216 = vector.shape_cast %215 : vector<1x8x128xf32> to vector<8x128xf32>
    %217 = arith.truncf %203 : vector<8x32xf32> to vector<8x32xbf16>
    %cst_50 = arith.constant dense<0.000000e+00> : vector<8x128xf32>
    %218 = tpu.matmul %217, %4, %cst_50 {dimension_numbers = #tpu.dot_dimension_numbers<[1], [0], [0], [1], [0, 0, 1, 1], [], []>} : vector<8x32xbf16>, vector<32x128xbf16>, vector<8x128xf32> -> vector<8x128xf32>
    %219 = arith.addf %216, %218 : vector<8x128xf32>
    %c3_i32 = arith.constant 3 : i32
    %220 = vector.broadcast %c3_i32 : i32 to vector<8x1xi32>
    %221 = arith.cmpi sgt, %0, %220 : vector<8x1xi32>
    %222 = vector.extract_strided_slice %214 {offsets = [0, 0], sizes = [8, 96], strides = [1, 1]} : vector<8x128xf32> to vector<8x96xf32>
    %223 = arith.negf %222 : vector<8x96xf32>
    %224 = math.exp %223 : vector<8x96xf32>
    %cst_51 = arith.constant 1.000000e+00 : f32
    %225 = vector.broadcast %cst_51 : f32 to vector<8x96xf32>
    %226 = arith.addf %225, %224 : vector<8x96xf32>
    %227 = arith.divf %225, %226 : vector<8x96xf32>
    %228 = vector.extract_strided_slice %214 {offsets = [0, 96], sizes = [8, 32], strides = [1, 1]} : vector<8x128xf32> to vector<8x32xf32>
    %229 = math.tanh %228 : vector<8x32xf32>
    %230 = vector.extract_strided_slice %227 {offsets = [0, 0], sizes = [8, 32], strides = [1, 1]} : vector<8x96xf32> to vector<8x32xf32>
    %231 = vector.extract_strided_slice %227 {offsets = [0, 32], sizes = [8, 32], strides = [1, 1]} : vector<8x96xf32> to vector<8x32xf32>
    %232 = vector.extract_strided_slice %227 {offsets = [0, 64], sizes = [8, 32], strides = [1, 1]} : vector<8x96xf32> to vector<8x32xf32>
    %233 = arith.mulf %231, %172 : vector<8x32xf32>
    %234 = arith.mulf %230, %229 : vector<8x32xf32>
    %235 = arith.addf %233, %234 : vector<8x32xf32>
    %236 = math.tanh %235 : vector<8x32xf32>
    %237 = arith.mulf %232, %236 : vector<8x32xf32>
    %238 = vector.shape_cast %221 : vector<8x1xi1> to vector<8x1xi1>
    %239 = vector.broadcast %238 : vector<8x1xi1> to vector<8x32xi1>
    %240 = arith.select %239, %235, %172 : vector<8x32xi1>, vector<8x32xf32>
    %241 = vector.shape_cast %221 : vector<8x1xi1> to vector<8x1xi1>
    %242 = vector.broadcast %241 : vector<8x1xi1> to vector<8x32xi1>
    %243 = arith.select %242, %237, %175 : vector<8x32xi1>, vector<8x32xf32>
    %cst_52 = arith.constant 0.000000e+00 : f32
    %244 = vector.shape_cast %221 : vector<8x1xi1> to vector<8x1xi1>
    %245 = vector.broadcast %244 : vector<8x1xi1> to vector<8x32xi1>
    %246 = vector.broadcast %cst_52 : f32 to vector<8x32xf32>
    %247 = arith.select %245, %237, %246 : vector<8x32xi1>, vector<8x32xf32>
    %c4_i32 = arith.constant 4 : i32
    %248 = vector.broadcast %c4_i32 : i32 to vector<8x1xi32>
    %249 = arith.cmpi sgt, %0, %248 : vector<8x1xi32>
    %250 = vector.extract_strided_slice %219 {offsets = [0, 0], sizes = [8, 96], strides = [1, 1]} : vector<8x128xf32> to vector<8x96xf32>
    %251 = arith.negf %250 : vector<8x96xf32>
    %252 = math.exp %251 : vector<8x96xf32>
    %cst_53 = arith.constant 1.000000e+00 : f32
    %253 = vector.broadcast %cst_53 : f32 to vector<8x96xf32>
    %254 = arith.addf %253, %252 : vector<8x96xf32>
    %255 = arith.divf %253, %254 : vector<8x96xf32>
    %256 = vector.extract_strided_slice %219 {offsets = [0, 96], sizes = [8, 32], strides = [1, 1]} : vector<8x128xf32> to vector<8x32xf32>
    %257 = math.tanh %256 : vector<8x32xf32>
    %258 = vector.extract_strided_slice %255 {offsets = [0, 0], sizes = [8, 32], strides = [1, 1]} : vector<8x96xf32> to vector<8x32xf32>
    %259 = vector.extract_strided_slice %255 {offsets = [0, 32], sizes = [8, 32], strides = [1, 1]} : vector<8x96xf32> to vector<8x32xf32>
    %260 = vector.extract_strided_slice %255 {offsets = [0, 64], sizes = [8, 32], strides = [1, 1]} : vector<8x96xf32> to vector<8x32xf32>
    %261 = arith.mulf %259, %200 : vector<8x32xf32>
    %262 = arith.mulf %258, %257 : vector<8x32xf32>
    %263 = arith.addf %261, %262 : vector<8x32xf32>
    %264 = math.tanh %263 : vector<8x32xf32>
    %265 = arith.mulf %260, %264 : vector<8x32xf32>
    %266 = vector.shape_cast %249 : vector<8x1xi1> to vector<8x1xi1>
    %267 = vector.broadcast %266 : vector<8x1xi1> to vector<8x32xi1>
    %268 = arith.select %267, %263, %200 : vector<8x32xi1>, vector<8x32xf32>
    %269 = vector.shape_cast %249 : vector<8x1xi1> to vector<8x1xi1>
    %270 = vector.broadcast %269 : vector<8x1xi1> to vector<8x32xi1>
    %271 = arith.select %270, %265, %203 : vector<8x32xi1>, vector<8x32xf32>
    %cst_54 = arith.constant 0.000000e+00 : f32
    %272 = vector.shape_cast %249 : vector<8x1xi1> to vector<8x1xi1>
    %273 = vector.broadcast %272 : vector<8x1xi1> to vector<8x32xi1>
    %274 = vector.broadcast %cst_54 : f32 to vector<8x32xf32>
    %275 = arith.select %273, %265, %274 : vector<8x32xi1>, vector<8x32xf32>
    %c24 = arith.constant 24 : index
    %c0_55 = arith.constant 0 : index
    %276 = vector.load %arg9[%c24, %c0_55] : memref<64x32xf32, #tpu.memory_space<vmem>>, vector<8x32xf32>
    tpu.vector_store %arg9[%c24, %c0_55], %247 {strides = array<i32>} : memref<64x32xf32, #tpu.memory_space<vmem>>, vector<8x32xf32>,
    %c32 = arith.constant 32 : index
    %c0_56 = arith.constant 0 : index
    %277 = vector.load %arg10[%c32, %c0_56] : memref<64x32xf32, #tpu.memory_space<vmem>>, vector<8x32xf32>
    tpu.vector_store %arg10[%c32, %c0_56], %275 {strides = array<i32>} : memref<64x32xf32, #tpu.memory_space<vmem>>, vector<8x32xf32>,
    %c4_57 = arith.constant 4 : index
    %c0_58 = arith.constant 0 : index
    %c0_59 = arith.constant 0 : index
    %278 = vector.load %arg2[%c4_57, %c0_58, %c0_59] : memref<8x8x128xf32, #tpu.memory_space<vmem>>, vector<1x8x128xf32>
    %279 = vector.shape_cast %278 : vector<1x8x128xf32> to vector<8x128xf32>
    %280 = arith.truncf %243 : vector<8x32xf32> to vector<8x32xbf16>
    %cst_60 = arith.constant dense<0.000000e+00> : vector<8x128xf32>
    %281 = tpu.matmul %280, %2, %cst_60 {dimension_numbers = #tpu.dot_dimension_numbers<[1], [0], [0], [1], [0, 0, 1, 1], [], []>} : vector<8x32xbf16>, vector<32x128xbf16>, vector<8x128xf32> -> vector<8x128xf32>
    %282 = arith.addf %279, %281 : vector<8x128xf32>
    %c3_61 = arith.constant 3 : index
    %c0_62 = arith.constant 0 : index
    %c0_63 = arith.constant 0 : index
    %283 = vector.load %arg3[%c3_61, %c0_62, %c0_63] : memref<8x8x128xf32, #tpu.memory_space<vmem>>, vector<1x8x128xf32>
    %284 = vector.shape_cast %283 : vector<1x8x128xf32> to vector<8x128xf32>
    %285 = arith.truncf %271 : vector<8x32xf32> to vector<8x32xbf16>
    %cst_64 = arith.constant dense<0.000000e+00> : vector<8x128xf32>
    %286 = tpu.matmul %285, %4, %cst_64 {dimension_numbers = #tpu.dot_dimension_numbers<[1], [0], [0], [1], [0, 0, 1, 1], [], []>} : vector<8x32xbf16>, vector<32x128xbf16>, vector<8x128xf32> -> vector<8x128xf32>
    %287 = arith.addf %284, %286 : vector<8x128xf32>
    %c4_i32_65 = arith.constant 4 : i32
    %288 = vector.broadcast %c4_i32_65 : i32 to vector<8x1xi32>
    %289 = arith.cmpi sgt, %0, %288 : vector<8x1xi32>
    %290 = vector.extract_strided_slice %282 {offsets = [0, 0], sizes = [8, 96], strides = [1, 1]} : vector<8x128xf32> to vector<8x96xf32>
    %291 = arith.negf %290 : vector<8x96xf32>
    %292 = math.exp %291 : vector<8x96xf32>
    %cst_66 = arith.constant 1.000000e+00 : f32
    %293 = vector.broadcast %cst_66 : f32 to vector<8x96xf32>
    %294 = arith.addf %293, %292 : vector<8x96xf32>
    %295 = arith.divf %293, %294 : vector<8x96xf32>
    %296 = vector.extract_strided_slice %282 {offsets = [0, 96], sizes = [8, 32], strides = [1, 1]} : vector<8x128xf32> to vector<8x32xf32>
    %297 = math.tanh %296 : vector<8x32xf32>
    %298 = vector.extract_strided_slice %295 {offsets = [0, 0], sizes = [8, 32], strides = [1, 1]} : vector<8x96xf32> to vector<8x32xf32>
    %299 = vector.extract_strided_slice %295 {offsets = [0, 32], sizes = [8, 32], strides = [1, 1]} : vector<8x96xf32> to vector<8x32xf32>
    %300 = vector.extract_strided_slice %295 {offsets = [0, 64], sizes = [8, 32], strides = [1, 1]} : vector<8x96xf32> to vector<8x32xf32>
    %301 = arith.mulf %299, %240 : vector<8x32xf32>
    %302 = arith.mulf %298, %297 : vector<8x32xf32>
    %303 = arith.addf %301, %302 : vector<8x32xf32>
    %304 = math.tanh %303 : vector<8x32xf32>
    %305 = arith.mulf %300, %304 : vector<8x32xf32>
    %306 = vector.shape_cast %289 : vector<8x1xi1> to vector<8x1xi1>
    %307 = vector.broadcast %306 : vector<8x1xi1> to vector<8x32xi1>
    %308 = arith.select %307, %303, %240 : vector<8x32xi1>, vector<8x32xf32>
    %309 = vector.shape_cast %289 : vector<8x1xi1> to vector<8x1xi1>
    %310 = vector.broadcast %309 : vector<8x1xi1> to vector<8x32xi1>
    %311 = arith.select %310, %305, %243 : vector<8x32xi1>, vector<8x32xf32>
    %cst_67 = arith.constant 0.000000e+00 : f32
    %312 = vector.shape_cast %289 : vector<8x1xi1> to vector<8x1xi1>
    %313 = vector.broadcast %312 : vector<8x1xi1> to vector<8x32xi1>
    %314 = vector.broadcast %cst_67 : f32 to vector<8x32xf32>
    %315 = arith.select %313, %305, %314 : vector<8x32xi1>, vector<8x32xf32>
    %c3_i32_68 = arith.constant 3 : i32
    %316 = vector.broadcast %c3_i32_68 : i32 to vector<8x1xi32>
    %317 = arith.cmpi sgt, %0, %316 : vector<8x1xi32>
    %318 = vector.extract_strided_slice %287 {offsets = [0, 0], sizes = [8, 96], strides = [1, 1]} : vector<8x128xf32> to vector<8x96xf32>
    %319 = arith.negf %318 : vector<8x96xf32>
    %320 = math.exp %319 : vector<8x96xf32>
    %cst_69 = arith.constant 1.000000e+00 : f32
    %321 = vector.broadcast %cst_69 : f32 to vector<8x96xf32>
    %322 = arith.addf %321, %320 : vector<8x96xf32>
    %323 = arith.divf %321, %322 : vector<8x96xf32>
    %324 = vector.extract_strided_slice %287 {offsets = [0, 96], sizes = [8, 32], strides = [1, 1]} : vector<8x128xf32> to vector<8x32xf32>
    %325 = math.tanh %324 : vector<8x32xf32>
    %326 = vector.extract_strided_slice %323 {offsets = [0, 0], sizes = [8, 32], strides = [1, 1]} : vector<8x96xf32> to vector<8x32xf32>
    %327 = vector.extract_strided_slice %323 {offsets = [0, 32], sizes = [8, 32], strides = [1, 1]} : vector<8x96xf32> to vector<8x32xf32>
    %328 = vector.extract_strided_slice %323 {offsets = [0, 64], sizes = [8, 32], strides = [1, 1]} : vector<8x96xf32> to vector<8x32xf32>
    %329 = arith.mulf %327, %268 : vector<8x32xf32>
    %330 = arith.mulf %326, %325 : vector<8x32xf32>
    %331 = arith.addf %329, %330 : vector<8x32xf32>
    %332 = math.tanh %331 : vector<8x32xf32>
    %333 = arith.mulf %328, %332 : vector<8x32xf32>
    %334 = vector.shape_cast %317 : vector<8x1xi1> to vector<8x1xi1>
    %335 = vector.broadcast %334 : vector<8x1xi1> to vector<8x32xi1>
    %336 = arith.select %335, %331, %268 : vector<8x32xi1>, vector<8x32xf32>
    %337 = vector.shape_cast %317 : vector<8x1xi1> to vector<8x1xi1>
    %338 = vector.broadcast %337 : vector<8x1xi1> to vector<8x32xi1>
    %339 = arith.select %338, %333, %271 : vector<8x32xi1>, vector<8x32xf32>
    %cst_70 = arith.constant 0.000000e+00 : f32
    %340 = vector.shape_cast %317 : vector<8x1xi1> to vector<8x1xi1>
    %341 = vector.broadcast %340 : vector<8x1xi1> to vector<8x32xi1>
    %342 = vector.broadcast %cst_70 : f32 to vector<8x32xf32>
    %343 = arith.select %341, %333, %342 : vector<8x32xi1>, vector<8x32xf32>
    %c32_71 = arith.constant 32 : index
    %c0_72 = arith.constant 0 : index
    %344 = vector.load %arg9[%c32_71, %c0_72] : memref<64x32xf32, #tpu.memory_space<vmem>>, vector<8x32xf32>
    tpu.vector_store %arg9[%c32_71, %c0_72], %315 {strides = array<i32>} : memref<64x32xf32, #tpu.memory_space<vmem>>, vector<8x32xf32>,
    %c24_73 = arith.constant 24 : index
    %c0_74 = arith.constant 0 : index
    %345 = vector.load %arg10[%c24_73, %c0_74] : memref<64x32xf32, #tpu.memory_space<vmem>>, vector<8x32xf32>
    tpu.vector_store %arg10[%c24_73, %c0_74], %343 {strides = array<i32>} : memref<64x32xf32, #tpu.memory_space<vmem>>, vector<8x32xf32>,
    %c5_75 = arith.constant 5 : index
    %c0_76 = arith.constant 0 : index
    %c0_77 = arith.constant 0 : index
    %346 = vector.load %arg2[%c5_75, %c0_76, %c0_77] : memref<8x8x128xf32, #tpu.memory_space<vmem>>, vector<1x8x128xf32>
    %347 = vector.shape_cast %346 : vector<1x8x128xf32> to vector<8x128xf32>
    %348 = arith.truncf %311 : vector<8x32xf32> to vector<8x32xbf16>
    %cst_78 = arith.constant dense<0.000000e+00> : vector<8x128xf32>
    %349 = tpu.matmul %348, %2, %cst_78 {dimension_numbers = #tpu.dot_dimension_numbers<[1], [0], [0], [1], [0, 0, 1, 1], [], []>} : vector<8x32xbf16>, vector<32x128xbf16>, vector<8x128xf32> -> vector<8x128xf32>
    %350 = arith.addf %347, %349 : vector<8x128xf32>
    %c2_79 = arith.constant 2 : index
    %c0_80 = arith.constant 0 : index
    %c0_81 = arith.constant 0 : index
    %351 = vector.load %arg3[%c2_79, %c0_80, %c0_81] : memref<8x8x128xf32, #tpu.memory_space<vmem>>, vector<1x8x128xf32>
    %352 = vector.shape_cast %351 : vector<1x8x128xf32> to vector<8x128xf32>
    %353 = arith.truncf %339 : vector<8x32xf32> to vector<8x32xbf16>
    %cst_82 = arith.constant dense<0.000000e+00> : vector<8x128xf32>
    %354 = tpu.matmul %353, %4, %cst_82 {dimension_numbers = #tpu.dot_dimension_numbers<[1], [0], [0], [1], [0, 0, 1, 1], [], []>} : vector<8x32xbf16>, vector<32x128xbf16>, vector<8x128xf32> -> vector<8x128xf32>
    %355 = arith.addf %352, %354 : vector<8x128xf32>
    %c5_i32_83 = arith.constant 5 : i32
    %356 = vector.broadcast %c5_i32_83 : i32 to vector<8x1xi32>
    %357 = arith.cmpi sgt, %0, %356 : vector<8x1xi32>
    %358 = vector.extract_strided_slice %350 {offsets = [0, 0], sizes = [8, 96], strides = [1, 1]} : vector<8x128xf32> to vector<8x96xf32>
    %359 = arith.negf %358 : vector<8x96xf32>
    %360 = math.exp %359 : vector<8x96xf32>
    %cst_84 = arith.constant 1.000000e+00 : f32
    %361 = vector.broadcast %cst_84 : f32 to vector<8x96xf32>
    %362 = arith.addf %361, %360 : vector<8x96xf32>
    %363 = arith.divf %361, %362 : vector<8x96xf32>
    %364 = vector.extract_strided_slice %350 {offsets = [0, 96], sizes = [8, 32], strides = [1, 1]} : vector<8x128xf32> to vector<8x32xf32>
    %365 = math.tanh %364 : vector<8x32xf32>
    %366 = vector.extract_strided_slice %363 {offsets = [0, 0], sizes = [8, 32], strides = [1, 1]} : vector<8x96xf32> to vector<8x32xf32>
    %367 = vector.extract_strided_slice %363 {offsets = [0, 32], sizes = [8, 32], strides = [1, 1]} : vector<8x96xf32> to vector<8x32xf32>
    %368 = vector.extract_strided_slice %363 {offsets = [0, 64], sizes = [8, 32], strides = [1, 1]} : vector<8x96xf32> to vector<8x32xf32>
    %369 = arith.mulf %367, %308 : vector<8x32xf32>
    %370 = arith.mulf %366, %365 : vector<8x32xf32>
    %371 = arith.addf %369, %370 : vector<8x32xf32>
    %372 = math.tanh %371 : vector<8x32xf32>
    %373 = arith.mulf %368, %372 : vector<8x32xf32>
    %374 = vector.shape_cast %357 : vector<8x1xi1> to vector<8x1xi1>
    %375 = vector.broadcast %374 : vector<8x1xi1> to vector<8x32xi1>
    %376 = arith.select %375, %371, %308 : vector<8x32xi1>, vector<8x32xf32>
    %377 = vector.shape_cast %357 : vector<8x1xi1> to vector<8x1xi1>
    %378 = vector.broadcast %377 : vector<8x1xi1> to vector<8x32xi1>
    %379 = arith.select %378, %373, %311 : vector<8x32xi1>, vector<8x32xf32>
    %cst_85 = arith.constant 0.000000e+00 : f32
    %380 = vector.shape_cast %357 : vector<8x1xi1> to vector<8x1xi1>
    %381 = vector.broadcast %380 : vector<8x1xi1> to vector<8x32xi1>
    %382 = vector.broadcast %cst_85 : f32 to vector<8x32xf32>
    %383 = arith.select %381, %373, %382 : vector<8x32xi1>, vector<8x32xf32>
    %c2_i32_86 = arith.constant 2 : i32
    %384 = vector.broadcast %c2_i32_86 : i32 to vector<8x1xi32>
    %385 = arith.cmpi sgt, %0, %384 : vector<8x1xi32>
    %386 = vector.extract_strided_slice %355 {offsets = [0, 0], sizes = [8, 96], strides = [1, 1]} : vector<8x128xf32> to vector<8x96xf32>
    %387 = arith.negf %386 : vector<8x96xf32>
    %388 = math.exp %387 : vector<8x96xf32>
    %cst_87 = arith.constant 1.000000e+00 : f32
    %389 = vector.broadcast %cst_87 : f32 to vector<8x96xf32>
    %390 = arith.addf %389, %388 : vector<8x96xf32>
    %391 = arith.divf %389, %390 : vector<8x96xf32>
    %392 = vector.extract_strided_slice %355 {offsets = [0, 96], sizes = [8, 32], strides = [1, 1]} : vector<8x128xf32> to vector<8x32xf32>
    %393 = math.tanh %392 : vector<8x32xf32>
    %394 = vector.extract_strided_slice %391 {offsets = [0, 0], sizes = [8, 32], strides = [1, 1]} : vector<8x96xf32> to vector<8x32xf32>
    %395 = vector.extract_strided_slice %391 {offsets = [0, 32], sizes = [8, 32], strides = [1, 1]} : vector<8x96xf32> to vector<8x32xf32>
    %396 = vector.extract_strided_slice %391 {offsets = [0, 64], sizes = [8, 32], strides = [1, 1]} : vector<8x96xf32> to vector<8x32xf32>
    %397 = arith.mulf %395, %336 : vector<8x32xf32>
    %398 = arith.mulf %394, %393 : vector<8x32xf32>
    %399 = arith.addf %397, %398 : vector<8x32xf32>
    %400 = math.tanh %399 : vector<8x32xf32>
    %401 = arith.mulf %396, %400 : vector<8x32xf32>
    %402 = vector.shape_cast %385 : vector<8x1xi1> to vector<8x1xi1>
    %403 = vector.broadcast %402 : vector<8x1xi1> to vector<8x32xi1>
    %404 = arith.select %403, %399, %336 : vector<8x32xi1>, vector<8x32xf32>
    %405 = vector.shape_cast %385 : vector<8x1xi1> to vector<8x1xi1>
    %406 = vector.broadcast %405 : vector<8x1xi1> to vector<8x32xi1>
    %407 = arith.select %406, %401, %339 : vector<8x32xi1>, vector<8x32xf32>
    %cst_88 = arith.constant 0.000000e+00 : f32
    %408 = vector.shape_cast %385 : vector<8x1xi1> to vector<8x1xi1>
    %409 = vector.broadcast %408 : vector<8x1xi1> to vector<8x32xi1>
    %410 = vector.broadcast %cst_88 : f32 to vector<8x32xf32>
    %411 = arith.select %409, %401, %410 : vector<8x32xi1>, vector<8x32xf32>
    %c40_89 = arith.constant 40 : index
    %c0_90 = arith.constant 0 : index
    %412 = vector.load %arg9[%c40_89, %c0_90] : memref<64x32xf32, #tpu.memory_space<vmem>>, vector<8x32xf32>
    tpu.vector_store %arg9[%c40_89, %c0_90], %383 {strides = array<i32>} : memref<64x32xf32, #tpu.memory_space<vmem>>, vector<8x32xf32>,
    %c16_91 = arith.constant 16 : index
    %c0_92 = arith.constant 0 : index
    %413 = vector.load %arg10[%c16_91, %c0_92] : memref<64x32xf32, #tpu.memory_space<vmem>>, vector<8x32xf32>
    tpu.vector_store %arg10[%c16_91, %c0_92], %411 {strides = array<i32>} : memref<64x32xf32, #tpu.memory_space<vmem>>, vector<8x32xf32>,
    %c6_93 = arith.constant 6 : index
    %c0_94 = arith.constant 0 : index
    %c0_95 = arith.constant 0 : index
    %414 = vector.load %arg2[%c6_93, %c0_94, %c0_95] : memref<8x8x128xf32, #tpu.memory_space<vmem>>, vector<1x8x128xf32>
    %415 = vector.shape_cast %414 : vector<1x8x128xf32> to vector<8x128xf32>
    %416 = arith.truncf %379 : vector<8x32xf32> to vector<8x32xbf16>
    %cst_96 = arith.constant dense<0.000000e+00> : vector<8x128xf32>
    %417 = tpu.matmul %416, %2, %cst_96 {dimension_numbers = #tpu.dot_dimension_numbers<[1], [0], [0], [1], [0, 0, 1, 1], [], []>} : vector<8x32xbf16>, vector<32x128xbf16>, vector<8x128xf32> -> vector<8x128xf32>
    %418 = arith.addf %415, %417 : vector<8x128xf32>
    %c1_97 = arith.constant 1 : index
    %c0_98 = arith.constant 0 : index
    %c0_99 = arith.constant 0 : index
    %419 = vector.load %arg3[%c1_97, %c0_98, %c0_99] : memref<8x8x128xf32, #tpu.memory_space<vmem>>, vector<1x8x128xf32>
    %420 = vector.shape_cast %419 : vector<1x8x128xf32> to vector<8x128xf32>
    %421 = arith.truncf %407 : vector<8x32xf32> to vector<8x32xbf16>
    %cst_100 = arith.constant dense<0.000000e+00> : vector<8x128xf32>
    %422 = tpu.matmul %421, %4, %cst_100 {dimension_numbers = #tpu.dot_dimension_numbers<[1], [0], [0], [1], [0, 0, 1, 1], [], []>} : vector<8x32xbf16>, vector<32x128xbf16>, vector<8x128xf32> -> vector<8x128xf32>
    %423 = arith.addf %420, %422 : vector<8x128xf32>
    %c6_i32_101 = arith.constant 6 : i32
    %424 = vector.broadcast %c6_i32_101 : i32 to vector<8x1xi32>
    %425 = arith.cmpi sgt, %0, %424 : vector<8x1xi32>
    %426 = vector.extract_strided_slice %418 {offsets = [0, 0], sizes = [8, 96], strides = [1, 1]} : vector<8x128xf32> to vector<8x96xf32>
    %427 = arith.negf %426 : vector<8x96xf32>
    %428 = math.exp %427 : vector<8x96xf32>
    %cst_102 = arith.constant 1.000000e+00 : f32
    %429 = vector.broadcast %cst_102 : f32 to vector<8x96xf32>
    %430 = arith.addf %429, %428 : vector<8x96xf32>
    %431 = arith.divf %429, %430 : vector<8x96xf32>
    %432 = vector.extract_strided_slice %418 {offsets = [0, 96], sizes = [8, 32], strides = [1, 1]} : vector<8x128xf32> to vector<8x32xf32>
    %433 = math.tanh %432 : vector<8x32xf32>
    %434 = vector.extract_strided_slice %431 {offsets = [0, 0], sizes = [8, 32], strides = [1, 1]} : vector<8x96xf32> to vector<8x32xf32>
    %435 = vector.extract_strided_slice %431 {offsets = [0, 32], sizes = [8, 32], strides = [1, 1]} : vector<8x96xf32> to vector<8x32xf32>
    %436 = vector.extract_strided_slice %431 {offsets = [0, 64], sizes = [8, 32], strides = [1, 1]} : vector<8x96xf32> to vector<8x32xf32>
    %437 = arith.mulf %435, %376 : vector<8x32xf32>
    %438 = arith.mulf %434, %433 : vector<8x32xf32>
    %439 = arith.addf %437, %438 : vector<8x32xf32>
    %440 = math.tanh %439 : vector<8x32xf32>
    %441 = arith.mulf %436, %440 : vector<8x32xf32>
    %442 = vector.shape_cast %425 : vector<8x1xi1> to vector<8x1xi1>
    %443 = vector.broadcast %442 : vector<8x1xi1> to vector<8x32xi1>
    %444 = arith.select %443, %439, %376 : vector<8x32xi1>, vector<8x32xf32>
    %445 = vector.shape_cast %425 : vector<8x1xi1> to vector<8x1xi1>
    %446 = vector.broadcast %445 : vector<8x1xi1> to vector<8x32xi1>
    %447 = arith.select %446, %441, %379 : vector<8x32xi1>, vector<8x32xf32>
    %cst_103 = arith.constant 0.000000e+00 : f32
    %448 = vector.shape_cast %425 : vector<8x1xi1> to vector<8x1xi1>
    %449 = vector.broadcast %448 : vector<8x1xi1> to vector<8x32xi1>
    %450 = vector.broadcast %cst_103 : f32 to vector<8x32xf32>
    %451 = arith.select %449, %441, %450 : vector<8x32xi1>, vector<8x32xf32>
    %c1_i32_104 = arith.constant 1 : i32
    %452 = vector.broadcast %c1_i32_104 : i32 to vector<8x1xi32>
    %453 = arith.cmpi sgt, %0, %452 : vector<8x1xi32>
    %454 = vector.extract_strided_slice %423 {offsets = [0, 0], sizes = [8, 96], strides = [1, 1]} : vector<8x128xf32> to vector<8x96xf32>
    %455 = arith.negf %454 : vector<8x96xf32>
    %456 = math.exp %455 : vector<8x96xf32>
    %cst_105 = arith.constant 1.000000e+00 : f32
    %457 = vector.broadcast %cst_105 : f32 to vector<8x96xf32>
    %458 = arith.addf %457, %456 : vector<8x96xf32>
    %459 = arith.divf %457, %458 : vector<8x96xf32>
    %460 = vector.extract_strided_slice %423 {offsets = [0, 96], sizes = [8, 32], strides = [1, 1]} : vector<8x128xf32> to vector<8x32xf32>
    %461 = math.tanh %460 : vector<8x32xf32>
    %462 = vector.extract_strided_slice %459 {offsets = [0, 0], sizes = [8, 32], strides = [1, 1]} : vector<8x96xf32> to vector<8x32xf32>
    %463 = vector.extract_strided_slice %459 {offsets = [0, 32], sizes = [8, 32], strides = [1, 1]} : vector<8x96xf32> to vector<8x32xf32>
    %464 = vector.extract_strided_slice %459 {offsets = [0, 64], sizes = [8, 32], strides = [1, 1]} : vector<8x96xf32> to vector<8x32xf32>
    %465 = arith.mulf %463, %404 : vector<8x32xf32>
    %466 = arith.mulf %462, %461 : vector<8x32xf32>
    %467 = arith.addf %465, %466 : vector<8x32xf32>
    %468 = math.tanh %467 : vector<8x32xf32>
    %469 = arith.mulf %464, %468 : vector<8x32xf32>
    %470 = vector.shape_cast %453 : vector<8x1xi1> to vector<8x1xi1>
    %471 = vector.broadcast %470 : vector<8x1xi1> to vector<8x32xi1>
    %472 = arith.select %471, %467, %404 : vector<8x32xi1>, vector<8x32xf32>
    %473 = vector.shape_cast %453 : vector<8x1xi1> to vector<8x1xi1>
    %474 = vector.broadcast %473 : vector<8x1xi1> to vector<8x32xi1>
    %475 = arith.select %474, %469, %407 : vector<8x32xi1>, vector<8x32xf32>
    %cst_106 = arith.constant 0.000000e+00 : f32
    %476 = vector.shape_cast %453 : vector<8x1xi1> to vector<8x1xi1>
    %477 = vector.broadcast %476 : vector<8x1xi1> to vector<8x32xi1>
    %478 = vector.broadcast %cst_106 : f32 to vector<8x32xf32>
    %479 = arith.select %477, %469, %478 : vector<8x32xi1>, vector<8x32xf32>
    %c48_107 = arith.constant 48 : index
    %c0_108 = arith.constant 0 : index
    %480 = vector.load %arg9[%c48_107, %c0_108] : memref<64x32xf32, #tpu.memory_space<vmem>>, vector<8x32xf32>
    tpu.vector_store %arg9[%c48_107, %c0_108], %451 {strides = array<i32>} : memref<64x32xf32, #tpu.memory_space<vmem>>, vector<8x32xf32>,
    %c8_109 = arith.constant 8 : index
    %c0_110 = arith.constant 0 : index
    %481 = vector.load %arg10[%c8_109, %c0_110] : memref<64x32xf32, #tpu.memory_space<vmem>>, vector<8x32xf32>
    tpu.vector_store %arg10[%c8_109, %c0_110], %479 {strides = array<i32>} : memref<64x32xf32, #tpu.memory_space<vmem>>, vector<8x32xf32>,
    %c7_111 = arith.constant 7 : index
    %c0_112 = arith.constant 0 : index
    %c0_113 = arith.constant 0 : index
    %482 = vector.load %arg2[%c7_111, %c0_112, %c0_113] : memref<8x8x128xf32, #tpu.memory_space<vmem>>, vector<1x8x128xf32>
    %483 = vector.shape_cast %482 : vector<1x8x128xf32> to vector<8x128xf32>
    %484 = arith.truncf %447 : vector<8x32xf32> to vector<8x32xbf16>
    %cst_114 = arith.constant dense<0.000000e+00> : vector<8x128xf32>
    %485 = tpu.matmul %484, %2, %cst_114 {dimension_numbers = #tpu.dot_dimension_numbers<[1], [0], [0], [1], [0, 0, 1, 1], [], []>} : vector<8x32xbf16>, vector<32x128xbf16>, vector<8x128xf32> -> vector<8x128xf32>
    %486 = arith.addf %483, %485 : vector<8x128xf32>
    %c0_115 = arith.constant 0 : index
    %c0_116 = arith.constant 0 : index
    %c0_117 = arith.constant 0 : index
    %487 = vector.load %arg3[%c0_115, %c0_116, %c0_117] : memref<8x8x128xf32, #tpu.memory_space<vmem>>, vector<1x8x128xf32>
    %488 = vector.shape_cast %487 : vector<1x8x128xf32> to vector<8x128xf32>
    %489 = arith.truncf %475 : vector<8x32xf32> to vector<8x32xbf16>
    %cst_118 = arith.constant dense<0.000000e+00> : vector<8x128xf32>
    %490 = tpu.matmul %489, %4, %cst_118 {dimension_numbers = #tpu.dot_dimension_numbers<[1], [0], [0], [1], [0, 0, 1, 1], [], []>} : vector<8x32xbf16>, vector<32x128xbf16>, vector<8x128xf32> -> vector<8x128xf32>
    %491 = arith.addf %488, %490 : vector<8x128xf32>
    %c7_i32_119 = arith.constant 7 : i32
    %492 = vector.broadcast %c7_i32_119 : i32 to vector<8x1xi32>
    %493 = arith.cmpi sgt, %0, %492 : vector<8x1xi32>
    %494 = vector.extract_strided_slice %486 {offsets = [0, 0], sizes = [8, 96], strides = [1, 1]} : vector<8x128xf32> to vector<8x96xf32>
    %495 = arith.negf %494 : vector<8x96xf32>
    %496 = math.exp %495 : vector<8x96xf32>
    %cst_120 = arith.constant 1.000000e+00 : f32
    %497 = vector.broadcast %cst_120 : f32 to vector<8x96xf32>
    %498 = arith.addf %497, %496 : vector<8x96xf32>
    %499 = arith.divf %497, %498 : vector<8x96xf32>
    %500 = vector.extract_strided_slice %486 {offsets = [0, 96], sizes = [8, 32], strides = [1, 1]} : vector<8x128xf32> to vector<8x32xf32>
    %501 = math.tanh %500 : vector<8x32xf32>
    %502 = vector.extract_strided_slice %499 {offsets = [0, 0], sizes = [8, 32], strides = [1, 1]} : vector<8x96xf32> to vector<8x32xf32>
    %503 = vector.extract_strided_slice %499 {offsets = [0, 32], sizes = [8, 32], strides = [1, 1]} : vector<8x96xf32> to vector<8x32xf32>
    %504 = vector.extract_strided_slice %499 {offsets = [0, 64], sizes = [8, 32], strides = [1, 1]} : vector<8x96xf32> to vector<8x32xf32>
    %505 = arith.mulf %503, %444 : vector<8x32xf32>
    %506 = arith.mulf %502, %501 : vector<8x32xf32>
    %507 = arith.addf %505, %506 : vector<8x32xf32>
    %508 = math.tanh %507 : vector<8x32xf32>
    %509 = arith.mulf %504, %508 : vector<8x32xf32>
    %cst_121 = arith.constant 0.000000e+00 : f32
    %510 = vector.shape_cast %493 : vector<8x1xi1> to vector<8x1xi1>
    %511 = vector.broadcast %510 : vector<8x1xi1> to vector<8x32xi1>
    %512 = vector.broadcast %cst_121 : f32 to vector<8x32xf32>
    %513 = arith.select %511, %509, %512 : vector<8x32xi1>, vector<8x32xf32>
    %c0_i32_122 = arith.constant 0 : i32
    %514 = vector.broadcast %c0_i32_122 : i32 to vector<8x1xi32>
    %515 = arith.cmpi sgt, %0, %514 : vector<8x1xi32>
    %516 = vector.extract_strided_slice %491 {offsets = [0, 0], sizes = [8, 96], strides = [1, 1]} : vector<8x128xf32> to vector<8x96xf32>
    %517 = arith.negf %516 : vector<8x96xf32>
    %518 = math.exp %517 : vector<8x96xf32>
    %cst_123 = arith.constant 1.000000e+00 : f32
    %519 = vector.broadcast %cst_123 : f32 to vector<8x96xf32>
    %520 = arith.addf %519, %518 : vector<8x96xf32>
    %521 = arith.divf %519, %520 : vector<8x96xf32>
    %522 = vector.extract_strided_slice %491 {offsets = [0, 96], sizes = [8, 32], strides = [1, 1]} : vector<8x128xf32> to vector<8x32xf32>
    %523 = math.tanh %522 : vector<8x32xf32>
    %524 = vector.extract_strided_slice %521 {offsets = [0, 0], sizes = [8, 32], strides = [1, 1]} : vector<8x96xf32> to vector<8x32xf32>
    %525 = vector.extract_strided_slice %521 {offsets = [0, 32], sizes = [8, 32], strides = [1, 1]} : vector<8x96xf32> to vector<8x32xf32>
    %526 = vector.extract_strided_slice %521 {offsets = [0, 64], sizes = [8, 32], strides = [1, 1]} : vector<8x96xf32> to vector<8x32xf32>
    %527 = arith.mulf %525, %472 : vector<8x32xf32>
    %528 = arith.mulf %524, %523 : vector<8x32xf32>
    %529 = arith.addf %527, %528 : vector<8x32xf32>
    %530 = math.tanh %529 : vector<8x32xf32>
    %531 = arith.mulf %526, %530 : vector<8x32xf32>
    %cst_124 = arith.constant 0.000000e+00 : f32
    %532 = vector.shape_cast %515 : vector<8x1xi1> to vector<8x1xi1>
    %533 = vector.broadcast %532 : vector<8x1xi1> to vector<8x32xi1>
    %534 = vector.broadcast %cst_124 : f32 to vector<8x32xf32>
    %535 = arith.select %533, %531, %534 : vector<8x32xi1>, vector<8x32xf32>
    %c56_125 = arith.constant 56 : index
    %c0_126 = arith.constant 0 : index
    %536 = vector.load %arg9[%c56_125, %c0_126] : memref<64x32xf32, #tpu.memory_space<vmem>>, vector<8x32xf32>
    tpu.vector_store %arg9[%c56_125, %c0_126], %513 {strides = array<i32>} : memref<64x32xf32, #tpu.memory_space<vmem>>, vector<8x32xf32>,
    %c0_127 = arith.constant 0 : index
    %c0_128 = arith.constant 0 : index
    %537 = vector.load %arg10[%c0_127, %c0_128] : memref<64x32xf32, #tpu.memory_space<vmem>>, vector<8x32xf32>
    tpu.vector_store %arg10[%c0_127, %c0_128], %535 {strides = array<i32>} : memref<64x32xf32, #tpu.memory_space<vmem>>, vector<8x32xf32>,
    %c0_129 = arith.constant 0 : index
    %c0_130 = arith.constant 0 : index
    %538 = vector.load %arg9[%c0_129, %c0_130] : memref<64x32xf32, #tpu.memory_space<vmem>>, vector<64x32xf32>
    %c0_131 = arith.constant 0 : index
    %c0_132 = arith.constant 0 : index
    %539 = vector.load %arg10[%c0_131, %c0_132] : memref<64x32xf32, #tpu.memory_space<vmem>>, vector<64x32xf32>
    %c0_133 = arith.constant 0 : index
    %c0_134 = arith.constant 0 : index
    %c0_135 = arith.constant 0 : index
    %540 = vector.load %arg5[%c0_133, %c0_134, %c0_135] : memref<2x64x128xf32, #tpu.memory_space<vmem>>, vector<1x64x128xf32>
    %541 = vector.shape_cast %540 : vector<1x64x128xf32> to vector<64x128xf32>
    %c1_136 = arith.constant 1 : index
    %c0_137 = arith.constant 0 : index
    %c0_138 = arith.constant 0 : index
    %542 = vector.load %arg5[%c1_136, %c0_137, %c0_138] : memref<2x64x128xf32, #tpu.memory_space<vmem>>, vector<1x64x128xf32>
    %543 = vector.shape_cast %542 : vector<1x64x128xf32> to vector<64x128xf32>
    %544 = vector.extract_strided_slice %541 {offsets = [0, 0], sizes = [32, 128], strides = [1, 1]} : vector<64x128xf32> to vector<32x128xf32>
    %cst_139 = arith.constant dense<0.000000e+00> : vector<64x128xf32>
    %545 = tpu.matmul %538, %544, %cst_139 {dimension_numbers = #tpu.dot_dimension_numbers<[1], [0], [0], [1], [0, 0, 1, 1], [], []>} : vector<64x32xf32>, vector<32x128xf32>, vector<64x128xf32> -> vector<64x128xf32>
    %546 = vector.extract_strided_slice %541 {offsets = [32, 0], sizes = [32, 128], strides = [1, 1]} : vector<64x128xf32> to vector<32x128xf32>
    %cst_140 = arith.constant dense<0.000000e+00> : vector<64x128xf32>
    %547 = tpu.matmul %539, %546, %cst_140 {dimension_numbers = #tpu.dot_dimension_numbers<[1], [0], [0], [1], [0, 0, 1, 1], [], []>} : vector<64x32xf32>, vector<32x128xf32>, vector<64x128xf32> -> vector<64x128xf32>
    %548 = arith.addf %545, %547 : vector<64x128xf32>
    %c0_141 = arith.constant 0 : index
    %c0_142 = arith.constant 0 : index
    %c0_143 = arith.constant 0 : index
    %549 = vector.load %arg6[%c0_141, %c0_142, %c0_143] : memref<2x1x128xf32, #tpu.memory_space<vmem>>, vector<1x1x128xf32>
    %550 = vector.shape_cast %549 : vector<1x1x128xf32> to vector<1x128xf32>
    %551 = vector.broadcast %550 : vector<1x128xf32> to vector<64x128xf32>
    %552 = arith.addf %548, %551 : vector<64x128xf32>
    %553 = vector.extract_strided_slice %543 {offsets = [0, 0], sizes = [32, 128], strides = [1, 1]} : vector<64x128xf32> to vector<32x128xf32>
    %cst_144 = arith.constant dense<0.000000e+00> : vector<64x128xf32>
    %554 = tpu.matmul %538, %553, %cst_144 {dimension_numbers = #tpu.dot_dimension_numbers<[1], [0], [0], [1], [0, 0, 1, 1], [], []>} : vector<64x32xf32>, vector<32x128xf32>, vector<64x128xf32> -> vector<64x128xf32>
    %555 = vector.extract_strided_slice %543 {offsets = [32, 0], sizes = [32, 128], strides = [1, 1]} : vector<64x128xf32> to vector<32x128xf32>
    %cst_145 = arith.constant dense<0.000000e+00> : vector<64x128xf32>
    %556 = tpu.matmul %539, %555, %cst_145 {dimension_numbers = #tpu.dot_dimension_numbers<[1], [0], [0], [1], [0, 0, 1, 1], [], []>} : vector<64x32xf32>, vector<32x128xf32>, vector<64x128xf32> -> vector<64x128xf32>
    %557 = arith.addf %554, %556 : vector<64x128xf32>
    %c1_146 = arith.constant 1 : index
    %c0_147 = arith.constant 0 : index
    %c0_148 = arith.constant 0 : index
    %558 = vector.load %arg6[%c1_146, %c0_147, %c0_148] : memref<2x1x128xf32, #tpu.memory_space<vmem>>, vector<1x1x128xf32>
    %559 = vector.shape_cast %558 : vector<1x1x128xf32> to vector<1x128xf32>
    %560 = vector.broadcast %559 : vector<1x128xf32> to vector<64x128xf32>
    %561 = arith.addf %557, %560 : vector<64x128xf32>
    %c0_149 = arith.constant 0 : index
    %c0_150 = arith.constant 0 : index
    %c0_151 = arith.constant 0 : index
    %562 = vector.load %arg7[%c0_149, %c0_150, %c0_151] : memref<2x32x128xbf16, #tpu.memory_space<vmem>>, vector<1x32x128xbf16>
    %563 = vector.shape_cast %562 : vector<1x32x128xbf16> to vector<32x128xbf16>
    %c1_152 = arith.constant 1 : index
    %c0_153 = arith.constant 0 : index
    %c0_154 = arith.constant 0 : index
    %564 = vector.load %arg7[%c1_152, %c0_153, %c0_154] : memref<2x32x128xbf16, #tpu.memory_space<vmem>>, vector<1x32x128xbf16>
    %565 = vector.shape_cast %564 : vector<1x32x128xbf16> to vector<32x128xbf16>
    %566 = vector.extract_strided_slice %552 {offsets = [0, 0], sizes = [8, 128], strides = [1, 1]} : vector<64x128xf32> to vector<8x128xf32>
    %567 = arith.truncf %5 : vector<8x32xf32> to vector<8x32xbf16>
    %cst_155 = arith.constant dense<0.000000e+00> : vector<8x128xf32>
    %568 = tpu.matmul %567, %563, %cst_155 {dimension_numbers = #tpu.dot_dimension_numbers<[1], [0], [0], [1], [0, 0, 1, 1], [], []>} : vector<8x32xbf16>, vector<32x128xbf16>, vector<8x128xf32> -> vector<8x128xf32>
    %569 = arith.addf %566, %568 : vector<8x128xf32>
    %570 = vector.extract_strided_slice %561 {offsets = [56, 0], sizes = [8, 128], strides = [1, 1]} : vector<64x128xf32> to vector<8x128xf32>
    %571 = arith.truncf %5 : vector<8x32xf32> to vector<8x32xbf16>
    %cst_156 = arith.constant dense<0.000000e+00> : vector<8x128xf32>
    %572 = tpu.matmul %571, %565, %cst_156 {dimension_numbers = #tpu.dot_dimension_numbers<[1], [0], [0], [1], [0, 0, 1, 1], [], []>} : vector<8x32xbf16>, vector<32x128xbf16>, vector<8x128xf32> -> vector<8x128xf32>
    %573 = arith.addf %570, %572 : vector<8x128xf32>
    %c0_i32_157 = arith.constant 0 : i32
    %574 = vector.broadcast %c0_i32_157 : i32 to vector<8x1xi32>
    %575 = arith.cmpi sgt, %0, %574 : vector<8x1xi32>
    %576 = vector.extract_strided_slice %569 {offsets = [0, 0], sizes = [8, 96], strides = [1, 1]} : vector<8x128xf32> to vector<8x96xf32>
    %577 = arith.negf %576 : vector<8x96xf32>
    %578 = math.exp %577 : vector<8x96xf32>
    %cst_158 = arith.constant 1.000000e+00 : f32
    %579 = vector.broadcast %cst_158 : f32 to vector<8x96xf32>
    %580 = arith.addf %579, %578 : vector<8x96xf32>
    %581 = arith.divf %579, %580 : vector<8x96xf32>
    %582 = vector.extract_strided_slice %569 {offsets = [0, 96], sizes = [8, 32], strides = [1, 1]} : vector<8x128xf32> to vector<8x32xf32>
    %583 = math.tanh %582 : vector<8x32xf32>
    %584 = vector.extract_strided_slice %581 {offsets = [0, 0], sizes = [8, 32], strides = [1, 1]} : vector<8x96xf32> to vector<8x32xf32>
    %585 = vector.extract_strided_slice %581 {offsets = [0, 32], sizes = [8, 32], strides = [1, 1]} : vector<8x96xf32> to vector<8x32xf32>
    %586 = vector.extract_strided_slice %581 {offsets = [0, 64], sizes = [8, 32], strides = [1, 1]} : vector<8x96xf32> to vector<8x32xf32>
    %587 = arith.mulf %585, %5 : vector<8x32xf32>
    %588 = arith.mulf %584, %583 : vector<8x32xf32>
    %589 = arith.addf %587, %588 : vector<8x32xf32>
    %590 = math.tanh %589 : vector<8x32xf32>
    %591 = arith.mulf %586, %590 : vector<8x32xf32>
    %592 = vector.shape_cast %575 : vector<8x1xi1> to vector<8x1xi1>
    %593 = vector.broadcast %592 : vector<8x1xi1> to vector<8x32xi1>
    %594 = arith.select %593, %589, %5 : vector<8x32xi1>, vector<8x32xf32>
    %595 = vector.shape_cast %575 : vector<8x1xi1> to vector<8x1xi1>
    %596 = vector.broadcast %595 : vector<8x1xi1> to vector<8x32xi1>
    %597 = arith.select %596, %591, %5 : vector<8x32xi1>, vector<8x32xf32>
    %c7_i32_159 = arith.constant 7 : i32
    %598 = vector.broadcast %c7_i32_159 : i32 to vector<8x1xi32>
    %599 = arith.cmpi sgt, %0, %598 : vector<8x1xi32>
    %600 = vector.extract_strided_slice %573 {offsets = [0, 0], sizes = [8, 96], strides = [1, 1]} : vector<8x128xf32> to vector<8x96xf32>
    %601 = arith.negf %600 : vector<8x96xf32>
    %602 = math.exp %601 : vector<8x96xf32>
    %cst_160 = arith.constant 1.000000e+00 : f32
    %603 = vector.broadcast %cst_160 : f32 to vector<8x96xf32>
    %604 = arith.addf %603, %602 : vector<8x96xf32>
    %605 = arith.divf %603, %604 : vector<8x96xf32>
    %606 = vector.extract_strided_slice %573 {offsets = [0, 96], sizes = [8, 32], strides = [1, 1]} : vector<8x128xf32> to vector<8x32xf32>
    %607 = math.tanh %606 : vector<8x32xf32>
    %608 = vector.extract_strided_slice %605 {offsets = [0, 0], sizes = [8, 32], strides = [1, 1]} : vector<8x96xf32> to vector<8x32xf32>
    %609 = vector.extract_strided_slice %605 {offsets = [0, 32], sizes = [8, 32], strides = [1, 1]} : vector<8x96xf32> to vector<8x32xf32>
    %610 = vector.extract_strided_slice %605 {offsets = [0, 64], sizes = [8, 32], strides = [1, 1]} : vector<8x96xf32> to vector<8x32xf32>
    %611 = arith.mulf %609, %5 : vector<8x32xf32>
    %612 = arith.mulf %608, %607 : vector<8x32xf32>
    %613 = arith.addf %611, %612 : vector<8x32xf32>
    %614 = math.tanh %613 : vector<8x32xf32>
    %615 = arith.mulf %610, %614 : vector<8x32xf32>
    %616 = vector.shape_cast %599 : vector<8x1xi1> to vector<8x1xi1>
    %617 = vector.broadcast %616 : vector<8x1xi1> to vector<8x32xi1>
    %618 = arith.select %617, %613, %5 : vector<8x32xi1>, vector<8x32xf32>
    %619 = vector.shape_cast %599 : vector<8x1xi1> to vector<8x1xi1>
    %620 = vector.broadcast %619 : vector<8x1xi1> to vector<8x32xi1>
    %621 = arith.select %620, %615, %5 : vector<8x32xi1>, vector<8x32xf32>
    %622 = vector.extract_strided_slice %552 {offsets = [8, 0], sizes = [8, 128], strides = [1, 1]} : vector<64x128xf32> to vector<8x128xf32>
    %623 = arith.truncf %597 : vector<8x32xf32> to vector<8x32xbf16>
    %cst_161 = arith.constant dense<0.000000e+00> : vector<8x128xf32>
    %624 = tpu.matmul %623, %563, %cst_161 {dimension_numbers = #tpu.dot_dimension_numbers<[1], [0], [0], [1], [0, 0, 1, 1], [], []>} : vector<8x32xbf16>, vector<32x128xbf16>, vector<8x128xf32> -> vector<8x128xf32>
    %625 = arith.addf %622, %624 : vector<8x128xf32>
    %626 = vector.extract_strided_slice %561 {offsets = [48, 0], sizes = [8, 128], strides = [1, 1]} : vector<64x128xf32> to vector<8x128xf32>
    %627 = arith.truncf %621 : vector<8x32xf32> to vector<8x32xbf16>
    %cst_162 = arith.constant dense<0.000000e+00> : vector<8x128xf32>
    %628 = tpu.matmul %627, %565, %cst_162 {dimension_numbers = #tpu.dot_dimension_numbers<[1], [0], [0], [1], [0, 0, 1, 1], [], []>} : vector<8x32xbf16>, vector<32x128xbf16>, vector<8x128xf32> -> vector<8x128xf32>
    %629 = arith.addf %626, %628 : vector<8x128xf32>
    %c1_i32_163 = arith.constant 1 : i32
    %630 = vector.broadcast %c1_i32_163 : i32 to vector<8x1xi32>
    %631 = arith.cmpi sgt, %0, %630 : vector<8x1xi32>
    %632 = vector.extract_strided_slice %625 {offsets = [0, 0], sizes = [8, 96], strides = [1, 1]} : vector<8x128xf32> to vector<8x96xf32>
    %633 = arith.negf %632 : vector<8x96xf32>
    %634 = math.exp %633 : vector<8x96xf32>
    %cst_164 = arith.constant 1.000000e+00 : f32
    %635 = vector.broadcast %cst_164 : f32 to vector<8x96xf32>
    %636 = arith.addf %635, %634 : vector<8x96xf32>
    %637 = arith.divf %635, %636 : vector<8x96xf32>
    %638 = vector.extract_strided_slice %625 {offsets = [0, 96], sizes = [8, 32], strides = [1, 1]} : vector<8x128xf32> to vector<8x32xf32>
    %639 = math.tanh %638 : vector<8x32xf32>
    %640 = vector.extract_strided_slice %637 {offsets = [0, 0], sizes = [8, 32], strides = [1, 1]} : vector<8x96xf32> to vector<8x32xf32>
    %641 = vector.extract_strided_slice %637 {offsets = [0, 32], sizes = [8, 32], strides = [1, 1]} : vector<8x96xf32> to vector<8x32xf32>
    %642 = vector.extract_strided_slice %637 {offsets = [0, 64], sizes = [8, 32], strides = [1, 1]} : vector<8x96xf32> to vector<8x32xf32>
    %643 = arith.mulf %641, %594 : vector<8x32xf32>
    %644 = arith.mulf %640, %639 : vector<8x32xf32>
    %645 = arith.addf %643, %644 : vector<8x32xf32>
    %646 = math.tanh %645 : vector<8x32xf32>
    %647 = arith.mulf %642, %646 : vector<8x32xf32>
    %648 = vector.shape_cast %631 : vector<8x1xi1> to vector<8x1xi1>
    %649 = vector.broadcast %648 : vector<8x1xi1> to vector<8x32xi1>
    %650 = arith.select %649, %645, %594 : vector<8x32xi1>, vector<8x32xf32>
    %651 = vector.shape_cast %631 : vector<8x1xi1> to vector<8x1xi1>
    %652 = vector.broadcast %651 : vector<8x1xi1> to vector<8x32xi1>
    %653 = arith.select %652, %647, %597 : vector<8x32xi1>, vector<8x32xf32>
    %c6_i32_165 = arith.constant 6 : i32
    %654 = vector.broadcast %c6_i32_165 : i32 to vector<8x1xi32>
    %655 = arith.cmpi sgt, %0, %654 : vector<8x1xi32>
    %656 = vector.extract_strided_slice %629 {offsets = [0, 0], sizes = [8, 96], strides = [1, 1]} : vector<8x128xf32> to vector<8x96xf32>
    %657 = arith.negf %656 : vector<8x96xf32>
    %658 = math.exp %657 : vector<8x96xf32>
    %cst_166 = arith.constant 1.000000e+00 : f32
    %659 = vector.broadcast %cst_166 : f32 to vector<8x96xf32>
    %660 = arith.addf %659, %658 : vector<8x96xf32>
    %661 = arith.divf %659, %660 : vector<8x96xf32>
    %662 = vector.extract_strided_slice %629 {offsets = [0, 96], sizes = [8, 32], strides = [1, 1]} : vector<8x128xf32> to vector<8x32xf32>
    %663 = math.tanh %662 : vector<8x32xf32>
    %664 = vector.extract_strided_slice %661 {offsets = [0, 0], sizes = [8, 32], strides = [1, 1]} : vector<8x96xf32> to vector<8x32xf32>
    %665 = vector.extract_strided_slice %661 {offsets = [0, 32], sizes = [8, 32], strides = [1, 1]} : vector<8x96xf32> to vector<8x32xf32>
    %666 = vector.extract_strided_slice %661 {offsets = [0, 64], sizes = [8, 32], strides = [1, 1]} : vector<8x96xf32> to vector<8x32xf32>
    %667 = arith.mulf %665, %618 : vector<8x32xf32>
    %668 = arith.mulf %664, %663 : vector<8x32xf32>
    %669 = arith.addf %667, %668 : vector<8x32xf32>
    %670 = math.tanh %669 : vector<8x32xf32>
    %671 = arith.mulf %666, %670 : vector<8x32xf32>
    %672 = vector.shape_cast %655 : vector<8x1xi1> to vector<8x1xi1>
    %673 = vector.broadcast %672 : vector<8x1xi1> to vector<8x32xi1>
    %674 = arith.select %673, %669, %618 : vector<8x32xi1>, vector<8x32xf32>
    %675 = vector.shape_cast %655 : vector<8x1xi1> to vector<8x1xi1>
    %676 = vector.broadcast %675 : vector<8x1xi1> to vector<8x32xi1>
    %677 = arith.select %676, %671, %621 : vector<8x32xi1>, vector<8x32xf32>
    %678 = vector.extract_strided_slice %552 {offsets = [16, 0], sizes = [8, 128], strides = [1, 1]} : vector<64x128xf32> to vector<8x128xf32>
    %679 = arith.truncf %653 : vector<8x32xf32> to vector<8x32xbf16>
    %cst_167 = arith.constant dense<0.000000e+00> : vector<8x128xf32>
    %680 = tpu.matmul %679, %563, %cst_167 {dimension_numbers = #tpu.dot_dimension_numbers<[1], [0], [0], [1], [0, 0, 1, 1], [], []>} : vector<8x32xbf16>, vector<32x128xbf16>, vector<8x128xf32> -> vector<8x128xf32>
    %681 = arith.addf %678, %680 : vector<8x128xf32>
    %682 = vector.extract_strided_slice %561 {offsets = [40, 0], sizes = [8, 128], strides = [1, 1]} : vector<64x128xf32> to vector<8x128xf32>
    %683 = arith.truncf %677 : vector<8x32xf32> to vector<8x32xbf16>
    %cst_168 = arith.constant dense<0.000000e+00> : vector<8x128xf32>
    %684 = tpu.matmul %683, %565, %cst_168 {dimension_numbers = #tpu.dot_dimension_numbers<[1], [0], [0], [1], [0, 0, 1, 1], [], []>} : vector<8x32xbf16>, vector<32x128xbf16>, vector<8x128xf32> -> vector<8x128xf32>
    %685 = arith.addf %682, %684 : vector<8x128xf32>
    %c2_i32_169 = arith.constant 2 : i32
    %686 = vector.broadcast %c2_i32_169 : i32 to vector<8x1xi32>
    %687 = arith.cmpi sgt, %0, %686 : vector<8x1xi32>
    %688 = vector.extract_strided_slice %681 {offsets = [0, 0], sizes = [8, 96], strides = [1, 1]} : vector<8x128xf32> to vector<8x96xf32>
    %689 = arith.negf %688 : vector<8x96xf32>
    %690 = math.exp %689 : vector<8x96xf32>
    %cst_170 = arith.constant 1.000000e+00 : f32
    %691 = vector.broadcast %cst_170 : f32 to vector<8x96xf32>
    %692 = arith.addf %691, %690 : vector<8x96xf32>
    %693 = arith.divf %691, %692 : vector<8x96xf32>
    %694 = vector.extract_strided_slice %681 {offsets = [0, 96], sizes = [8, 32], strides = [1, 1]} : vector<8x128xf32> to vector<8x32xf32>
    %695 = math.tanh %694 : vector<8x32xf32>
    %696 = vector.extract_strided_slice %693 {offsets = [0, 0], sizes = [8, 32], strides = [1, 1]} : vector<8x96xf32> to vector<8x32xf32>
    %697 = vector.extract_strided_slice %693 {offsets = [0, 32], sizes = [8, 32], strides = [1, 1]} : vector<8x96xf32> to vector<8x32xf32>
    %698 = vector.extract_strided_slice %693 {offsets = [0, 64], sizes = [8, 32], strides = [1, 1]} : vector<8x96xf32> to vector<8x32xf32>
    %699 = arith.mulf %697, %650 : vector<8x32xf32>
    %700 = arith.mulf %696, %695 : vector<8x32xf32>
    %701 = arith.addf %699, %700 : vector<8x32xf32>
    %702 = math.tanh %701 : vector<8x32xf32>
    %703 = arith.mulf %698, %702 : vector<8x32xf32>
    %704 = vector.shape_cast %687 : vector<8x1xi1> to vector<8x1xi1>
    %705 = vector.broadcast %704 : vector<8x1xi1> to vector<8x32xi1>
    %706 = arith.select %705, %701, %650 : vector<8x32xi1>, vector<8x32xf32>
    %707 = vector.shape_cast %687 : vector<8x1xi1> to vector<8x1xi1>
    %708 = vector.broadcast %707 : vector<8x1xi1> to vector<8x32xi1>
    %709 = arith.select %708, %703, %653 : vector<8x32xi1>, vector<8x32xf32>
    %c5_i32_171 = arith.constant 5 : i32
    %710 = vector.broadcast %c5_i32_171 : i32 to vector<8x1xi32>
    %711 = arith.cmpi sgt, %0, %710 : vector<8x1xi32>
    %712 = vector.extract_strided_slice %685 {offsets = [0, 0], sizes = [8, 96], strides = [1, 1]} : vector<8x128xf32> to vector<8x96xf32>
    %713 = arith.negf %712 : vector<8x96xf32>
    %714 = math.exp %713 : vector<8x96xf32>
    %cst_172 = arith.constant 1.000000e+00 : f32
    %715 = vector.broadcast %cst_172 : f32 to vector<8x96xf32>
    %716 = arith.addf %715, %714 : vector<8x96xf32>
    %717 = arith.divf %715, %716 : vector<8x96xf32>
    %718 = vector.extract_strided_slice %685 {offsets = [0, 96], sizes = [8, 32], strides = [1, 1]} : vector<8x128xf32> to vector<8x32xf32>
    %719 = math.tanh %718 : vector<8x32xf32>
    %720 = vector.extract_strided_slice %717 {offsets = [0, 0], sizes = [8, 32], strides = [1, 1]} : vector<8x96xf32> to vector<8x32xf32>
    %721 = vector.extract_strided_slice %717 {offsets = [0, 32], sizes = [8, 32], strides = [1, 1]} : vector<8x96xf32> to vector<8x32xf32>
    %722 = vector.extract_strided_slice %717 {offsets = [0, 64], sizes = [8, 32], strides = [1, 1]} : vector<8x96xf32> to vector<8x32xf32>
    %723 = arith.mulf %721, %674 : vector<8x32xf32>
    %724 = arith.mulf %720, %719 : vector<8x32xf32>
    %725 = arith.addf %723, %724 : vector<8x32xf32>
    %726 = math.tanh %725 : vector<8x32xf32>
    %727 = arith.mulf %722, %726 : vector<8x32xf32>
    %728 = vector.shape_cast %711 : vector<8x1xi1> to vector<8x1xi1>
    %729 = vector.broadcast %728 : vector<8x1xi1> to vector<8x32xi1>
    %730 = arith.select %729, %725, %674 : vector<8x32xi1>, vector<8x32xf32>
    %731 = vector.shape_cast %711 : vector<8x1xi1> to vector<8x1xi1>
    %732 = vector.broadcast %731 : vector<8x1xi1> to vector<8x32xi1>
    %733 = arith.select %732, %727, %677 : vector<8x32xi1>, vector<8x32xf32>
    %734 = vector.extract_strided_slice %552 {offsets = [24, 0], sizes = [8, 128], strides = [1, 1]} : vector<64x128xf32> to vector<8x128xf32>
    %735 = arith.truncf %709 : vector<8x32xf32> to vector<8x32xbf16>
    %cst_173 = arith.constant dense<0.000000e+00> : vector<8x128xf32>
    %736 = tpu.matmul %735, %563, %cst_173 {dimension_numbers = #tpu.dot_dimension_numbers<[1], [0], [0], [1], [0, 0, 1, 1], [], []>} : vector<8x32xbf16>, vector<32x128xbf16>, vector<8x128xf32> -> vector<8x128xf32>
    %737 = arith.addf %734, %736 : vector<8x128xf32>
    %738 = vector.extract_strided_slice %561 {offsets = [32, 0], sizes = [8, 128], strides = [1, 1]} : vector<64x128xf32> to vector<8x128xf32>
    %739 = arith.truncf %733 : vector<8x32xf32> to vector<8x32xbf16>
    %cst_174 = arith.constant dense<0.000000e+00> : vector<8x128xf32>
    %740 = tpu.matmul %739, %565, %cst_174 {dimension_numbers = #tpu.dot_dimension_numbers<[1], [0], [0], [1], [0, 0, 1, 1], [], []>} : vector<8x32xbf16>, vector<32x128xbf16>, vector<8x128xf32> -> vector<8x128xf32>
    %741 = arith.addf %738, %740 : vector<8x128xf32>
    %c3_i32_175 = arith.constant 3 : i32
    %742 = vector.broadcast %c3_i32_175 : i32 to vector<8x1xi32>
    %743 = arith.cmpi sgt, %0, %742 : vector<8x1xi32>
    %744 = vector.extract_strided_slice %737 {offsets = [0, 0], sizes = [8, 96], strides = [1, 1]} : vector<8x128xf32> to vector<8x96xf32>
    %745 = arith.negf %744 : vector<8x96xf32>
    %746 = math.exp %745 : vector<8x96xf32>
    %cst_176 = arith.constant 1.000000e+00 : f32
    %747 = vector.broadcast %cst_176 : f32 to vector<8x96xf32>
    %748 = arith.addf %747, %746 : vector<8x96xf32>
    %749 = arith.divf %747, %748 : vector<8x96xf32>
    %750 = vector.extract_strided_slice %737 {offsets = [0, 96], sizes = [8, 32], strides = [1, 1]} : vector<8x128xf32> to vector<8x32xf32>
    %751 = math.tanh %750 : vector<8x32xf32>
    %752 = vector.extract_strided_slice %749 {offsets = [0, 0], sizes = [8, 32], strides = [1, 1]} : vector<8x96xf32> to vector<8x32xf32>
    %753 = vector.extract_strided_slice %749 {offsets = [0, 32], sizes = [8, 32], strides = [1, 1]} : vector<8x96xf32> to vector<8x32xf32>
    %754 = vector.extract_strided_slice %749 {offsets = [0, 64], sizes = [8, 32], strides = [1, 1]} : vector<8x96xf32> to vector<8x32xf32>
    %755 = arith.mulf %753, %706 : vector<8x32xf32>
    %756 = arith.mulf %752, %751 : vector<8x32xf32>
    %757 = arith.addf %755, %756 : vector<8x32xf32>
    %758 = math.tanh %757 : vector<8x32xf32>
    %759 = arith.mulf %754, %758 : vector<8x32xf32>
    %760 = vector.shape_cast %743 : vector<8x1xi1> to vector<8x1xi1>
    %761 = vector.broadcast %760 : vector<8x1xi1> to vector<8x32xi1>
    %762 = arith.select %761, %757, %706 : vector<8x32xi1>, vector<8x32xf32>
    %763 = vector.shape_cast %743 : vector<8x1xi1> to vector<8x1xi1>
    %764 = vector.broadcast %763 : vector<8x1xi1> to vector<8x32xi1>
    %765 = arith.select %764, %759, %709 : vector<8x32xi1>, vector<8x32xf32>
    %c4_i32_177 = arith.constant 4 : i32
    %766 = vector.broadcast %c4_i32_177 : i32 to vector<8x1xi32>
    %767 = arith.cmpi sgt, %0, %766 : vector<8x1xi32>
    %768 = vector.extract_strided_slice %741 {offsets = [0, 0], sizes = [8, 96], strides = [1, 1]} : vector<8x128xf32> to vector<8x96xf32>
    %769 = arith.negf %768 : vector<8x96xf32>
    %770 = math.exp %769 : vector<8x96xf32>
    %cst_178 = arith.constant 1.000000e+00 : f32
    %771 = vector.broadcast %cst_178 : f32 to vector<8x96xf32>
    %772 = arith.addf %771, %770 : vector<8x96xf32>
    %773 = arith.divf %771, %772 : vector<8x96xf32>
    %774 = vector.extract_strided_slice %741 {offsets = [0, 96], sizes = [8, 32], strides = [1, 1]} : vector<8x128xf32> to vector<8x32xf32>
    %775 = math.tanh %774 : vector<8x32xf32>
    %776 = vector.extract_strided_slice %773 {offsets = [0, 0], sizes = [8, 32], strides = [1, 1]} : vector<8x96xf32> to vector<8x32xf32>
    %777 = vector.extract_strided_slice %773 {offsets = [0, 32], sizes = [8, 32], strides = [1, 1]} : vector<8x96xf32> to vector<8x32xf32>
    %778 = vector.extract_strided_slice %773 {offsets = [0, 64], sizes = [8, 32], strides = [1, 1]} : vector<8x96xf32> to vector<8x32xf32>
    %779 = arith.mulf %777, %730 : vector<8x32xf32>
    %780 = arith.mulf %776, %775 : vector<8x32xf32>
    %781 = arith.addf %779, %780 : vector<8x32xf32>
    %782 = math.tanh %781 : vector<8x32xf32>
    %783 = arith.mulf %778, %782 : vector<8x32xf32>
    %784 = vector.shape_cast %767 : vector<8x1xi1> to vector<8x1xi1>
    %785 = vector.broadcast %784 : vector<8x1xi1> to vector<8x32xi1>
    %786 = arith.select %785, %781, %730 : vector<8x32xi1>, vector<8x32xf32>
    %787 = vector.shape_cast %767 : vector<8x1xi1> to vector<8x1xi1>
    %788 = vector.broadcast %787 : vector<8x1xi1> to vector<8x32xi1>
    %789 = arith.select %788, %783, %733 : vector<8x32xi1>, vector<8x32xf32>
    %790 = vector.extract_strided_slice %552 {offsets = [32, 0], sizes = [8, 128], strides = [1, 1]} : vector<64x128xf32> to vector<8x128xf32>
    %791 = arith.truncf %765 : vector<8x32xf32> to vector<8x32xbf16>
    %cst_179 = arith.constant dense<0.000000e+00> : vector<8x128xf32>
    %792 = tpu.matmul %791, %563, %cst_179 {dimension_numbers = #tpu.dot_dimension_numbers<[1], [0], [0], [1], [0, 0, 1, 1], [], []>} : vector<8x32xbf16>, vector<32x128xbf16>, vector<8x128xf32> -> vector<8x128xf32>
    %793 = arith.addf %790, %792 : vector<8x128xf32>
    %794 = vector.extract_strided_slice %561 {offsets = [24, 0], sizes = [8, 128], strides = [1, 1]} : vector<64x128xf32> to vector<8x128xf32>
    %795 = arith.truncf %789 : vector<8x32xf32> to vector<8x32xbf16>
    %cst_180 = arith.constant dense<0.000000e+00> : vector<8x128xf32>
    %796 = tpu.matmul %795, %565, %cst_180 {dimension_numbers = #tpu.dot_dimension_numbers<[1], [0], [0], [1], [0, 0, 1, 1], [], []>} : vector<8x32xbf16>, vector<32x128xbf16>, vector<8x128xf32> -> vector<8x128xf32>
    %797 = arith.addf %794, %796 : vector<8x128xf32>
    %c4_i32_181 = arith.constant 4 : i32
    %798 = vector.broadcast %c4_i32_181 : i32 to vector<8x1xi32>
    %799 = arith.cmpi sgt, %0, %798 : vector<8x1xi32>
    %800 = vector.extract_strided_slice %793 {offsets = [0, 0], sizes = [8, 96], strides = [1, 1]} : vector<8x128xf32> to vector<8x96xf32>
    %801 = arith.negf %800 : vector<8x96xf32>
    %802 = math.exp %801 : vector<8x96xf32>
    %cst_182 = arith.constant 1.000000e+00 : f32
    %803 = vector.broadcast %cst_182 : f32 to vector<8x96xf32>
    %804 = arith.addf %803, %802 : vector<8x96xf32>
    %805 = arith.divf %803, %804 : vector<8x96xf32>
    %806 = vector.extract_strided_slice %793 {offsets = [0, 96], sizes = [8, 32], strides = [1, 1]} : vector<8x128xf32> to vector<8x32xf32>
    %807 = math.tanh %806 : vector<8x32xf32>
    %808 = vector.extract_strided_slice %805 {offsets = [0, 0], sizes = [8, 32], strides = [1, 1]} : vector<8x96xf32> to vector<8x32xf32>
    %809 = vector.extract_strided_slice %805 {offsets = [0, 32], sizes = [8, 32], strides = [1, 1]} : vector<8x96xf32> to vector<8x32xf32>
    %810 = vector.extract_strided_slice %805 {offsets = [0, 64], sizes = [8, 32], strides = [1, 1]} : vector<8x96xf32> to vector<8x32xf32>
    %811 = arith.mulf %809, %762 : vector<8x32xf32>
    %812 = arith.mulf %808, %807 : vector<8x32xf32>
    %813 = arith.addf %811, %812 : vector<8x32xf32>
    %814 = math.tanh %813 : vector<8x32xf32>
    %815 = arith.mulf %810, %814 : vector<8x32xf32>
    %816 = vector.shape_cast %799 : vector<8x1xi1> to vector<8x1xi1>
    %817 = vector.broadcast %816 : vector<8x1xi1> to vector<8x32xi1>
    %818 = arith.select %817, %813, %762 : vector<8x32xi1>, vector<8x32xf32>
    %819 = vector.shape_cast %799 : vector<8x1xi1> to vector<8x1xi1>
    %820 = vector.broadcast %819 : vector<8x1xi1> to vector<8x32xi1>
    %821 = arith.select %820, %815, %765 : vector<8x32xi1>, vector<8x32xf32>
    %c3_i32_183 = arith.constant 3 : i32
    %822 = vector.broadcast %c3_i32_183 : i32 to vector<8x1xi32>
    %823 = arith.cmpi sgt, %0, %822 : vector<8x1xi32>
    %824 = vector.extract_strided_slice %797 {offsets = [0, 0], sizes = [8, 96], strides = [1, 1]} : vector<8x128xf32> to vector<8x96xf32>
    %825 = arith.negf %824 : vector<8x96xf32>
    %826 = math.exp %825 : vector<8x96xf32>
    %cst_184 = arith.constant 1.000000e+00 : f32
    %827 = vector.broadcast %cst_184 : f32 to vector<8x96xf32>
    %828 = arith.addf %827, %826 : vector<8x96xf32>
    %829 = arith.divf %827, %828 : vector<8x96xf32>
    %830 = vector.extract_strided_slice %797 {offsets = [0, 96], sizes = [8, 32], strides = [1, 1]} : vector<8x128xf32> to vector<8x32xf32>
    %831 = math.tanh %830 : vector<8x32xf32>
    %832 = vector.extract_strided_slice %829 {offsets = [0, 0], sizes = [8, 32], strides = [1, 1]} : vector<8x96xf32> to vector<8x32xf32>
    %833 = vector.extract_strided_slice %829 {offsets = [0, 32], sizes = [8, 32], strides = [1, 1]} : vector<8x96xf32> to vector<8x32xf32>
    %834 = vector.extract_strided_slice %829 {offsets = [0, 64], sizes = [8, 32], strides = [1, 1]} : vector<8x96xf32> to vector<8x32xf32>
    %835 = arith.mulf %833, %786 : vector<8x32xf32>
    %836 = arith.mulf %832, %831 : vector<8x32xf32>
    %837 = arith.addf %835, %836 : vector<8x32xf32>
    %838 = math.tanh %837 : vector<8x32xf32>
    %839 = arith.mulf %834, %838 : vector<8x32xf32>
    %840 = vector.shape_cast %823 : vector<8x1xi1> to vector<8x1xi1>
    %841 = vector.broadcast %840 : vector<8x1xi1> to vector<8x32xi1>
    %842 = arith.select %841, %837, %786 : vector<8x32xi1>, vector<8x32xf32>
    %843 = vector.shape_cast %823 : vector<8x1xi1> to vector<8x1xi1>
    %844 = vector.broadcast %843 : vector<8x1xi1> to vector<8x32xi1>
    %845 = arith.select %844, %839, %789 : vector<8x32xi1>, vector<8x32xf32>
    %846 = vector.extract_strided_slice %552 {offsets = [40, 0], sizes = [8, 128], strides = [1, 1]} : vector<64x128xf32> to vector<8x128xf32>
    %847 = arith.truncf %821 : vector<8x32xf32> to vector<8x32xbf16>
    %cst_185 = arith.constant dense<0.000000e+00> : vector<8x128xf32>
    %848 = tpu.matmul %847, %563, %cst_185 {dimension_numbers = #tpu.dot_dimension_numbers<[1], [0], [0], [1], [0, 0, 1, 1], [], []>} : vector<8x32xbf16>, vector<32x128xbf16>, vector<8x128xf32> -> vector<8x128xf32>
    %849 = arith.addf %846, %848 : vector<8x128xf32>
    %850 = vector.extract_strided_slice %561 {offsets = [16, 0], sizes = [8, 128], strides = [1, 1]} : vector<64x128xf32> to vector<8x128xf32>
    %851 = arith.truncf %845 : vector<8x32xf32> to vector<8x32xbf16>
    %cst_186 = arith.constant dense<0.000000e+00> : vector<8x128xf32>
    %852 = tpu.matmul %851, %565, %cst_186 {dimension_numbers = #tpu.dot_dimension_numbers<[1], [0], [0], [1], [0, 0, 1, 1], [], []>} : vector<8x32xbf16>, vector<32x128xbf16>, vector<8x128xf32> -> vector<8x128xf32>
    %853 = arith.addf %850, %852 : vector<8x128xf32>
    %c5_i32_187 = arith.constant 5 : i32
    %854 = vector.broadcast %c5_i32_187 : i32 to vector<8x1xi32>
    %855 = arith.cmpi sgt, %0, %854 : vector<8x1xi32>
    %856 = vector.extract_strided_slice %849 {offsets = [0, 0], sizes = [8, 96], strides = [1, 1]} : vector<8x128xf32> to vector<8x96xf32>
    %857 = arith.negf %856 : vector<8x96xf32>
    %858 = math.exp %857 : vector<8x96xf32>
    %cst_188 = arith.constant 1.000000e+00 : f32
    %859 = vector.broadcast %cst_188 : f32 to vector<8x96xf32>
    %860 = arith.addf %859, %858 : vector<8x96xf32>
    %861 = arith.divf %859, %860 : vector<8x96xf32>
    %862 = vector.extract_strided_slice %849 {offsets = [0, 96], sizes = [8, 32], strides = [1, 1]} : vector<8x128xf32> to vector<8x32xf32>
    %863 = math.tanh %862 : vector<8x32xf32>
    %864 = vector.extract_strided_slice %861 {offsets = [0, 0], sizes = [8, 32], strides = [1, 1]} : vector<8x96xf32> to vector<8x32xf32>
    %865 = vector.extract_strided_slice %861 {offsets = [0, 32], sizes = [8, 32], strides = [1, 1]} : vector<8x96xf32> to vector<8x32xf32>
    %866 = vector.extract_strided_slice %861 {offsets = [0, 64], sizes = [8, 32], strides = [1, 1]} : vector<8x96xf32> to vector<8x32xf32>
    %867 = arith.mulf %865, %818 : vector<8x32xf32>
    %868 = arith.mulf %864, %863 : vector<8x32xf32>
    %869 = arith.addf %867, %868 : vector<8x32xf32>
    %870 = math.tanh %869 : vector<8x32xf32>
    %871 = arith.mulf %866, %870 : vector<8x32xf32>
    %872 = vector.shape_cast %855 : vector<8x1xi1> to vector<8x1xi1>
    %873 = vector.broadcast %872 : vector<8x1xi1> to vector<8x32xi1>
    %874 = arith.select %873, %869, %818 : vector<8x32xi1>, vector<8x32xf32>
    %875 = vector.shape_cast %855 : vector<8x1xi1> to vector<8x1xi1>
    %876 = vector.broadcast %875 : vector<8x1xi1> to vector<8x32xi1>
    %877 = arith.select %876, %871, %821 : vector<8x32xi1>, vector<8x32xf32>
    %c2_i32_189 = arith.constant 2 : i32
    %878 = vector.broadcast %c2_i32_189 : i32 to vector<8x1xi32>
    %879 = arith.cmpi sgt, %0, %878 : vector<8x1xi32>
    %880 = vector.extract_strided_slice %853 {offsets = [0, 0], sizes = [8, 96], strides = [1, 1]} : vector<8x128xf32> to vector<8x96xf32>
    %881 = arith.negf %880 : vector<8x96xf32>
    %882 = math.exp %881 : vector<8x96xf32>
    %cst_190 = arith.constant 1.000000e+00 : f32
    %883 = vector.broadcast %cst_190 : f32 to vector<8x96xf32>
    %884 = arith.addf %883, %882 : vector<8x96xf32>
    %885 = arith.divf %883, %884 : vector<8x96xf32>
    %886 = vector.extract_strided_slice %853 {offsets = [0, 96], sizes = [8, 32], strides = [1, 1]} : vector<8x128xf32> to vector<8x32xf32>
    %887 = math.tanh %886 : vector<8x32xf32>
    %888 = vector.extract_strided_slice %885 {offsets = [0, 0], sizes = [8, 32], strides = [1, 1]} : vector<8x96xf32> to vector<8x32xf32>
    %889 = vector.extract_strided_slice %885 {offsets = [0, 32], sizes = [8, 32], strides = [1, 1]} : vector<8x96xf32> to vector<8x32xf32>
    %890 = vector.extract_strided_slice %885 {offsets = [0, 64], sizes = [8, 32], strides = [1, 1]} : vector<8x96xf32> to vector<8x32xf32>
    %891 = arith.mulf %889, %842 : vector<8x32xf32>
    %892 = arith.mulf %888, %887 : vector<8x32xf32>
    %893 = arith.addf %891, %892 : vector<8x32xf32>
    %894 = math.tanh %893 : vector<8x32xf32>
    %895 = arith.mulf %890, %894 : vector<8x32xf32>
    %896 = vector.shape_cast %879 : vector<8x1xi1> to vector<8x1xi1>
    %897 = vector.broadcast %896 : vector<8x1xi1> to vector<8x32xi1>
    %898 = arith.select %897, %893, %842 : vector<8x32xi1>, vector<8x32xf32>
    %899 = vector.shape_cast %879 : vector<8x1xi1> to vector<8x1xi1>
    %900 = vector.broadcast %899 : vector<8x1xi1> to vector<8x32xi1>
    %901 = arith.select %900, %895, %845 : vector<8x32xi1>, vector<8x32xf32>
    %902 = vector.extract_strided_slice %552 {offsets = [48, 0], sizes = [8, 128], strides = [1, 1]} : vector<64x128xf32> to vector<8x128xf32>
    %903 = arith.truncf %877 : vector<8x32xf32> to vector<8x32xbf16>
    %cst_191 = arith.constant dense<0.000000e+00> : vector<8x128xf32>
    %904 = tpu.matmul %903, %563, %cst_191 {dimension_numbers = #tpu.dot_dimension_numbers<[1], [0], [0], [1], [0, 0, 1, 1], [], []>} : vector<8x32xbf16>, vector<32x128xbf16>, vector<8x128xf32> -> vector<8x128xf32>
    %905 = arith.addf %902, %904 : vector<8x128xf32>
    %906 = vector.extract_strided_slice %561 {offsets = [8, 0], sizes = [8, 128], strides = [1, 1]} : vector<64x128xf32> to vector<8x128xf32>
    %907 = arith.truncf %901 : vector<8x32xf32> to vector<8x32xbf16>
    %cst_192 = arith.constant dense<0.000000e+00> : vector<8x128xf32>
    %908 = tpu.matmul %907, %565, %cst_192 {dimension_numbers = #tpu.dot_dimension_numbers<[1], [0], [0], [1], [0, 0, 1, 1], [], []>} : vector<8x32xbf16>, vector<32x128xbf16>, vector<8x128xf32> -> vector<8x128xf32>
    %909 = arith.addf %906, %908 : vector<8x128xf32>
    %c6_i32_193 = arith.constant 6 : i32
    %910 = vector.broadcast %c6_i32_193 : i32 to vector<8x1xi32>
    %911 = arith.cmpi sgt, %0, %910 : vector<8x1xi32>
    %912 = vector.extract_strided_slice %905 {offsets = [0, 0], sizes = [8, 96], strides = [1, 1]} : vector<8x128xf32> to vector<8x96xf32>
    %913 = arith.negf %912 : vector<8x96xf32>
    %914 = math.exp %913 : vector<8x96xf32>
    %cst_194 = arith.constant 1.000000e+00 : f32
    %915 = vector.broadcast %cst_194 : f32 to vector<8x96xf32>
    %916 = arith.addf %915, %914 : vector<8x96xf32>
    %917 = arith.divf %915, %916 : vector<8x96xf32>
    %918 = vector.extract_strided_slice %905 {offsets = [0, 96], sizes = [8, 32], strides = [1, 1]} : vector<8x128xf32> to vector<8x32xf32>
    %919 = math.tanh %918 : vector<8x32xf32>
    %920 = vector.extract_strided_slice %917 {offsets = [0, 0], sizes = [8, 32], strides = [1, 1]} : vector<8x96xf32> to vector<8x32xf32>
    %921 = vector.extract_strided_slice %917 {offsets = [0, 32], sizes = [8, 32], strides = [1, 1]} : vector<8x96xf32> to vector<8x32xf32>
    %922 = vector.extract_strided_slice %917 {offsets = [0, 64], sizes = [8, 32], strides = [1, 1]} : vector<8x96xf32> to vector<8x32xf32>
    %923 = arith.mulf %921, %874 : vector<8x32xf32>
    %924 = arith.mulf %920, %919 : vector<8x32xf32>
    %925 = arith.addf %923, %924 : vector<8x32xf32>
    %926 = math.tanh %925 : vector<8x32xf32>
    %927 = arith.mulf %922, %926 : vector<8x32xf32>
    %928 = vector.shape_cast %911 : vector<8x1xi1> to vector<8x1xi1>
    %929 = vector.broadcast %928 : vector<8x1xi1> to vector<8x32xi1>
    %930 = arith.select %929, %925, %874 : vector<8x32xi1>, vector<8x32xf32>
    %931 = vector.shape_cast %911 : vector<8x1xi1> to vector<8x1xi1>
    %932 = vector.broadcast %931 : vector<8x1xi1> to vector<8x32xi1>
    %933 = arith.select %932, %927, %877 : vector<8x32xi1>, vector<8x32xf32>
    %c1_i32_195 = arith.constant 1 : i32
    %934 = vector.broadcast %c1_i32_195 : i32 to vector<8x1xi32>
    %935 = arith.cmpi sgt, %0, %934 : vector<8x1xi32>
    %936 = vector.extract_strided_slice %909 {offsets = [0, 0], sizes = [8, 96], strides = [1, 1]} : vector<8x128xf32> to vector<8x96xf32>
    %937 = arith.negf %936 : vector<8x96xf32>
    %938 = math.exp %937 : vector<8x96xf32>
    %cst_196 = arith.constant 1.000000e+00 : f32
    %939 = vector.broadcast %cst_196 : f32 to vector<8x96xf32>
    %940 = arith.addf %939, %938 : vector<8x96xf32>
    %941 = arith.divf %939, %940 : vector<8x96xf32>
    %942 = vector.extract_strided_slice %909 {offsets = [0, 96], sizes = [8, 32], strides = [1, 1]} : vector<8x128xf32> to vector<8x32xf32>
    %943 = math.tanh %942 : vector<8x32xf32>
    %944 = vector.extract_strided_slice %941 {offsets = [0, 0], sizes = [8, 32], strides = [1, 1]} : vector<8x96xf32> to vector<8x32xf32>
    %945 = vector.extract_strided_slice %941 {offsets = [0, 32], sizes = [8, 32], strides = [1, 1]} : vector<8x96xf32> to vector<8x32xf32>
    %946 = vector.extract_strided_slice %941 {offsets = [0, 64], sizes = [8, 32], strides = [1, 1]} : vector<8x96xf32> to vector<8x32xf32>
    %947 = arith.mulf %945, %898 : vector<8x32xf32>
    %948 = arith.mulf %944, %943 : vector<8x32xf32>
    %949 = arith.addf %947, %948 : vector<8x32xf32>
    %950 = math.tanh %949 : vector<8x32xf32>
    %951 = arith.mulf %946, %950 : vector<8x32xf32>
    %952 = vector.shape_cast %935 : vector<8x1xi1> to vector<8x1xi1>
    %953 = vector.broadcast %952 : vector<8x1xi1> to vector<8x32xi1>
    %954 = arith.select %953, %949, %898 : vector<8x32xi1>, vector<8x32xf32>
    %955 = vector.shape_cast %935 : vector<8x1xi1> to vector<8x1xi1>
    %956 = vector.broadcast %955 : vector<8x1xi1> to vector<8x32xi1>
    %957 = arith.select %956, %951, %901 : vector<8x32xi1>, vector<8x32xf32>
    %958 = vector.extract_strided_slice %552 {offsets = [56, 0], sizes = [8, 128], strides = [1, 1]} : vector<64x128xf32> to vector<8x128xf32>
    %959 = arith.truncf %933 : vector<8x32xf32> to vector<8x32xbf16>
    %cst_197 = arith.constant dense<0.000000e+00> : vector<8x128xf32>
    %960 = tpu.matmul %959, %563, %cst_197 {dimension_numbers = #tpu.dot_dimension_numbers<[1], [0], [0], [1], [0, 0, 1, 1], [], []>} : vector<8x32xbf16>, vector<32x128xbf16>, vector<8x128xf32> -> vector<8x128xf32>
    %961 = arith.addf %958, %960 : vector<8x128xf32>
    %962 = vector.extract_strided_slice %561 {offsets = [0, 0], sizes = [8, 128], strides = [1, 1]} : vector<64x128xf32> to vector<8x128xf32>
    %963 = arith.truncf %957 : vector<8x32xf32> to vector<8x32xbf16>
    %cst_198 = arith.constant dense<0.000000e+00> : vector<8x128xf32>
    %964 = tpu.matmul %963, %565, %cst_198 {dimension_numbers = #tpu.dot_dimension_numbers<[1], [0], [0], [1], [0, 0, 1, 1], [], []>} : vector<8x32xbf16>, vector<32x128xbf16>, vector<8x128xf32> -> vector<8x128xf32>
    %965 = arith.addf %962, %964 : vector<8x128xf32>
    %c7_i32_199 = arith.constant 7 : i32
    %966 = vector.broadcast %c7_i32_199 : i32 to vector<8x1xi32>
    %967 = arith.cmpi sgt, %0, %966 : vector<8x1xi32>
    %968 = vector.extract_strided_slice %961 {offsets = [0, 0], sizes = [8, 96], strides = [1, 1]} : vector<8x128xf32> to vector<8x96xf32>
    %969 = arith.negf %968 : vector<8x96xf32>
    %970 = math.exp %969 : vector<8x96xf32>
    %cst_200 = arith.constant 1.000000e+00 : f32
    %971 = vector.broadcast %cst_200 : f32 to vector<8x96xf32>
    %972 = arith.addf %971, %970 : vector<8x96xf32>
    %973 = arith.divf %971, %972 : vector<8x96xf32>
    %974 = vector.extract_strided_slice %961 {offsets = [0, 96], sizes = [8, 32], strides = [1, 1]} : vector<8x128xf32> to vector<8x32xf32>
    %975 = math.tanh %974 : vector<8x32xf32>
    %976 = vector.extract_strided_slice %973 {offsets = [0, 0], sizes = [8, 32], strides = [1, 1]} : vector<8x96xf32> to vector<8x32xf32>
    %977 = vector.extract_strided_slice %973 {offsets = [0, 32], sizes = [8, 32], strides = [1, 1]} : vector<8x96xf32> to vector<8x32xf32>
    %978 = vector.extract_strided_slice %973 {offsets = [0, 64], sizes = [8, 32], strides = [1, 1]} : vector<8x96xf32> to vector<8x32xf32>
    %979 = arith.mulf %977, %930 : vector<8x32xf32>
    %980 = arith.mulf %976, %975 : vector<8x32xf32>
    %981 = arith.addf %979, %980 : vector<8x32xf32>
    %982 = math.tanh %981 : vector<8x32xf32>
    %983 = arith.mulf %978, %982 : vector<8x32xf32>
    %984 = vector.shape_cast %967 : vector<8x1xi1> to vector<8x1xi1>
    %985 = vector.broadcast %984 : vector<8x1xi1> to vector<8x32xi1>
    %986 = arith.select %985, %983, %933 : vector<8x32xi1>, vector<8x32xf32>
    %c0_i32_201 = arith.constant 0 : i32
    %987 = vector.broadcast %c0_i32_201 : i32 to vector<8x1xi32>
    %988 = arith.cmpi sgt, %0, %987 : vector<8x1xi32>
    %989 = vector.extract_strided_slice %965 {offsets = [0, 0], sizes = [8, 96], strides = [1, 1]} : vector<8x128xf32> to vector<8x96xf32>
    %990 = arith.negf %989 : vector<8x96xf32>
    %991 = math.exp %990 : vector<8x96xf32>
    %cst_202 = arith.constant 1.000000e+00 : f32
    %992 = vector.broadcast %cst_202 : f32 to vector<8x96xf32>
    %993 = arith.addf %992, %991 : vector<8x96xf32>
    %994 = arith.divf %992, %993 : vector<8x96xf32>
    %995 = vector.extract_strided_slice %965 {offsets = [0, 96], sizes = [8, 32], strides = [1, 1]} : vector<8x128xf32> to vector<8x32xf32>
    %996 = math.tanh %995 : vector<8x32xf32>
    %997 = vector.extract_strided_slice %994 {offsets = [0, 0], sizes = [8, 32], strides = [1, 1]} : vector<8x96xf32> to vector<8x32xf32>
    %998 = vector.extract_strided_slice %994 {offsets = [0, 32], sizes = [8, 32], strides = [1, 1]} : vector<8x96xf32> to vector<8x32xf32>
    %999 = vector.extract_strided_slice %994 {offsets = [0, 64], sizes = [8, 32], strides = [1, 1]} : vector<8x96xf32> to vector<8x32xf32>
    %1000 = arith.mulf %998, %954 : vector<8x32xf32>
    %1001 = arith.mulf %997, %996 : vector<8x32xf32>
    %1002 = arith.addf %1000, %1001 : vector<8x32xf32>
    %1003 = math.tanh %1002 : vector<8x32xf32>
    %1004 = arith.mulf %999, %1003 : vector<8x32xf32>
    %1005 = vector.shape_cast %988 : vector<8x1xi1> to vector<8x1xi1>
    %1006 = vector.broadcast %1005 : vector<8x1xi1> to vector<8x32xi1>
    %1007 = arith.select %1006, %1004, %957 : vector<8x32xi1>, vector<8x32xf32>
    %c0_203 = arith.constant 0 : index
    %c0_204 = arith.constant 0 : index
    %c0_205 = arith.constant 0 : index
    %1008 = vector.load %arg8[%c0_203, %c0_204, %c0_205] : memref<2x8x32xf32, #tpu.memory_space<vmem>>, vector<1x8x32xf32>
    %1009 = vector.shape_cast %1008 : vector<1x8x32xf32> to vector<8x32xf32>
    %1010 = vector.shape_cast %986 : vector<8x32xf32> to vector<1x8x32xf32>
    tpu.vector_store %arg8[%c0_203, %c0_204, %c0_205], %1010 {strides = array<i32>} : memref<2x8x32xf32, #tpu.memory_space<vmem>>, vector<1x8x32xf32>,
    %c1_206 = arith.constant 1 : index
    %c0_207 = arith.constant 0 : index
    %c0_208 = arith.constant 0 : index
    %1011 = vector.load %arg8[%c1_206, %c0_207, %c0_208] : memref<2x8x32xf32, #tpu.memory_space<vmem>>, vector<1x8x32xf32>
    %1012 = vector.shape_cast %1011 : vector<1x8x32xf32> to vector<8x32xf32>
    %1013 = vector.shape_cast %1007 : vector<8x32xf32> to vector<1x8x32xf32>
    tpu.vector_store %arg8[%c1_206, %c0_207, %c0_208], %1013 {strides = array<i32>} : memref<2x8x32xf32, #tpu.memory_space<vmem>>, vector<1x8x32xf32>,
    return
  }
  func.func @transform_0(%arg0: i32) -> (i32, i32) {
    %c0_i32 = arith.constant 0 : i32
    %c0_i32_0 = arith.constant 0 : i32
    %c0_i32_1 = arith.constant 0 : i32
    return %c0_i32, %c0_i32_0 : i32, i32
  }
  func.func @transform_1(%arg0: i32) -> (i32, i32, i32) {
    %c0_i32 = arith.constant 0 : i32
    %c0_i32_0 = arith.constant 0 : i32
    %c0_i32_1 = arith.constant 0 : i32
    %c0_i32_2 = arith.constant 0 : i32
    return %c0_i32, %c0_i32_0, %c0_i32_1 : i32, i32, i32
  }
  func.func @transform_2(%arg0: i32) -> (i32, i32, i32) {
    %c0_i32 = arith.constant 0 : i32
    %c0_i32_0 = arith.constant 0 : i32
    %c0_i32_1 = arith.constant 0 : i32
    %c0_i32_2 = arith.constant 0 : i32
    return %c0_i32, %c0_i32_0, %c0_i32_1 : i32, i32, i32
  }
  func.func @transform_3(%arg0: i32) -> (i32, i32, i32) {
    %c0_i32 = arith.constant 0 : i32
    %c0_i32_0 = arith.constant 0 : i32
    %c0_i32_1 = arith.constant 0 : i32
    %c0_i32_2 = arith.constant 0 : i32
    return %c0_i32, %c0_i32_0, %c0_i32_1 : i32, i32, i32
  }
  func.func @transform_4(%arg0: i32) -> (i32, i32, i32) {
    %c0_i32 = arith.constant 0 : i32
    %c0_i32_0 = arith.constant 0 : i32
    %c0_i32_1 = arith.constant 0 : i32
    %c0_i32_2 = arith.constant 0 : i32
    return %c0_i32, %c0_i32_0, %c0_i32_1 : i32, i32, i32
  }
  func.func @transform_5(%arg0: i32) -> (i32, i32, i32) {
    %c0_i32 = arith.constant 0 : i32
    %c0_i32_0 = arith.constant 0 : i32
    %c0_i32_1 = arith.constant 0 : i32
    %c0_i32_2 = arith.constant 0 : i32
    return %c0_i32, %c0_i32_0, %c0_i32_1 : i32, i32, i32
  }
  func.func @transform_6(%arg0: i32) -> (i32, i32, i32) {
    %c0_i32 = arith.constant 0 : i32
    %c0_i32_0 = arith.constant 0 : i32
    %c0_i32_1 = arith.constant 0 : i32
    %c0_i32_2 = arith.constant 0 : i32
    return %c0_i32, %c0_i32_0, %c0_i32_1 : i32, i32, i32
  }
  func.func @transform_7(%arg0: i32) -> (i32, i32, i32) {
    %c0_i32 = arith.constant 0 : i32
    %c0_i32_0 = arith.constant 0 : i32
    %c0_i32_1 = arith.constant 0 : i32
    %c0_i32_2 = arith.constant 0 : i32
    return %c0_i32, %c0_i32_0, %c0_i32_1 : i32, i32, i32
  }
}

</mosaic_0001>

<llo_original>
// kernel: _lambda_.1
$region0: #{_lambda_.1}
  #allocation0 [shape = 'u32[]', space=smem, size = 0x4, offset = 0x4, fixed_abs, tag = 'smem constant byte address 0x4 - core index']
  #allocation1 [shape = 'u32[72,128]{1,0:T(1,128)}', space=vmem, size = 0x9000, scoped, tag = 'internal scratch']
  #allocation2 [shape = 'f32[64,32]{1,0:T(8,128)}', space=vmem, size = 0x8000, scoped, tag = 'scratch operand']
  #allocation3 [shape = 'f32[64,32]{1,0:T(8,128)}', space=vmem, size = 0x8000, scoped, tag = 'scratch operand']
  %s0 = inlined_call_operand.vmem [shape: s32[8,1], index: 0, kind: input, shape index: {}]
  %s1 = inlined_call_operand.vmem [shape: f32[8,8,128], index: 1, kind: input, shape index: {}]
  %s2 = inlined_call_operand.vmem [shape: f32[8,8,128], index: 2, kind: input, shape index: {}]
  %s3 = inlined_call_operand.vmem [shape: bf16[2,32,128], index: 3, kind: input, shape index: {}]
  %s4 = inlined_call_operand.vmem [shape: f32[2,64,128], index: 4, kind: input, shape index: {}]
  %s5 = inlined_call_operand.vmem [shape: f32[2,1,128], index: 5, kind: input, shape index: {}]
  %s6 = inlined_call_operand.vmem [shape: bf16[2,32,128], index: 6, kind: input, shape index: {}]
  %s7 = inlined_call_operand.vmem [shape: f32[2,8,32], index: 7, kind: output, shape index: {}]
  %s8 = sld [smem:[#allocation0]]
  $region38: #{_lambda_.1} parent=0
    _
  %s10 = ssub.s32 1, %s8
  %s11 = scalar_select 0, %s10, %s8
  // Predicated region
  $region2: #{_lambda_.1} parent=0 // pred_check
    _
  $region3: #{_lambda_.1} parent=0 // pred_check_branch
    %13 = sbr.rel (0) target = $region5
  $region4: #{_lambda_.1} parent=0 // pred_region
    _
  $region5: #{_lambda_.1} parent=0 // pred_fallthru
    _
  // Predicated region
  $region6: #{_lambda_.1} parent=0 // pred_check
    _
  $region7: #{_lambda_.1} parent=0 // pred_check_branch
    %15 = sbr.rel (0) target = $region9
  $region8: #{_lambda_.1} parent=0 // pred_region
    _
  $region9: #{_lambda_.1} parent=0 // pred_fallthru
    _
  // Predicated region
  $region10: #{_lambda_.1} parent=0 // pred_check
    _
  $region11: #{_lambda_.1} parent=0 // pred_check_branch
    %17 = sbr.rel (0) target = $region13
  $region12: #{_lambda_.1} parent=0 // pred_region
    _
  $region13: #{_lambda_.1} parent=0 // pred_fallthru
    _
  // Predicated region
  $region14: #{_lambda_.1} parent=0 // pred_check
    _
  $region15: #{_lambda_.1} parent=0 // pred_check_branch
    %19 = sbr.rel (0) target = $region17
  $region16: #{_lambda_.1} parent=0 // pred_region
    _
  $region17: #{_lambda_.1} parent=0 // pred_fallthru
    _
  // Predicated region
  $region18: #{_lambda_.1} parent=0 // pred_check
    _
  $region19: #{_lambda_.1} parent=0 // pred_check_branch
    %21 = sbr.rel (0) target = $region21
  $region20: #{_lambda_.1} parent=0 // pred_region
    _
  $region21: #{_lambda_.1} parent=0 // pred_fallthru
    _
  // Predicated region
  $region22: #{_lambda_.1} parent=0 // pred_check
    _
  $region23: #{_lambda_.1} parent=0 // pred_check_branch
    %23 = sbr.rel (0) target = $region25
  $region24: #{_lambda_.1} parent=0 // pred_region
    _
  $region25: #{_lambda_.1} parent=0 // pred_fallthru
    _
  // Predicated region
  $region26: #{_lambda_.1} parent=0 // pred_check
    _
  $region27: #{_lambda_.1} parent=0 // pred_check_branch
    %25 = sbr.rel (0) target = $region29
  $region28: #{_lambda_.1} parent=0 // pred_region
    _
  $region29: #{_lambda_.1} parent=0 // pred_fallthru
    _
  %v27 = vld [vmem:[%s0] sm:$0xff]
  %v28 = vld [vmem:[%s3] sm:$0xf]
  %v29 = vld [vmem:[%s3 + $0x4] sm:$0xf]
  %v30 = vld [vmem:[%s3 + $0x8] sm:$0xf]
  %v31 = vld [vmem:[%s3 + $0xc] sm:$0xf]
  %s32 = scalar_lea.vmem %s3, 16
  %v33 = vld [vmem:[%s32] sm:$0xf]
  %v34 = vld [vmem:[%s32 + $0x4] sm:$0xf]
  %v35 = vld [vmem:[%s32 + $0x8] sm:$0xf]
  %v36 = vld [vmem:[%s32 + $0xc] sm:$0xf]
  %v37 = vld [vmem:[%s1] sm:$0xff]
  %v42 = vunpack.c.l.b16 %v28
  %v43 = vunpack.c.l.b16 %v29
  %v44 = vunpack.c.l.b16 %v30
  %v45 = vunpack.c.l.b16 %v31
  %v46 = vpack.c.b16 %v43, %v42
  %v47 = vpack.c.b16 %v45, %v44
  %vm50 = vcmask 261120
  %v52 = vsel %vm50, 0, 0
  %54 = vmatpush.bf16.msra.mxu0 0
  %55 = vmatpush.bf16.msra.mxu0 0
  %56 = vmatpush.bf16.msra.mxu0 0
  %57 = vmatpush.bf16.msra.mxu0 0
  %58 = vmatpush.bf16.msra.mxu0 0
  %59 = vmatpush.bf16.msra.mxu0 0
  %60 = vmatpush.bf16.msra.mxu0 %v47
  %61 = vmatpush.bf16.msra.mxu0 %v46
  %62 = vmatmul.bf16.gmra.mxu0 %v52
  %v63 = vpop.f32.mrf.mxu0
  %v64 = vadd.f32 0.0, %v63
  %v65 = vpop.f32.mrf.mxu0
  %66 = vdwg.mxu0
  %v67 = vadd.f32 %v37, %v64
  %s68 = scalar_lea.vmem %s2, 56
  %v69 = vld [vmem:[%s68] sm:$0xff]
  %v74 = vunpack.c.l.b16 %v33
  %v75 = vunpack.c.l.b16 %v34
  %v76 = vunpack.c.l.b16 %v35
  %v77 = vunpack.c.l.b16 %v36
  %v78 = vpack.c.b16 %v75, %v74
  %v79 = vpack.c.b16 %v77, %v76
  %82 = vmatpush.bf16.msra.mxu0 0
  %83 = vmatpush.bf16.msra.mxu0 0
  %84 = vmatpush.bf16.msra.mxu0 0
  %85 = vmatpush.bf16.msra.mxu0 0
  %86 = vmatpush.bf16.msra.mxu0 0
  %87 = vmatpush.bf16.msra.mxu0 0
  %88 = vmatpush.bf16.msra.mxu0 %v79
  %89 = vmatpush.bf16.msra.mxu0 %v78
  %90 = vmatmul.bf16.gmra.mxu0 %v52
  %v91 = vpop.f32.mrf.mxu0
  %v92 = vadd.f32 0.0, %v91
  %v93 = vpop.f32.mrf.mxu0
  %94 = vdwg.mxu0
  %v95 = vadd.f32 %v69, %v92
  %vm96 = vcmp.gt.s32.totalorder %v27, 0
  %v97 = vxor.u32 %v67, 2147483648
  %v98 = vmul.f32 %v97, 1.442695
  %v99 = vpow.pop %v98
  %v100 = vadd.f32 %v99, 1.0
  %v101 = vrcp.pop %v100
  %v102 = vmul.f32 %v100, %v101
  %v103 = vsub.f32 1.0, %v102
  %v104 = vmul.f32 %v101, %v103
  %v105 = vadd.f32 %v101, %v104
  %vm106 = vweird.f32 %v100
  %vm107 = vweird.f32 %v101
  %vm108 = vmor %vm106, %vm107
  %v109 = vsel %vm108, %v101, %v105
  %v110 = vand.u32 2147483647, %v100
  %vm111 = vcmp.eq.f32.partialorder %v110, 8.507059e+37
  %v112 = vand.u32 %v100, 2147483648
  %v113 = vor.u32 1.1754944e-38, %v112
  %v114 = vsel %vm111, %v113, %v109
  %v115 = vmul.f32 1.0, %v114
  %v116 = vtanh.pop %v67
  %v117 = vmul.f32 %v115, 0.0
  %119 = vrot.lane.b32.xlu0 %v116, 32
  %v120 = vpop.permute.xlu0 %119
  %v122 = vmul.f32 %v115, %v120
  %124 = vrot.lane.b32.xlu0 %v122, 32
  %v125 = vpop.permute.xlu0 %124
  %v127 = vadd.f32 %v117, %v125
  %v128 = vtanh.pop %v127
  %130 = vrot.lane.b32.xlu0 %v128, 32
  %v131 = vpop.permute.xlu0 %130
  %v133 = vmul.f32 %v115, %v131
  %v134 = vsel %vm96, 1, 0
  %135 = vset.pattern.permute.xlu0 0
  %136 = vperm.xlu0 %135, %v134
  %v137 = vpop.permute.xlu0 %136
  %vm138 = vcmp.eq.s32.totalorder %v137, 1
  %v139 = vsel %vm138, %v127, 0.0
  %v140 = vsel %vm138, %v133, 0.0
  %vm141 = vcmp.gt.s32.totalorder %v27, 7
  %v142 = vxor.u32 %v95, 2147483648
  %v143 = vmul.f32 %v142, 1.442695
  %v144 = vpow.pop %v143
  %v145 = vadd.f32 %v144, 1.0
  %v146 = vrcp.pop %v145
  %v147 = vmul.f32 %v145, %v146
  %v148 = vsub.f32 1.0, %v147
  %v149 = vmul.f32 %v146, %v148
  %v150 = vadd.f32 %v146, %v149
  %vm151 = vweird.f32 %v145
  %vm152 = vweird.f32 %v146
  %vm153 = vmor %vm151, %vm152
  %v154 = vsel %vm153, %v146, %v150
  %v155 = vand.u32 2147483647, %v145
  %vm156 = vcmp.eq.f32.partialorder %v155, 8.507059e+37
  %v157 = vand.u32 %v145, 2147483648
  %v158 = vor.u32 1.1754944e-38, %v157
  %v159 = vsel %vm156, %v158, %v154
  %v160 = vmul.f32 1.0, %v159
  %v161 = vtanh.pop %v95
  %v162 = vmul.f32 %v160, 0.0
  %164 = vrot.lane.b32.xlu0 %v161, 32
  %v165 = vpop.permute.xlu0 %164
  %v167 = vmul.f32 %v160, %v165
  %169 = vrot.lane.b32.xlu0 %v167, 32
  %v170 = vpop.permute.xlu0 %169
  %v172 = vadd.f32 %v162, %v170
  %v173 = vtanh.pop %v172
  %175 = vrot.lane.b32.xlu0 %v173, 32
  %v176 = vpop.permute.xlu0 %175
  %v178 = vmul.f32 %v160, %v176
  %v179 = vsel %vm141, 1, 0
  %180 = vset.pattern.permute.xlu0 0
  %181 = vperm.xlu0 %180, %v179
  %v182 = vpop.permute.xlu0 %181
  %vm183 = vcmp.eq.s32.totalorder %v182, 1
  %v184 = vsel %vm183, %v172, 0.0
  %v185 = vsel %vm183, %v178, 0.0
  %187 = vrot.lane.b32.xlu0 %v140, 64
  %v188 = vpop.permute.xlu0 %187
  %190 = vst.msk [vmem:[#allocation2] sm:$0xff] %vm50, %v188
  %192 = vrot.lane.b32.xlu0 %v185, 64
  %v193 = vpop.permute.xlu0 %192
  %195 = vst.msk [vmem:[#allocation3 + $0x38] sm:$0xff] %vm50, %v193
  %s196 = scalar_lea.vmem %s1, 8
  %v197 = vld [vmem:[%s196] sm:$0xff]
  %v198 = vpack.c.bf16 %v140, %v140
  %200 = vrot.lane.b32.xlu0 %v198, 64
  %v201 = vpop.permute.xlu0 %200
  %v203 = vsel %vm50, %v201, 0
  %205 = vmatpush.bf16.msra.mxu0 0
  %206 = vmatpush.bf16.msra.mxu0 0
  %207 = vmatpush.bf16.msra.mxu0 0
  %208 = vmatpush.bf16.msra.mxu0 0
  %209 = vmatpush.bf16.msra.mxu0 0
  %210 = vmatpush.bf16.msra.mxu0 0
  %211 = vmatpush.bf16.msra.mxu0 %v47
  %212 = vmatpush.bf16.msra.mxu0 %v46
  %213 = vmatmul.bf16.gmra.mxu0 %v203
  %v214 = vpop.f32.mrf.mxu0
  %v215 = vadd.f32 0.0, %v214
  %v216 = vpop.f32.mrf.mxu0
  %217 = vdwg.mxu0
  %v218 = vadd.f32 %v197, %v215
  %s219 = scalar_lea.vmem %s2, 48
  %v220 = vld [vmem:[%s219] sm:$0xff]
  %v221 = vpack.c.bf16 %v185, %v185
  %223 = vrot.lane.b32.xlu0 %v221, 64
  %v224 = vpop.permute.xlu0 %223
  %v226 = vsel %vm50, %v224, 0
  %228 = vmatpush.bf16.msra.mxu0 0
  %229 = vmatpush.bf16.msra.mxu0 0
  %230 = vmatpush.bf16.msra.mxu0 0
  %231 = vmatpush.bf16.msra.mxu0 0
  %232 = vmatpush.bf16.msra.mxu0 0
  %233 = vmatpush.bf16.msra.mxu0 0
  %234 = vmatpush.bf16.msra.mxu0 %v79
  %235 = vmatpush.bf16.msra.mxu0 %v78
  %236 = vmatmul.bf16.gmra.mxu0 %v226
  %v237 = vpop.f32.mrf.mxu0
  %v238 = vadd.f32 0.0, %v237
  %v239 = vpop.f32.mrf.mxu0
  %240 = vdwg.mxu0
  %v241 = vadd.f32 %v220, %v238
  %vm242 = vcmp.gt.s32.totalorder %v27, 1
  %v243 = vxor.u32 %v218, 2147483648
  %v244 = vmul.f32 %v243, 1.442695
  %v245 = vpow.pop %v244
  %v246 = vadd.f32 %v245, 1.0
  %v247 = vrcp.pop %v246
  %v248 = vmul.f32 %v246, %v247
  %v249 = vsub.f32 1.0, %v248
  %v250 = vmul.f32 %v247, %v249
  %v251 = vadd.f32 %v247, %v250
  %vm252 = vweird.f32 %v246
  %vm253 = vweird.f32 %v247
  %vm254 = vmor %vm252, %vm253
  %v255 = vsel %vm254, %v247, %v251
  %v256 = vand.u32 2147483647, %v246
  %vm257 = vcmp.eq.f32.partialorder %v256, 8.507059e+37
  %v258 = vand.u32 %v246, 2147483648
  %v259 = vor.u32 1.1754944e-38, %v258
  %v260 = vsel %vm257, %v259, %v255
  %v261 = vmul.f32 1.0, %v260
  %v262 = vtanh.pop %v218
  %v263 = vmul.f32 %v261, %v139
  %265 = vrot.lane.b32.xlu0 %v262, 32
  %v266 = vpop.permute.xlu0 %265
  %v268 = vmul.f32 %v261, %v266
  %270 = vrot.lane.b32.xlu0 %v268, 32
  %v271 = vpop.permute.xlu0 %270
  %v273 = vadd.f32 %v263, %v271
  %v274 = vtanh.pop %v273
  %276 = vrot.lane.b32.xlu0 %v274, 32
  %v277 = vpop.permute.xlu0 %276
  %v279 = vmul.f32 %v261, %v277
  %v280 = vsel %vm242, 1, 0
  %281 = vset.pattern.permute.xlu0 0
  %282 = vperm.xlu0 %281, %v280
  %v283 = vpop.permute.xlu0 %282
  %vm284 = vcmp.eq.s32.totalorder %v283, 1
  %v285 = vsel %vm284, %v273, %v139
  %v286 = vsel %vm284, %v279, %v140
  %v287 = vsel %vm284, %v279, 0.0
  %vm288 = vcmp.gt.s32.totalorder %v27, 6
  %v289 = vxor.u32 %v241, 2147483648
  %v290 = vmul.f32 %v289, 1.442695
  %v291 = vpow.pop %v290
  %v292 = vadd.f32 %v291, 1.0
  %v293 = vrcp.pop %v292
  %v294 = vmul.f32 %v292, %v293
  %v295 = vsub.f32 1.0, %v294
  %v296 = vmul.f32 %v293, %v295
  %v297 = vadd.f32 %v293, %v296
  %vm298 = vweird.f32 %v292
  %vm299 = vweird.f32 %v293
  %vm300 = vmor %vm298, %vm299
  %v301 = vsel %vm300, %v293, %v297
  %v302 = vand.u32 2147483647, %v292
  %vm303 = vcmp.eq.f32.partialorder %v302, 8.507059e+37
  %v304 = vand.u32 %v292, 2147483648
  %v305 = vor.u32 1.1754944e-38, %v304
  %v306 = vsel %vm303, %v305, %v301
  %v307 = vmul.f32 1.0, %v306
  %v308 = vtanh.pop %v241
  %v309 = vmul.f32 %v307, %v184
  %311 = vrot.lane.b32.xlu0 %v308, 32
  %v312 = vpop.permute.xlu0 %311
  %v314 = vmul.f32 %v307, %v312
  %316 = vrot.lane.b32.xlu0 %v314, 32
  %v317 = vpop.permute.xlu0 %316
  %v319 = vadd.f32 %v309, %v317
  %v320 = vtanh.pop %v319
  %322 = vrot.lane.b32.xlu0 %v320, 32
  %v323 = vpop.permute.xlu0 %322
  %v325 = vmul.f32 %v307, %v323
  %v326 = vsel %vm288, 1, 0
  %327 = vset.pattern.permute.xlu0 0
  %328 = vperm.xlu0 %327, %v326
  %v329 = vpop.permute.xlu0 %328
  %vm330 = vcmp.eq.s32.totalorder %v329, 1
  %v331 = vsel %vm330, %v319, %v184
  %v332 = vsel %vm330, %v325, %v185
  %v333 = vsel %vm330, %v325, 0.0
  %335 = vrot.lane.b32.xlu0 %v287, 64
  %v336 = vpop.permute.xlu0 %335
  %338 = vst.msk [vmem:[#allocation2 + $0x8] sm:$0xff] %vm50, %v336
  %340 = vrot.lane.b32.xlu0 %v333, 64
  %v341 = vpop.permute.xlu0 %340
  %343 = vst.msk [vmem:[#allocation3 + $0x30] sm:$0xff] %vm50, %v341
  %s344 = scalar_lea.vmem %s1, 16
  %v345 = vld [vmem:[%s344] sm:$0xff]
  %v346 = vpack.c.bf16 %v286, %v286
  %348 = vrot.lane.b32.xlu0 %v346, 64
  %v349 = vpop.permute.xlu0 %348
  %v351 = vsel %vm50, %v349, 0
  %353 = vmatpush.bf16.msra.mxu0 0
  %354 = vmatpush.bf16.msra.mxu0 0
  %355 = vmatpush.bf16.msra.mxu0 0
  %356 = vmatpush.bf16.msra.mxu0 0
  %357 = vmatpush.bf16.msra.mxu0 0
  %358 = vmatpush.bf16.msra.mxu0 0
  %359 = vmatpush.bf16.msra.mxu0 %v47
  %360 = vmatpush.bf16.msra.mxu0 %v46
  %361 = vmatmul.bf16.gmra.mxu0 %v351
  %v362 = vpop.f32.mrf.mxu0
  %v363 = vadd.f32 0.0, %v362
  %v364 = vpop.f32.mrf.mxu0
  %365 = vdwg.mxu0
  %v366 = vadd.f32 %v345, %v363
  %s367 = scalar_lea.vmem %s2, 40
  %v368 = vld [vmem:[%s367] sm:$0xff]
  %v369 = vpack.c.bf16 %v332, %v332
  %371 = vrot.lane.b32.xlu0 %v369, 64
  %v372 = vpop.permute.xlu0 %371
  %v374 = vsel %vm50, %v372, 0
  %376 = vmatpush.bf16.msra.mxu0 0
  %377 = vmatpush.bf16.msra.mxu0 0
  %378 = vmatpush.bf16.msra.mxu0 0
  %379 = vmatpush.bf16.msra.mxu0 0
  %380 = vmatpush.bf16.msra.mxu0 0
  %381 = vmatpush.bf16.msra.mxu0 0
  %382 = vmatpush.bf16.msra.mxu0 %v79
  %383 = vmatpush.bf16.msra.mxu0 %v78
  %384 = vmatmul.bf16.gmra.mxu0 %v374
  %v385 = vpop.f32.mrf.mxu0
  %v386 = vadd.f32 0.0, %v385
  %v387 = vpop.f32.mrf.mxu0
  %388 = vdwg.mxu0
  %v389 = vadd.f32 %v368, %v386
  %vm390 = vcmp.gt.s32.totalorder %v27, 2
  %v391 = vxor.u32 %v366, 2147483648
  %v392 = vmul.f32 %v391, 1.442695
  %v393 = vpow.pop %v392
  %v394 = vadd.f32 %v393, 1.0
  %v395 = vrcp.pop %v394
  %v396 = vmul.f32 %v394, %v395
  %v397 = vsub.f32 1.0, %v396
  %v398 = vmul.f32 %v395, %v397
  %v399 = vadd.f32 %v395, %v398
  %vm400 = vweird.f32 %v394
  %vm401 = vweird.f32 %v395
  %vm402 = vmor %vm400, %vm401
  %v403 = vsel %vm402, %v395, %v399
  %v404 = vand.u32 2147483647, %v394
  %vm405 = vcmp.eq.f32.partialorder %v404, 8.507059e+37
  %v406 = vand.u32 %v394, 2147483648
  %v407 = vor.u32 1.1754944e-38, %v406
  %v408 = vsel %vm405, %v407, %v403
  %v409 = vmul.f32 1.0, %v408
  %v410 = vtanh.pop %v366
  %v411 = vmul.f32 %v409, %v285
  %413 = vrot.lane.b32.xlu0 %v410, 32
  %v414 = vpop.permute.xlu0 %413
  %v416 = vmul.f32 %v409, %v414
  %418 = vrot.lane.b32.xlu0 %v416, 32
  %v419 = vpop.permute.xlu0 %418
  %v421 = vadd.f32 %v411, %v419
  %v422 = vtanh.pop %v421
  %424 = vrot.lane.b32.xlu0 %v422, 32
  %v425 = vpop.permute.xlu0 %424
  %v427 = vmul.f32 %v409, %v425
  %v428 = vsel %vm390, 1, 0
  %429 = vset.pattern.permute.xlu0 0
  %430 = vperm.xlu0 %429, %v428
  %v431 = vpop.permute.xlu0 %430
  %vm432 = vcmp.eq.s32.totalorder %v431, 1
  %v433 = vsel %vm432, %v421, %v285
  %v434 = vsel %vm432, %v427, %v286
  %v435 = vsel %vm432, %v427, 0.0
  %vm436 = vcmp.gt.s32.totalorder %v27, 5
  %v437 = vxor.u32 %v389, 2147483648
  %v438 = vmul.f32 %v437, 1.442695
  %v439 = vpow.pop %v438
  %v440 = vadd.f32 %v439, 1.0
  %v441 = vrcp.pop %v440
  %v442 = vmul.f32 %v440, %v441
  %v443 = vsub.f32 1.0, %v442
  %v444 = vmul.f32 %v441, %v443
  %v445 = vadd.f32 %v441, %v444
  %vm446 = vweird.f32 %v440
  %vm447 = vweird.f32 %v441
  %vm448 = vmor %vm446, %vm447
  %v449 = vsel %vm448, %v441, %v445
  %v450 = vand.u32 2147483647, %v440
  %vm451 = vcmp.eq.f32.partialorder %v450, 8.507059e+37
  %v452 = vand.u32 %v440, 2147483648
  %v453 = vor.u32 1.1754944e-38, %v452
  %v454 = vsel %vm451, %v453, %v449
  %v455 = vmul.f32 1.0, %v454
  %v456 = vtanh.pop %v389
  %v457 = vmul.f32 %v455, %v331
  %459 = vrot.lane.b32.xlu0 %v456, 32
  %v460 = vpop.permute.xlu0 %459
  %v462 = vmul.f32 %v455, %v460
  %464 = vrot.lane.b32.xlu0 %v462, 32
  %v465 = vpop.permute.xlu0 %464
  %v467 = vadd.f32 %v457, %v465
  %v468 = vtanh.pop %v467
  %470 = vrot.lane.b32.xlu0 %v468, 32
  %v471 = vpop.permute.xlu0 %470
  %v473 = vmul.f32 %v455, %v471
  %v474 = vsel %vm436, 1, 0
  %475 = vset.pattern.permute.xlu0 0
  %476 = vperm.xlu0 %475, %v474
  %v477 = vpop.permute.xlu0 %476
  %vm478 = vcmp.eq.s32.totalorder %v477, 1
  %v479 = vsel %vm478, %v467, %v331
  %v480 = vsel %vm478, %v473, %v332
  %v481 = vsel %vm478, %v473, 0.0
  %483 = vrot.lane.b32.xlu0 %v435, 64
  %v484 = vpop.permute.xlu0 %483
  %486 = vst.msk [vmem:[#allocation2 + $0x10] sm:$0xff] %vm50, %v484
  %488 = vrot.lane.b32.xlu0 %v481, 64
  %v489 = vpop.permute.xlu0 %488
  %491 = vst.msk [vmem:[#allocation3 + $0x28] sm:$0xff] %vm50, %v489
  %s492 = scalar_lea.vmem %s1, 24
  %v493 = vld [vmem:[%s492] sm:$0xff]
  %v494 = vpack.c.bf16 %v434, %v434
  %496 = vrot.lane.b32.xlu0 %v494, 64
  %v497 = vpop.permute.xlu0 %496
  %v499 = vsel %vm50, %v497, 0
  %501 = vmatpush.bf16.msra.mxu0 0
  %502 = vmatpush.bf16.msra.mxu0 0
  %503 = vmatpush.bf16.msra.mxu0 0
  %504 = vmatpush.bf16.msra.mxu0 0
  %505 = vmatpush.bf16.msra.mxu0 0
  %506 = vmatpush.bf16.msra.mxu0 0
  %507 = vmatpush.bf16.msra.mxu0 %v47
  %508 = vmatpush.bf16.msra.mxu0 %v46
  %509 = vmatmul.bf16.gmra.mxu0 %v499
  %v510 = vpop.f32.mrf.mxu0
  %v511 = vadd.f32 0.0, %v510
  %v512 = vpop.f32.mrf.mxu0
  %513 = vdwg.mxu0
  %v514 = vadd.f32 %v493, %v511
  %s515 = scalar_lea.vmem %s2, 32
  %v516 = vld [vmem:[%s515] sm:$0xff]
  %v517 = vpack.c.bf16 %v480, %v480
  %519 = vrot.lane.b32.xlu0 %v517, 64
  %v520 = vpop.permute.xlu0 %519
  %v522 = vsel %vm50, %v520, 0
  %524 = vmatpush.bf16.msra.mxu0 0
  %525 = vmatpush.bf16.msra.mxu0 0
  %526 = vmatpush.bf16.msra.mxu0 0
  %527 = vmatpush.bf16.msra.mxu0 0
  %528 = vmatpush.bf16.msra.mxu0 0
  %529 = vmatpush.bf16.msra.mxu0 0
  %530 = vmatpush.bf16.msra.mxu0 %v79
  %531 = vmatpush.bf16.msra.mxu0 %v78
  %532 = vmatmul.bf16.gmra.mxu0 %v522
  %v533 = vpop.f32.mrf.mxu0
  %v534 = vadd.f32 0.0, %v533
  %v535 = vpop.f32.mrf.mxu0
  %536 = vdwg.mxu0
  %v537 = vadd.f32 %v516, %v534
  %vm538 = vcmp.gt.s32.totalorder %v27, 3
  %v539 = vxor.u32 %v514, 2147483648
  %v540 = vmul.f32 %v539, 1.442695
  %v541 = vpow.pop %v540
  %v542 = vadd.f32 %v541, 1.0
  %v543 = vrcp.pop %v542
  %v544 = vmul.f32 %v542, %v543
  %v545 = vsub.f32 1.0, %v544
  %v546 = vmul.f32 %v543, %v545
  %v547 = vadd.f32 %v543, %v546
  %vm548 = vweird.f32 %v542
  %vm549 = vweird.f32 %v543
  %vm550 = vmor %vm548, %vm549
  %v551 = vsel %vm550, %v543, %v547
  %v552 = vand.u32 2147483647, %v542
  %vm553 = vcmp.eq.f32.partialorder %v552, 8.507059e+37
  %v554 = vand.u32 %v542, 2147483648
  %v555 = vor.u32 1.1754944e-38, %v554
  %v556 = vsel %vm553, %v555, %v551
  %v557 = vmul.f32 1.0, %v556
  %v558 = vtanh.pop %v514
  %v559 = vmul.f32 %v557, %v433
  %561 = vrot.lane.b32.xlu0 %v558, 32
  %v562 = vpop.permute.xlu0 %561
  %v564 = vmul.f32 %v557, %v562
  %566 = vrot.lane.b32.xlu0 %v564, 32
  %v567 = vpop.permute.xlu0 %566
  %v569 = vadd.f32 %v559, %v567
  %v570 = vtanh.pop %v569
  %572 = vrot.lane.b32.xlu0 %v570, 32
  %v573 = vpop.permute.xlu0 %572
  %v575 = vmul.f32 %v557, %v573
  %v576 = vsel %vm538, 1, 0
  %577 = vset.pattern.permute.xlu0 0
  %578 = vperm.xlu0 %577, %v576
  %v579 = vpop.permute.xlu0 %578
  %vm580 = vcmp.eq.s32.totalorder %v579, 1
  %v581 = vsel %vm580, %v569, %v433
  %v582 = vsel %vm580, %v575, %v434
  %v583 = vsel %vm580, %v575, 0.0
  %vm584 = vcmp.gt.s32.totalorder %v27, 4
  %v585 = vxor.u32 %v537, 2147483648
  %v586 = vmul.f32 %v585, 1.442695
  %v587 = vpow.pop %v586
  %v588 = vadd.f32 %v587, 1.0
  %v589 = vrcp.pop %v588
  %v590 = vmul.f32 %v588, %v589
  %v591 = vsub.f32 1.0, %v590
  %v592 = vmul.f32 %v589, %v591
  %v593 = vadd.f32 %v589, %v592
  %vm594 = vweird.f32 %v588
  %vm595 = vweird.f32 %v589
  %vm596 = vmor %vm594, %vm595
  %v597 = vsel %vm596, %v589, %v593
  %v598 = vand.u32 2147483647, %v588
  %vm599 = vcmp.eq.f32.partialorder %v598, 8.507059e+37
  %v600 = vand.u32 %v588, 2147483648
  %v601 = vor.u32 1.1754944e-38, %v600
  %v602 = vsel %vm599, %v601, %v597
  %v603 = vmul.f32 1.0, %v602
  %v604 = vtanh.pop %v537
  %v605 = vmul.f32 %v603, %v479
  %607 = vrot.lane.b32.xlu0 %v604, 32
  %v608 = vpop.permute.xlu0 %607
  %v610 = vmul.f32 %v603, %v608
  %612 = vrot.lane.b32.xlu0 %v610, 32
  %v613 = vpop.permute.xlu0 %612
  %v615 = vadd.f32 %v605, %v613
  %v616 = vtanh.pop %v615
  %618 = vrot.lane.b32.xlu0 %v616, 32
  %v619 = vpop.permute.xlu0 %618
  %v621 = vmul.f32 %v603, %v619
  %v622 = vsel %vm584, 1, 0
  %623 = vset.pattern.permute.xlu0 0
  %624 = vperm.xlu0 %623, %v622
  %v625 = vpop.permute.xlu0 %624
  %vm626 = vcmp.eq.s32.totalorder %v625, 1
  %v627 = vsel %vm626, %v615, %v479
  %v628 = vsel %vm626, %v621, %v480
  %v629 = vsel %vm626, %v621, 0.0
  %631 = vrot.lane.b32.xlu0 %v583, 64
  %v632 = vpop.permute.xlu0 %631
  %634 = vst.msk [vmem:[#allocation2 + $0x18] sm:$0xff] %vm50, %v632
  %636 = vrot.lane.b32.xlu0 %v629, 64
  %v637 = vpop.permute.xlu0 %636
  %639 = vst.msk [vmem:[#allocation3 + $0x20] sm:$0xff] %vm50, %v637
  %s640 = scalar_lea.vmem %s1, 32
  %v641 = vld [vmem:[%s640] sm:$0xff]
  %v642 = vpack.c.bf16 %v582, %v582
  %644 = vrot.lane.b32.xlu0 %v642, 64
  %v645 = vpop.permute.xlu0 %644
  %v647 = vsel %vm50, %v645, 0
  %649 = vmatpush.bf16.msra.mxu0 0
  %650 = vmatpush.bf16.msra.mxu0 0
  %651 = vmatpush.bf16.msra.mxu0 0
  %652 = vmatpush.bf16.msra.mxu0 0
  %653 = vmatpush.bf16.msra.mxu0 0
  %654 = vmatpush.bf16.msra.mxu0 0
  %655 = vmatpush.bf16.msra.mxu0 %v47
  %656 = vmatpush.bf16.msra.mxu0 %v46
  %657 = vmatmul.bf16.gmra.mxu0 %v647
  %v658 = vpop.f32.mrf.mxu0
  %v659 = vadd.f32 0.0, %v658
  %v660 = vpop.f32.mrf.mxu0
  %661 = vdwg.mxu0
  %v662 = vadd.f32 %v641, %v659
  %s663 = scalar_lea.vmem %s2, 24
  %v664 = vld [vmem:[%s663] sm:$0xff]
  %v665 = vpack.c.bf16 %v628, %v628
  %667 = vrot.lane.b32.xlu0 %v665, 64
  %v668 = vpop.permute.xlu0 %667
  %v670 = vsel %vm50, %v668, 0
  %672 = vmatpush.bf16.msra.mxu0 0
  %673 = vmatpush.bf16.msra.mxu0 0
  %674 = vmatpush.bf16.msra.mxu0 0
  %675 = vmatpush.bf16.msra.mxu0 0
  %676 = vmatpush.bf16.msra.mxu0 0
  %677 = vmatpush.bf16.msra.mxu0 0
  %678 = vmatpush.bf16.msra.mxu0 %v79
  %679 = vmatpush.bf16.msra.mxu0 %v78
  %680 = vmatmul.bf16.gmra.mxu0 %v670
  %v681 = vpop.f32.mrf.mxu0
  %v682 = vadd.f32 0.0, %v681
  %v683 = vpop.f32.mrf.mxu0
  %684 = vdwg.mxu0
  %v685 = vadd.f32 %v664, %v682
  %v686 = vxor.u32 %v662, 2147483648
  %v687 = vmul.f32 %v686, 1.442695
  %v688 = vpow.pop %v687
  %v689 = vadd.f32 %v688, 1.0
  %v690 = vrcp.pop %v689
  %v691 = vmul.f32 %v689, %v690
  %v692 = vsub.f32 1.0, %v691
  %v693 = vmul.f32 %v690, %v692
  %v694 = vadd.f32 %v690, %v693
  %vm695 = vweird.f32 %v689
  %vm696 = vweird.f32 %v690
  %vm697 = vmor %vm695, %vm696
  %v698 = vsel %vm697, %v690, %v694
  %v699 = vand.u32 2147483647, %v689
  %vm700 = vcmp.eq.f32.partialorder %v699, 8.507059e+37
  %v701 = vand.u32 %v689, 2147483648
  %v702 = vor.u32 1.1754944e-38, %v701
  %v703 = vsel %vm700, %v702, %v698
  %v704 = vmul.f32 1.0, %v703
  %v705 = vtanh.pop %v662
  %v706 = vmul.f32 %v704, %v581
  %708 = vrot.lane.b32.xlu0 %v705, 32
  %v709 = vpop.permute.xlu0 %708
  %v711 = vmul.f32 %v704, %v709
  %713 = vrot.lane.b32.xlu0 %v711, 32
  %v714 = vpop.permute.xlu0 %713
  %v716 = vadd.f32 %v706, %v714
  %v717 = vtanh.pop %v716
  %719 = vrot.lane.b32.xlu0 %v717, 32
  %v720 = vpop.permute.xlu0 %719
  %v722 = vmul.f32 %v704, %v720
  %v723 = vsel %vm626, %v716, %v581
  %v724 = vsel %vm626, %v722, %v582
  %v725 = vsel %vm626, %v722, 0.0
  %v726 = vxor.u32 %v685, 2147483648
  %v727 = vmul.f32 %v726, 1.442695
  %v728 = vpow.pop %v727
  %v729 = vadd.f32 %v728, 1.0
  %v730 = vrcp.pop %v729
  %v731 = vmul.f32 %v729, %v730
  %v732 = vsub.f32 1.0, %v731
  %v733 = vmul.f32 %v730, %v732
  %v734 = vadd.f32 %v730, %v733
  %vm735 = vweird.f32 %v729
  %vm736 = vweird.f32 %v730
  %vm737 = vmor %vm735, %vm736
  %v738 = vsel %vm737, %v730, %v734
  %v739 = vand.u32 2147483647, %v729
  %vm740 = vcmp.eq.f32.partialorder %v739, 8.507059e+37
  %v741 = vand.u32 %v729, 2147483648
  %v742 = vor.u32 1.1754944e-38, %v741
  %v743 = vsel %vm740, %v742, %v738
  %v744 = vmul.f32 1.0, %v743
  %v745 = vtanh.pop %v685
  %v746 = vmul.f32 %v744, %v627
  %748 = vrot.lane.b32.xlu0 %v745, 32
  %v749 = vpop.permute.xlu0 %748
  %v751 = vmul.f32 %v744, %v749
  %753 = vrot.lane.b32.xlu0 %v751, 32
  %v754 = vpop.permute.xlu0 %753
  %v756 = vadd.f32 %v746, %v754
  %v757 = vtanh.pop %v756
  %759 = vrot.lane.b32.xlu0 %v757, 32
  %v760 = vpop.permute.xlu0 %759
  %v762 = vmul.f32 %v744, %v760
  %v763 = vsel %vm580, %v756, %v627
  %v764 = vsel %vm580, %v762, %v628
  %v765 = vsel %vm580, %v762, 0.0
  %767 = vrot.lane.b32.xlu0 %v725, 64
  %v768 = vpop.permute.xlu0 %767
  %770 = vst.msk [vmem:[#allocation2 + $0x20] sm:$0xff] %vm50, %v768
  %772 = vrot.lane.b32.xlu0 %v765, 64
  %v773 = vpop.permute.xlu0 %772
  %775 = vst.msk [vmem:[#allocation3 + $0x18] sm:$0xff] %vm50, %v773
  %s776 = scalar_lea.vmem %s1, 40
  %v777 = vld [vmem:[%s776] sm:$0xff]
  %v778 = vpack.c.bf16 %v724, %v724
  %780 = vrot.lane.b32.xlu0 %v778, 64
  %v781 = vpop.permute.xlu0 %780
  %v783 = vsel %vm50, %v781, 0
  %785 = vmatpush.bf16.msra.mxu0 0
  %786 = vmatpush.bf16.msra.mxu0 0
  %787 = vmatpush.bf16.msra.mxu0 0
  %788 = vmatpush.bf16.msra.mxu0 0
  %789 = vmatpush.bf16.msra.mxu0 0
  %790 = vmatpush.bf16.msra.mxu0 0
  %791 = vmatpush.bf16.msra.mxu0 %v47
  %792 = vmatpush.bf16.msra.mxu0 %v46
  %793 = vmatmul.bf16.gmra.mxu0 %v783
  %v794 = vpop.f32.mrf.mxu0
  %v795 = vadd.f32 0.0, %v794
  %v796 = vpop.f32.mrf.mxu0
  %797 = vdwg.mxu0
  %v798 = vadd.f32 %v777, %v795
  %s799 = scalar_lea.vmem %s2, 16
  %v800 = vld [vmem:[%s799] sm:$0xff]
  %v801 = vpack.c.bf16 %v764, %v764
  %803 = vrot.lane.b32.xlu0 %v801, 64
  %v804 = vpop.permute.xlu0 %803
  %v806 = vsel %vm50, %v804, 0
  %808 = vmatpush.bf16.msra.mxu0 0
  %809 = vmatpush.bf16.msra.mxu0 0
  %810 = vmatpush.bf16.msra.mxu0 0
  %811 = vmatpush.bf16.msra.mxu0 0
  %812 = vmatpush.bf16.msra.mxu0 0
  %813 = vmatpush.bf16.msra.mxu0 0
  %814 = vmatpush.bf16.msra.mxu0 %v79
  %815 = vmatpush.bf16.msra.mxu0 %v78
  %816 = vmatmul.bf16.gmra.mxu0 %v806
  %v817 = vpop.f32.mrf.mxu0
  %v818 = vadd.f32 0.0, %v817
  %v819 = vpop.f32.mrf.mxu0
  %820 = vdwg.mxu0
  %v821 = vadd.f32 %v800, %v818
  %v822 = vxor.u32 %v798, 2147483648
  %v823 = vmul.f32 %v822, 1.442695
  %v824 = vpow.pop %v823
  %v825 = vadd.f32 %v824, 1.0
  %v826 = vrcp.pop %v825
  %v827 = vmul.f32 %v825, %v826
  %v828 = vsub.f32 1.0, %v827
  %v829 = vmul.f32 %v826, %v828
  %v830 = vadd.f32 %v826, %v829
  %vm831 = vweird.f32 %v825
  %vm832 = vweird.f32 %v826
  %vm833 = vmor %vm831, %vm832
  %v834 = vsel %vm833, %v826, %v830
  %v835 = vand.u32 2147483647, %v825
  %vm836 = vcmp.eq.f32.partialorder %v835, 8.507059e+37
  %v837 = vand.u32 %v825, 2147483648
  %v838 = vor.u32 1.1754944e-38, %v837
  %v839 = vsel %vm836, %v838, %v834
  %v840 = vmul.f32 1.0, %v839
  %v841 = vtanh.pop %v798
  %v842 = vmul.f32 %v840, %v723
  %844 = vrot.lane.b32.xlu0 %v841, 32
  %v845 = vpop.permute.xlu0 %844
  %v847 = vmul.f32 %v840, %v845
  %849 = vrot.lane.b32.xlu0 %v847, 32
  %v850 = vpop.permute.xlu0 %849
  %v852 = vadd.f32 %v842, %v850
  %v853 = vtanh.pop %v852
  %855 = vrot.lane.b32.xlu0 %v853, 32
  %v856 = vpop.permute.xlu0 %855
  %v858 = vmul.f32 %v840, %v856
  %v859 = vsel %vm478, %v852, %v723
  %v860 = vsel %vm478, %v858, %v724
  %v861 = vsel %vm478, %v858, 0.0
  %v862 = vxor.u32 %v821, 2147483648
  %v863 = vmul.f32 %v862, 1.442695
  %v864 = vpow.pop %v863
  %v865 = vadd.f32 %v864, 1.0
  %v866 = vrcp.pop %v865
  %v867 = vmul.f32 %v865, %v866
  %v868 = vsub.f32 1.0, %v867
  %v869 = vmul.f32 %v866, %v868
  %v870 = vadd.f32 %v866, %v869
  %vm871 = vweird.f32 %v865
  %vm872 = vweird.f32 %v866
  %vm873 = vmor %vm871, %vm872
  %v874 = vsel %vm873, %v866, %v870
  %v875 = vand.u32 2147483647, %v865
  %vm876 = vcmp.eq.f32.partialorder %v875, 8.507059e+37
  %v877 = vand.u32 %v865, 2147483648
  %v878 = vor.u32 1.1754944e-38, %v877
  %v879 = vsel %vm876, %v878, %v874
  %v880 = vmul.f32 1.0, %v879
  %v881 = vtanh.pop %v821
  %v882 = vmul.f32 %v880, %v763
  %884 = vrot.lane.b32.xlu0 %v881, 32
  %v885 = vpop.permute.xlu0 %884
  %v887 = vmul.f32 %v880, %v885
  %889 = vrot.lane.b32.xlu0 %v887, 32
  %v890 = vpop.permute.xlu0 %889
  %v892 = vadd.f32 %v882, %v890
  %v893 = vtanh.pop %v892
  %895 = vrot.lane.b32.xlu0 %v893, 32
  %v896 = vpop.permute.xlu0 %895
  %v898 = vmul.f32 %v880, %v896
  %v899 = vsel %vm432, %v892, %v763
  %v900 = vsel %vm432, %v898, %v764
  %v901 = vsel %vm432, %v898, 0.0
  %903 = vrot.lane.b32.xlu0 %v861, 64
  %v904 = vpop.permute.xlu0 %903
  %906 = vst.msk [vmem:[#allocation2 + $0x28] sm:$0xff] %vm50, %v904
  %908 = vrot.lane.b32.xlu0 %v901, 64
  %v909 = vpop.permute.xlu0 %908
  %911 = vst.msk [vmem:[#allocation3 + $0x10] sm:$0xff] %vm50, %v909
  %s912 = scalar_lea.vmem %s1, 48
  %v913 = vld [vmem:[%s912] sm:$0xff]
  %v914 = vpack.c.bf16 %v860, %v860
  %916 = vrot.lane.b32.xlu0 %v914, 64
  %v917 = vpop.permute.xlu0 %916
  %v919 = vsel %vm50, %v917, 0
  %921 = vmatpush.bf16.msra.mxu0 0
  %922 = vmatpush.bf16.msra.mxu0 0
  %923 = vmatpush.bf16.msra.mxu0 0
  %924 = vmatpush.bf16.msra.mxu0 0
  %925 = vmatpush.bf16.msra.mxu0 0
  %926 = vmatpush.bf16.msra.mxu0 0
  %927 = vmatpush.bf16.msra.mxu0 %v47
  %928 = vmatpush.bf16.msra.mxu0 %v46
  %929 = vmatmul.bf16.gmra.mxu0 %v919
  %v930 = vpop.f32.mrf.mxu0
  %v931 = vadd.f32 0.0, %v930
  %v932 = vpop.f32.mrf.mxu0
  %933 = vdwg.mxu0
  %v934 = vadd.f32 %v913, %v931
  %s935 = scalar_lea.vmem %s2, 8
  %v936 = vld [vmem:[%s935] sm:$0xff]
  %v937 = vpack.c.bf16 %v900, %v900
  %939 = vrot.lane.b32.xlu0 %v937, 64
  %v940 = vpop.permute.xlu0 %939
  %v942 = vsel %vm50, %v940, 0
  %944 = vmatpush.bf16.msra.mxu0 0
  %945 = vmatpush.bf16.msra.mxu0 0
  %946 = vmatpush.bf16.msra.mxu0 0
  %947 = vmatpush.bf16.msra.mxu0 0
  %948 = vmatpush.bf16.msra.mxu0 0
  %949 = vmatpush.bf16.msra.mxu0 0
  %950 = vmatpush.bf16.msra.mxu0 %v79
  %951 = vmatpush.bf16.msra.mxu0 %v78
  %952 = vmatmul.bf16.gmra.mxu0 %v942
  %v953 = vpop.f32.mrf.mxu0
  %v954 = vadd.f32 0.0, %v953
  %v955 = vpop.f32.mrf.mxu0
  %956 = vdwg.mxu0
  %v957 = vadd.f32 %v936, %v954
  %v958 = vxor.u32 %v934, 2147483648
  %v959 = vmul.f32 %v958, 1.442695
  %v960 = vpow.pop %v959
  %v961 = vadd.f32 %v960, 1.0
  %v962 = vrcp.pop %v961
  %v963 = vmul.f32 %v961, %v962
  %v964 = vsub.f32 1.0, %v963
  %v965 = vmul.f32 %v962, %v964
  %v966 = vadd.f32 %v962, %v965
  %vm967 = vweird.f32 %v961
  %vm968 = vweird.f32 %v962
  %vm969 = vmor %vm967, %vm968
  %v970 = vsel %vm969, %v962, %v966
  %v971 = vand.u32 2147483647, %v961
  %vm972 = vcmp.eq.f32.partialorder %v971, 8.507059e+37
  %v973 = vand.u32 %v961, 2147483648
  %v974 = vor.u32 1.1754944e-38, %v973
  %v975 = vsel %vm972, %v974, %v970
  %v976 = vmul.f32 1.0, %v975
  %v977 = vtanh.pop %v934
  %v978 = vmul.f32 %v976, %v859
  %980 = vrot.lane.b32.xlu0 %v977, 32
  %v981 = vpop.permute.xlu0 %980
  %v983 = vmul.f32 %v976, %v981
  %985 = vrot.lane.b32.xlu0 %v983, 32
  %v986 = vpop.permute.xlu0 %985
  %v988 = vadd.f32 %v978, %v986
  %v989 = vtanh.pop %v988
  %991 = vrot.lane.b32.xlu0 %v989, 32
  %v992 = vpop.permute.xlu0 %991
  %v994 = vmul.f32 %v976, %v992
  %v995 = vsel %vm330, %v988, %v859
  %v996 = vsel %vm330, %v994, %v860
  %v997 = vsel %vm330, %v994, 0.0
  %v998 = vxor.u32 %v957, 2147483648
  %v999 = vmul.f32 %v998, 1.442695
  %v1000 = vpow.pop %v999
  %v1001 = vadd.f32 %v1000, 1.0
  %v1002 = vrcp.pop %v1001
  %v1003 = vmul.f32 %v1001, %v1002
  %v1004 = vsub.f32 1.0, %v1003
  %v1005 = vmul.f32 %v1002, %v1004
  %v1006 = vadd.f32 %v1002, %v1005
  %vm1007 = vweird.f32 %v1001
  %vm1008 = vweird.f32 %v1002
  %vm1009 = vmor %vm1007, %vm1008
  %v1010 = vsel %vm1009, %v1002, %v1006
  %v1011 = vand.u32 2147483647, %v1001
  %vm1012 = vcmp.eq.f32.partialorder %v1011, 8.507059e+37
  %v1013 = vand.u32 %v1001, 2147483648
  %v1014 = vor.u32 1.1754944e-38, %v1013
  %v1015 = vsel %vm1012, %v1014, %v1010
  %v1016 = vmul.f32 1.0, %v1015
  %v1017 = vtanh.pop %v957
  %v1018 = vmul.f32 %v1016, %v899
  %1020 = vrot.lane.b32.xlu0 %v1017, 32
  %v1021 = vpop.permute.xlu0 %1020
  %v1023 = vmul.f32 %v1016, %v1021
  %1025 = vrot.lane.b32.xlu0 %v1023, 32
  %v1026 = vpop.permute.xlu0 %1025
  %v1028 = vadd.f32 %v1018, %v1026
  %v1029 = vtanh.pop %v1028
  %1031 = vrot.lane.b32.xlu0 %v1029, 32
  %v1032 = vpop.permute.xlu0 %1031
  %v1034 = vmul.f32 %v1016, %v1032
  %v1035 = vsel %vm284, %v1028, %v899
  %v1036 = vsel %vm284, %v1034, %v900
  %v1037 = vsel %vm284, %v1034, 0.0
  %1039 = vrot.lane.b32.xlu0 %v997, 64
  %v1040 = vpop.permute.xlu0 %1039
  %1042 = vst.msk [vmem:[#allocation2 + $0x30] sm:$0xff] %vm50, %v1040
  %1044 = vrot.lane.b32.xlu0 %v1037, 64
  %v1045 = vpop.permute.xlu0 %1044
  %1047 = vst.msk [vmem:[#allocation3 + $0x8] sm:$0xff] %vm50, %v1045
  %s1048 = scalar_lea.vmem %s1, 56
  %v1049 = vld [vmem:[%s1048] sm:$0xff]
  %v1050 = vpack.c.bf16 %v996, %v996
  %1052 = vrot.lane.b32.xlu0 %v1050, 64
  %v1053 = vpop.permute.xlu0 %1052
  %v1055 = vsel %vm50, %v1053, 0
  %1057 = vmatpush.bf16.msra.mxu0 0
  %1058 = vmatpush.bf16.msra.mxu0 0
  %1059 = vmatpush.bf16.msra.mxu0 0
  %1060 = vmatpush.bf16.msra.mxu0 0
  %1061 = vmatpush.bf16.msra.mxu0 0
  %1062 = vmatpush.bf16.msra.mxu0 0
  %1063 = vmatpush.bf16.msra.mxu0 %v47
  %1064 = vmatpush.bf16.msra.mxu0 %v46
  %1065 = vmatmul.bf16.gmra.mxu0 %v1055
  %v1066 = vpop.f32.mrf.mxu0
  %v1067 = vadd.f32 0.0, %v1066
  %v1068 = vpop.f32.mrf.mxu0
  %1069 = vdwg.mxu0
  %v1070 = vadd.f32 %v1049, %v1067
  %v1071 = vld [vmem:[%s2] sm:$0xff]
  %v1072 = vpack.c.bf16 %v1036, %v1036
  %1074 = vrot.lane.b32.xlu0 %v1072, 64
  %v1075 = vpop.permute.xlu0 %1074
  %v1077 = vsel %vm50, %v1075, 0
  %1079 = vmatpush.bf16.msra.mxu0 0
  %1080 = vmatpush.bf16.msra.mxu0 0
  %1081 = vmatpush.bf16.msra.mxu0 0
  %1082 = vmatpush.bf16.msra.mxu0 0
  %1083 = vmatpush.bf16.msra.mxu0 0
  %1084 = vmatpush.bf16.msra.mxu0 0
  %1085 = vmatpush.bf16.msra.mxu0 %v79
  %1086 = vmatpush.bf16.msra.mxu0 %v78
  %1087 = vmatmul.bf16.gmra.mxu0 %v1077
  %v1088 = vpop.f32.mrf.mxu0
  %v1089 = vadd.f32 0.0, %v1088
  %v1090 = vpop.f32.mrf.mxu0
  %1091 = vdwg.mxu0
  %v1092 = vadd.f32 %v1071, %v1089
  %v1093 = vxor.u32 %v1070, 2147483648
  %v1094 = vmul.f32 %v1093, 1.442695
  %v1095 = vpow.pop %v1094
  %v1096 = vadd.f32 %v1095, 1.0
  %v1097 = vrcp.pop %v1096
  %v1098 = vmul.f32 %v1096, %v1097
  %v1099 = vsub.f32 1.0, %v1098
  %v1100 = vmul.f32 %v1097, %v1099
  %v1101 = vadd.f32 %v1097, %v1100
  %vm1102 = vweird.f32 %v1096
  %vm1103 = vweird.f32 %v1097
  %vm1104 = vmor %vm1102, %vm1103
  %v1105 = vsel %vm1104, %v1097, %v1101
  %v1106 = vand.u32 2147483647, %v1096
  %vm1107 = vcmp.eq.f32.partialorder %v1106, 8.507059e+37
  %v1108 = vand.u32 %v1096, 2147483648
  %v1109 = vor.u32 1.1754944e-38, %v1108
  %v1110 = vsel %vm1107, %v1109, %v1105
  %v1111 = vmul.f32 1.0, %v1110
  %v1112 = vtanh.pop %v1070
  %v1113 = vmul.f32 %v1111, %v995
  %1115 = vrot.lane.b32.xlu0 %v1112, 32
  %v1116 = vpop.permute.xlu0 %1115
  %v1118 = vmul.f32 %v1111, %v1116
  %1120 = vrot.lane.b32.xlu0 %v1118, 32
  %v1121 = vpop.permute.xlu0 %1120
  %v1123 = vadd.f32 %v1113, %v1121
  %v1124 = vtanh.pop %v1123
  %1126 = vrot.lane.b32.xlu0 %v1124, 32
  %v1127 = vpop.permute.xlu0 %1126
  %v1129 = vmul.f32 %v1111, %v1127
  %v1130 = vsel %vm183, %v1129, 0.0
  %v1131 = vxor.u32 %v1092, 2147483648
  %v1132 = vmul.f32 %v1131, 1.442695
  %v1133 = vpow.pop %v1132
  %v1134 = vadd.f32 %v1133, 1.0
  %v1135 = vrcp.pop %v1134
  %v1136 = vmul.f32 %v1134, %v1135
  %v1137 = vsub.f32 1.0, %v1136
  %v1138 = vmul.f32 %v1135, %v1137
  %v1139 = vadd.f32 %v1135, %v1138
  %vm1140 = vweird.f32 %v1134
  %vm1141 = vweird.f32 %v1135
  %vm1142 = vmor %vm1140, %vm1141
  %v1143 = vsel %vm1142, %v1135, %v1139
  %v1144 = vand.u32 2147483647, %v1134
  %vm1145 = vcmp.eq.f32.partialorder %v1144, 8.507059e+37
  %v1146 = vand.u32 %v1134, 2147483648
  %v1147 = vor.u32 1.1754944e-38, %v1146
  %v1148 = vsel %vm1145, %v1147, %v1143
  %v1149 = vmul.f32 1.0, %v1148
  %v1150 = vtanh.pop %v1092
  %v1151 = vmul.f32 %v1149, %v1035
  %1153 = vrot.lane.b32.xlu0 %v1150, 32
  %v1154 = vpop.permute.xlu0 %1153
  %v1156 = vmul.f32 %v1149, %v1154
  %1158 = vrot.lane.b32.xlu0 %v1156, 32
  %v1159 = vpop.permute.xlu0 %1158
  %v1161 = vadd.f32 %v1151, %v1159
  %v1162 = vtanh.pop %v1161
  %1164 = vrot.lane.b32.xlu0 %v1162, 32
  %v1165 = vpop.permute.xlu0 %1164
  %v1167 = vmul.f32 %v1149, %v1165
  %v1168 = vsel %vm138, %v1167, 0.0
  %1170 = vrot.lane.b32.xlu0 %v1130, 64
  %v1171 = vpop.permute.xlu0 %1170
  %1173 = vst.msk [vmem:[#allocation2 + $0x38] sm:$0xff] %vm50, %v1171
  %1175 = vrot.lane.b32.xlu0 %v1168, 64
  %v1176 = vpop.permute.xlu0 %1175
  %1178 = vst.msk [vmem:[#allocation3] sm:$0xff] %vm50, %v1176
  %v1179 = vld [vmem:[#allocation2] sm:$0xff]
  %v1180 = vld [vmem:[#allocation2 + $0x8] sm:$0xff]
  %v1181 = vld [vmem:[#allocation2 + $0x10] sm:$0xff]
  %v1182 = vld [vmem:[#allocation2 + $0x18] sm:$0xff]
  %v1183 = vld [vmem:[#allocation2 + $0x20] sm:$0xff]
  %v1184 = vld [vmem:[#allocation2 + $0x28] sm:$0xff]
  %v1185 = vld [vmem:[#allocation2 + $0x30] sm:$0xff]
  %v1186 = vld [vmem:[#allocation2 + $0x38] sm:$0xff]
  %v1187 = vld [vmem:[#allocation3] sm:$0xff]
  %v1188 = vld [vmem:[#allocation3 + $0x8] sm:$0xff]
  %v1189 = vld [vmem:[#allocation3 + $0x10] sm:$0xff]
  %v1190 = vld [vmem:[#allocation3 + $0x18] sm:$0xff]
  %v1191 = vld [vmem:[#allocation3 + $0x20] sm:$0xff]
  %v1192 = vld [vmem:[#allocation3 + $0x28] sm:$0xff]
  %v1193 = vld [vmem:[#allocation3 + $0x30] sm:$0xff]
  %v1194 = vld [vmem:[#allocation3 + $0x38] sm:$0xff]
  %v1195 = vld [vmem:[%s4] sm:$0xff]
  %v1196 = vld [vmem:[%s4 + $0x8] sm:$0xff]
  %v1197 = vld [vmem:[%s4 + $0x10] sm:$0xff]
  %v1198 = vld [vmem:[%s4 + $0x18] sm:$0xff]
  %v1199 = vld [vmem:[%s4 + $0x20] sm:$0xff]
  %v1200 = vld [vmem:[%s4 + $0x28] sm:$0xff]
  %v1201 = vld [vmem:[%s4 + $0x30] sm:$0xff]
  %v1202 = vld [vmem:[%s4 + $0x38] sm:$0xff]
  %s1203 = scalar_lea.vmem %s4, 64
  %v1204 = vld [vmem:[%s1203] sm:$0xff]
  %v1205 = vld [vmem:[%s1203 + $0x8] sm:$0xff]
  %v1206 = vld [vmem:[%s1203 + $0x10] sm:$0xff]
  %v1207 = vld [vmem:[%s1203 + $0x18] sm:$0xff]
  %v1208 = vld [vmem:[%s1203 + $0x20] sm:$0xff]
  %v1209 = vld [vmem:[%s1203 + $0x28] sm:$0xff]
  %v1210 = vld [vmem:[%s1203 + $0x30] sm:$0xff]
  %v1211 = vld [vmem:[%s1203 + $0x38] sm:$0xff]
  %v1213 = vsel %vm50, %v1187, 0
  %v1216 = vsel %vm50, %v1188, 0
  %v1219 = vsel %vm50, %v1189, 0
  %v1222 = vsel %vm50, %v1190, 0
  %v1225 = vsel %vm50, %v1191, 0
  %v1228 = vsel %vm50, %v1192, 0
  %v1231 = vsel %vm50, %v1193, 0
  %v1234 = vsel %vm50, %v1194, 0
  %1236 = vmatpush.msra.mxu0 0.0
  %1237 = vmatpush.msra.mxu0 0.0
  %1238 = vmatpush.msra.mxu0 0.0
  %1239 = vmatpush.msra.mxu0 0.0
  %1240 = vmatpush.msra.mxu0 0.0
  %1241 = vmatpush.msra.mxu0 0.0
  %1242 = vmatpush.msra.mxu0 0.0
  %1243 = vmatpush.msra.mxu0 0.0
  %1244 = vmatpush.msra.mxu0 0.0
  %1245 = vmatpush.msra.mxu0 0.0
  %1246 = vmatpush.msra.mxu0 0.0
  %1247 = vmatpush.msra.mxu0 0.0
  %1248 = vmatpush.msra.mxu0 %v1202
  %1249 = vmatpush.msra.mxu0 %v1201
  %1250 = vmatpush.msra.mxu0 %v1200
  %1251 = vmatpush.msra.mxu0 %v1199
  %1252 = vmatmul.f32.gmra.mxu0 %v1213
  %v1253 = vpop.f32.mrf.mxu0
  %v1254 = vadd.f32 0.0, %v1253
  %1255 = vmatmul.f32.gmra.mxu0 %v1216
  %v1256 = vpop.f32.mrf.mxu0
  %v1257 = vadd.f32 0.0, %v1256
  %1258 = vmatmul.f32.gmra.mxu0 %v1219
  %v1259 = vpop.f32.mrf.mxu0
  %v1260 = vadd.f32 0.0, %v1259
  %1261 = vmatmul.f32.gmra.mxu0 %v1222
  %v1262 = vpop.f32.mrf.mxu0
  %v1263 = vadd.f32 0.0, %v1262
  %1264 = vmatmul.f32.gmra.mxu0 %v1225
  %v1265 = vpop.f32.mrf.mxu0
  %v1266 = vadd.f32 0.0, %v1265
  %1267 = vmatmul.f32.gmra.mxu0 %v1228
  %v1268 = vpop.f32.mrf.mxu0
  %v1269 = vadd.f32 0.0, %v1268
  %1270 = vmatmul.f32.gmra.mxu0 %v1231
  %v1271 = vpop.f32.mrf.mxu0
  %v1272 = vadd.f32 0.0, %v1271
  %1273 = vmatmul.f32.gmra.mxu0 %v1234
  %v1274 = vpop.f32.mrf.mxu0
  %v1275 = vadd.f32 0.0, %v1274
  %1276 = vdwg.mxu0
  %v1278 = vsel %vm50, %v1179, 0
  %v1281 = vsel %vm50, %v1180, 0
  %v1284 = vsel %vm50, %v1181, 0
  %v1287 = vsel %vm50, %v1182, 0
  %v1290 = vsel %vm50, %v1183, 0
  %v1293 = vsel %vm50, %v1184, 0
  %v1296 = vsel %vm50, %v1185, 0
  %v1299 = vsel %vm50, %v1186, 0
  %1301 = vmatpush.msra.mxu0 0.0
  %1302 = vmatpush.msra.mxu0 0.0
  %1303 = vmatpush.msra.mxu0 0.0
  %1304 = vmatpush.msra.mxu0 0.0
  %1305 = vmatpush.msra.mxu0 0.0
  %1306 = vmatpush.msra.mxu0 0.0
  %1307 = vmatpush.msra.mxu0 0.0
  %1308 = vmatpush.msra.mxu0 0.0
  %1309 = vmatpush.msra.mxu0 0.0
  %1310 = vmatpush.msra.mxu0 0.0
  %1311 = vmatpush.msra.mxu0 0.0
  %1312 = vmatpush.msra.mxu0 0.0
  %1313 = vmatpush.msra.mxu0 %v1198
  %1314 = vmatpush.msra.mxu0 %v1197
  %1315 = vmatpush.msra.mxu0 %v1196
  %1316 = vmatpush.msra.mxu0 %v1195
  %1317 = vmatmul.f32.gmra.mxu0 %v1278
  %v1318 = vpop.f32.mrf.mxu0
  %v1319 = vadd.f32 %v1254, %v1318
  %1320 = vmatmul.f32.gmra.mxu0 %v1281
  %v1321 = vpop.f32.mrf.mxu0
  %v1322 = vadd.f32 %v1257, %v1321
  %1323 = vmatmul.f32.gmra.mxu0 %v1284
  %v1324 = vpop.f32.mrf.mxu0
  %v1325 = vadd.f32 %v1260, %v1324
  %1326 = vmatmul.f32.gmra.mxu0 %v1287
  %v1327 = vpop.f32.mrf.mxu0
  %v1328 = vadd.f32 %v1263, %v1327
  %1329 = vmatmul.f32.gmra.mxu0 %v1290
  %v1330 = vpop.f32.mrf.mxu0
  %v1331 = vadd.f32 %v1266, %v1330
  %1332 = vmatmul.f32.gmra.mxu0 %v1293
  %v1333 = vpop.f32.mrf.mxu0
  %v1334 = vadd.f32 %v1269, %v1333
  %1335 = vmatmul.f32.gmra.mxu0 %v1296
  %v1336 = vpop.f32.mrf.mxu0
  %v1337 = vadd.f32 %v1272, %v1336
  %1338 = vmatmul.f32.gmra.mxu0 %v1299
  %v1339 = vpop.f32.mrf.mxu0
  %v1340 = vadd.f32 %v1275, %v1339
  %1341 = vdwg.mxu0
  %v1342 = vld [vmem:[%s5] sm:$0x1]
  %v1344 = vperm.slane %v1342, 0
  %v1346 = vadd.f32 %v1319, %v1344
  %v1347 = vadd.f32 %v1322, %v1344
  %v1348 = vadd.f32 %v1325, %v1344
  %v1349 = vadd.f32 %v1328, %v1344
  %v1350 = vadd.f32 %v1331, %v1344
  %v1351 = vadd.f32 %v1334, %v1344
  %v1352 = vadd.f32 %v1337, %v1344
  %v1353 = vadd.f32 %v1340, %v1344
  %1354 = vmatpush.msra.mxu0 0.0
  %1355 = vmatpush.msra.mxu0 0.0
  %1356 = vmatpush.msra.mxu0 0.0
  %1357 = vmatpush.msra.mxu0 0.0
  %1358 = vmatpush.msra.mxu0 0.0
  %1359 = vmatpush.msra.mxu0 0.0
  %1360 = vmatpush.msra.mxu0 0.0
  %1361 = vmatpush.msra.mxu0 0.0
  %1362 = vmatpush.msra.mxu0 0.0
  %1363 = vmatpush.msra.mxu0 0.0
  %1364 = vmatpush.msra.mxu0 0.0
  %1365 = vmatpush.msra.mxu0 0.0
  %1366 = vmatpush.msra.mxu0 %v1211
  %1367 = vmatpush.msra.mxu0 %v1210
  %1368 = vmatpush.msra.mxu0 %v1209
  %1369 = vmatpush.msra.mxu0 %v1208
  %1370 = vmatmul.f32.gmra.mxu0 %v1213
  %v1371 = vpop.f32.mrf.mxu0
  %v1372 = vadd.f32 0.0, %v1371
  %1373 = vmatmul.f32.gmra.mxu0 %v1216
  %v1374 = vpop.f32.mrf.mxu0
  %v1375 = vadd.f32 0.0, %v1374
  %1376 = vmatmul.f32.gmra.mxu0 %v1219
  %v1377 = vpop.f32.mrf.mxu0
  %v1378 = vadd.f32 0.0, %v1377
  %1379 = vmatmul.f32.gmra.mxu0 %v1222
  %v1380 = vpop.f32.mrf.mxu0
  %v1381 = vadd.f32 0.0, %v1380
  %1382 = vmatmul.f32.gmra.mxu0 %v1225
  %v1383 = vpop.f32.mrf.mxu0
  %v1384 = vadd.f32 0.0, %v1383
  %1385 = vmatmul.f32.gmra.mxu0 %v1228
  %v1386 = vpop.f32.mrf.mxu0
  %v1387 = vadd.f32 0.0, %v1386
  %1388 = vmatmul.f32.gmra.mxu0 %v1231
  %v1389 = vpop.f32.mrf.mxu0
  %v1390 = vadd.f32 0.0, %v1389
  %1391 = vmatmul.f32.gmra.mxu0 %v1234
  %v1392 = vpop.f32.mrf.mxu0
  %v1393 = vadd.f32 0.0, %v1392
  %1394 = vdwg.mxu0
  %1395 = vmatpush.msra.mxu0 0.0
  %1396 = vmatpush.msra.mxu0 0.0
  %1397 = vmatpush.msra.mxu0 0.0
  %1398 = vmatpush.msra.mxu0 0.0
  %1399 = vmatpush.msra.mxu0 0.0
  %1400 = vmatpush.msra.mxu0 0.0
  %1401 = vmatpush.msra.mxu0 0.0
  %1402 = vmatpush.msra.mxu0 0.0
  %1403 = vmatpush.msra.mxu0 0.0
  %1404 = vmatpush.msra.mxu0 0.0
  %1405 = vmatpush.msra.mxu0 0.0
  %1406 = vmatpush.msra.mxu0 0.0
  %1407 = vmatpush.msra.mxu0 %v1207
  %1408 = vmatpush.msra.mxu0 %v1206
  %1409 = vmatpush.msra.mxu0 %v1205
  %1410 = vmatpush.msra.mxu0 %v1204
  %1411 = vmatmul.f32.gmra.mxu0 %v1278
  %v1412 = vpop.f32.mrf.mxu0
  %v1413 = vadd.f32 %v1372, %v1412
  %1414 = vmatmul.f32.gmra.mxu0 %v1281
  %v1415 = vpop.f32.mrf.mxu0
  %v1416 = vadd.f32 %v1375, %v1415
  %1417 = vmatmul.f32.gmra.mxu0 %v1284
  %v1418 = vpop.f32.mrf.mxu0
  %v1419 = vadd.f32 %v1378, %v1418
  %1420 = vmatmul.f32.gmra.mxu0 %v1287
  %v1421 = vpop.f32.mrf.mxu0
  %v1422 = vadd.f32 %v1381, %v1421
  %1423 = vmatmul.f32.gmra.mxu0 %v1290
  %v1424 = vpop.f32.mrf.mxu0
  %v1425 = vadd.f32 %v1384, %v1424
  %1426 = vmatmul.f32.gmra.mxu0 %v1293
  %v1427 = vpop.f32.mrf.mxu0
  %v1428 = vadd.f32 %v1387, %v1427
  %1429 = vmatmul.f32.gmra.mxu0 %v1296
  %v1430 = vpop.f32.mrf.mxu0
  %v1431 = vadd.f32 %v1390, %v1430
  %1432 = vmatmul.f32.gmra.mxu0 %v1299
  %v1433 = vpop.f32.mrf.mxu0
  %v1434 = vadd.f32 %v1393, %v1433
  %1435 = vdwg.mxu0
  %s1436 = scalar_lea.vmem %s5, 1
  %v1437 = vld [vmem:[%s1436] sm:$0x1]
  %v1439 = vperm.slane %v1437, 0
  %v1441 = vadd.f32 %v1413, %v1439
  %v1442 = vadd.f32 %v1416, %v1439
  %v1443 = vadd.f32 %v1419, %v1439
  %v1444 = vadd.f32 %v1422, %v1439
  %v1445 = vadd.f32 %v1425, %v1439
  %v1446 = vadd.f32 %v1428, %v1439
  %v1447 = vadd.f32 %v1431, %v1439
  %v1448 = vadd.f32 %v1434, %v1439
  %v1449 = vld [vmem:[%s6] sm:$0xf]
  %v1450 = vld [vmem:[%s6 + $0x4] sm:$0xf]
  %v1451 = vld [vmem:[%s6 + $0x8] sm:$0xf]
  %v1452 = vld [vmem:[%s6 + $0xc] sm:$0xf]
  %s1453 = scalar_lea.vmem %s6, 16
  %v1454 = vld [vmem:[%s1453] sm:$0xf]
  %v1455 = vld [vmem:[%s1453 + $0x4] sm:$0xf]
  %v1456 = vld [vmem:[%s1453 + $0x8] sm:$0xf]
  %v1457 = vld [vmem:[%s1453 + $0xc] sm:$0xf]
  %v1462 = vunpack.c.l.b16 %v1449
  %v1463 = vunpack.c.l.b16 %v1450
  %v1464 = vunpack.c.l.b16 %v1451
  %v1465 = vunpack.c.l.b16 %v1452
  %v1466 = vpack.c.b16 %v1463, %v1462
  %v1467 = vpack.c.b16 %v1465, %v1464
  %1470 = vmatpush.bf16.msra.mxu0 0
  %1471 = vmatpush.bf16.msra.mxu0 0
  %1472 = vmatpush.bf16.msra.mxu0 0
  %1473 = vmatpush.bf16.msra.mxu0 0
  %1474 = vmatpush.bf16.msra.mxu0 0
  %1475 = vmatpush.bf16.msra.mxu0 0
  %1476 = vmatpush.bf16.msra.mxu0 %v1467
  %1477 = vmatpush.bf16.msra.mxu0 %v1466
  %1478 = vmatmul.bf16.gmra.mxu0 %v52
  %v1479 = vpop.f32.mrf.mxu0
  %v1480 = vadd.f32 0.0, %v1479
  %v1481 = vpop.f32.mrf.mxu0
  %1482 = vdwg.mxu0
  %v1483 = vadd.f32 %v1346, %v1480
  %v1488 = vunpack.c.l.b16 %v1454
  %v1489 = vunpack.c.l.b16 %v1455
  %v1490 = vunpack.c.l.b16 %v1456
  %v1491 = vunpack.c.l.b16 %v1457
  %v1492 = vpack.c.b16 %v1489, %v1488
  %v1493 = vpack.c.b16 %v1491, %v1490
  %1496 = vmatpush.bf16.msra.mxu0 0
  %1497 = vmatpush.bf16.msra.mxu0 0
  %1498 = vmatpush.bf16.msra.mxu0 0
  %1499 = vmatpush.bf16.msra.mxu0 0
  %1500 = vmatpush.bf16.msra.mxu0 0
  %1501 = vmatpush.bf16.msra.mxu0 0
  %1502 = vmatpush.bf16.msra.mxu0 %v1493
  %1503 = vmatpush.bf16.msra.mxu0 %v1492
  %1504 = vmatmul.bf16.gmra.mxu0 %v52
  %v1505 = vpop.f32.mrf.mxu0
  %v1506 = vadd.f32 0.0, %v1505
  %v1507 = vpop.f32.mrf.mxu0
  %1508 = vdwg.mxu0
  %v1509 = vadd.f32 %v1448, %v1506
  %v1510 = vxor.u32 %v1483, 2147483648
  %v1511 = vmul.f32 %v1510, 1.442695
  %v1512 = vpow.pop %v1511
  %v1513 = vadd.f32 %v1512, 1.0
  %v1514 = vrcp.pop %v1513
  %v1515 = vmul.f32 %v1513, %v1514
  %v1516 = vsub.f32 1.0, %v1515
  %v1517 = vmul.f32 %v1514, %v1516
  %v1518 = vadd.f32 %v1514, %v1517
  %vm1519 = vweird.f32 %v1513
  %vm1520 = vweird.f32 %v1514
  %vm1521 = vmor %vm1519, %vm1520
  %v1522 = vsel %vm1521, %v1514, %v1518
  %v1523 = vand.u32 2147483647, %v1513
  %vm1524 = vcmp.eq.f32.partialorder %v1523, 8.507059e+37
  %v1525 = vand.u32 %v1513, 2147483648
  %v1526 = vor.u32 1.1754944e-38, %v1525
  %v1527 = vsel %vm1524, %v1526, %v1522
  %v1528 = vmul.f32 1.0, %v1527
  %v1529 = vtanh.pop %v1483
  %v1530 = vmul.f32 %v1528, 0.0
  %1532 = vrot.lane.b32.xlu0 %v1529, 32
  %v1533 = vpop.permute.xlu0 %1532
  %v1535 = vmul.f32 %v1528, %v1533
  %1537 = vrot.lane.b32.xlu0 %v1535, 32
  %v1538 = vpop.permute.xlu0 %1537
  %v1540 = vadd.f32 %v1530, %v1538
  %v1541 = vtanh.pop %v1540
  %1543 = vrot.lane.b32.xlu0 %v1541, 32
  %v1544 = vpop.permute.xlu0 %1543
  %v1546 = vmul.f32 %v1528, %v1544
  %v1547 = vsel %vm138, %v1540, 0.0
  %v1548 = vsel %vm138, %v1546, 0.0
  %v1549 = vxor.u32 %v1509, 2147483648
  %v1550 = vmul.f32 %v1549, 1.442695
  %v1551 = vpow.pop %v1550
  %v1552 = vadd.f32 %v1551, 1.0
  %v1553 = vrcp.pop %v1552
  %v1554 = vmul.f32 %v1552, %v1553
  %v1555 = vsub.f32 1.0, %v1554
  %v1556 = vmul.f32 %v1553, %v1555
  %v1557 = vadd.f32 %v1553, %v1556
  %vm1558 = vweird.f32 %v1552
  %vm1559 = vweird.f32 %v1553
  %vm1560 = vmor %vm1558, %vm1559
  %v1561 = vsel %vm1560, %v1553, %v1557
  %v1562 = vand.u32 2147483647, %v1552
  %vm1563 = vcmp.eq.f32.partialorder %v1562, 8.507059e+37
  %v1564 = vand.u32 %v1552, 2147483648
  %v1565 = vor.u32 1.1754944e-38, %v1564
  %v1566 = vsel %vm1563, %v1565, %v1561
  %v1567 = vmul.f32 1.0, %v1566
  %v1568 = vtanh.pop %v1509
  %v1569 = vmul.f32 %v1567, 0.0
  %1571 = vrot.lane.b32.xlu0 %v1568, 32
  %v1572 = vpop.permute.xlu0 %1571
  %v1574 = vmul.f32 %v1567, %v1572
  %1576 = vrot.lane.b32.xlu0 %v1574, 32
  %v1577 = vpop.permute.xlu0 %1576
  %v1579 = vadd.f32 %v1569, %v1577
  %v1580 = vtanh.pop %v1579
  %1582 = vrot.lane.b32.xlu0 %v1580, 32
  %v1583 = vpop.permute.xlu0 %1582
  %v1585 = vmul.f32 %v1567, %v1583
  %v1586 = vsel %vm183, %v1579, 0.0
  %v1587 = vsel %vm183, %v1585, 0.0
  %v1588 = vpack.c.bf16 %v1548, %v1548
  %1590 = vrot.lane.b32.xlu0 %v1588, 64
  %v1591 = vpop.permute.xlu0 %1590
  %v1593 = vsel %vm50, %v1591, 0
  %1595 = vmatpush.bf16.msra.mxu0 0
  %1596 = vmatpush.bf16.msra.mxu0 0
  %1597 = vmatpush.bf16.msra.mxu0 0
  %1598 = vmatpush.bf16.msra.mxu0 0
  %1599 = vmatpush.bf16.msra.mxu0 0
  %1600 = vmatpush.bf16.msra.mxu0 0
  %1601 = vmatpush.bf16.msra.mxu0 %v1467
  %1602 = vmatpush.bf16.msra.mxu0 %v1466
  %1603 = vmatmul.bf16.gmra.mxu0 %v1593
  %v1604 = vpop.f32.mrf.mxu0
  %v1605 = vadd.f32 0.0, %v1604
  %v1606 = vpop.f32.mrf.mxu0
  %1607 = vdwg.mxu0
  %v1608 = vadd.f32 %v1347, %v1605
  %v1609 = vpack.c.bf16 %v1587, %v1587
  %1611 = vrot.lane.b32.xlu0 %v1609, 64
  %v1612 = vpop.permute.xlu0 %1611
  %v1614 = vsel %vm50, %v1612, 0
  %1616 = vmatpush.bf16.msra.mxu0 0
  %1617 = vmatpush.bf16.msra.mxu0 0
  %1618 = vmatpush.bf16.msra.mxu0 0
  %1619 = vmatpush.bf16.msra.mxu0 0
  %1620 = vmatpush.bf16.msra.mxu0 0
  %1621 = vmatpush.bf16.msra.mxu0 0
  %1622 = vmatpush.bf16.msra.mxu0 %v1493
  %1623 = vmatpush.bf16.msra.mxu0 %v1492
  %1624 = vmatmul.bf16.gmra.mxu0 %v1614
  %v1625 = vpop.f32.mrf.mxu0
  %v1626 = vadd.f32 0.0, %v1625
  %v1627 = vpop.f32.mrf.mxu0
  %1628 = vdwg.mxu0
  %v1629 = vadd.f32 %v1447, %v1626
  %v1630 = vxor.u32 %v1608, 2147483648
  %v1631 = vmul.f32 %v1630, 1.442695
  %v1632 = vpow.pop %v1631
  %v1633 = vadd.f32 %v1632, 1.0
  %v1634 = vrcp.pop %v1633
  %v1635 = vmul.f32 %v1633, %v1634
  %v1636 = vsub.f32 1.0, %v1635
  %v1637 = vmul.f32 %v1634, %v1636
  %v1638 = vadd.f32 %v1634, %v1637
  %vm1639 = vweird.f32 %v1633
  %vm1640 = vweird.f32 %v1634
  %vm1641 = vmor %vm1639, %vm1640
  %v1642 = vsel %vm1641, %v1634, %v1638
  %v1643 = vand.u32 2147483647, %v1633
  %vm1644 = vcmp.eq.f32.partialorder %v1643, 8.507059e+37
  %v1645 = vand.u32 %v1633, 2147483648
  %v1646 = vor.u32 1.1754944e-38, %v1645
  %v1647 = vsel %vm1644, %v1646, %v1642
  %v1648 = vmul.f32 1.0, %v1647
  %v1649 = vtanh.pop %v1608
  %v1650 = vmul.f32 %v1648, %v1547
  %1652 = vrot.lane.b32.xlu0 %v1649, 32
  %v1653 = vpop.permute.xlu0 %1652
  %v1655 = vmul.f32 %v1648, %v1653
  %1657 = vrot.lane.b32.xlu0 %v1655, 32
  %v1658 = vpop.permute.xlu0 %1657
  %v1660 = vadd.f32 %v1650, %v1658
  %v1661 = vtanh.pop %v1660
  %1663 = vrot.lane.b32.xlu0 %v1661, 32
  %v1664 = vpop.permute.xlu0 %1663
  %v1666 = vmul.f32 %v1648, %v1664
  %v1667 = vsel %vm284, %v1660, %v1547
  %v1668 = vsel %vm284, %v1666, %v1548
  %v1669 = vxor.u32 %v1629, 2147483648
  %v1670 = vmul.f32 %v1669, 1.442695
  %v1671 = vpow.pop %v1670
  %v1672 = vadd.f32 %v1671, 1.0
  %v1673 = vrcp.pop %v1672
  %v1674 = vmul.f32 %v1672, %v1673
  %v1675 = vsub.f32 1.0, %v1674
  %v1676 = vmul.f32 %v1673, %v1675
  %v1677 = vadd.f32 %v1673, %v1676
  %vm1678 = vweird.f32 %v1672
  %vm1679 = vweird.f32 %v1673
  %vm1680 = vmor %vm1678, %vm1679
  %v1681 = vsel %vm1680, %v1673, %v1677
  %v1682 = vand.u32 2147483647, %v1672
  %vm1683 = vcmp.eq.f32.partialorder %v1682, 8.507059e+37
  %v1684 = vand.u32 %v1672, 2147483648
  %v1685 = vor.u32 1.1754944e-38, %v1684
  %v1686 = vsel %vm1683, %v1685, %v1681
  %v1687 = vmul.f32 1.0, %v1686
  %v1688 = vtanh.pop %v1629
  %v1689 = vmul.f32 %v1687, %v1586
  %1691 = vrot.lane.b32.xlu0 %v1688, 32
  %v1692 = vpop.permute.xlu0 %1691
  %v1694 = vmul.f32 %v1687, %v1692
  %1696 = vrot.lane.b32.xlu0 %v1694, 32
  %v1697 = vpop.permute.xlu0 %1696
  %v1699 = vadd.f32 %v1689, %v1697
  %v1700 = vtanh.pop %v1699
  %1702 = vrot.lane.b32.xlu0 %v1700, 32
  %v1703 = vpop.permute.xlu0 %1702
  %v1705 = vmul.f32 %v1687, %v1703
  %v1706 = vsel %vm330, %v1699, %v1586
  %v1707 = vsel %vm330, %v1705, %v1587
  %v1708 = vpack.c.bf16 %v1668, %v1668
  %1710 = vrot.lane.b32.xlu0 %v1708, 64
  %v1711 = vpop.permute.xlu0 %1710
  %v1713 = vsel %vm50, %v1711, 0
  %1715 = vmatpush.bf16.msra.mxu0 0
  %1716 = vmatpush.bf16.msra.mxu0 0
  %1717 = vmatpush.bf16.msra.mxu0 0
  %1718 = vmatpush.bf16.msra.mxu0 0
  %1719 = vmatpush.bf16.msra.mxu0 0
  %1720 = vmatpush.bf16.msra.mxu0 0
  %1721 = vmatpush.bf16.msra.mxu0 %v1467
  %1722 = vmatpush.bf16.msra.mxu0 %v1466
  %1723 = vmatmul.bf16.gmra.mxu0 %v1713
  %v1724 = vpop.f32.mrf.mxu0
  %v1725 = vadd.f32 0.0, %v1724
  %v1726 = vpop.f32.mrf.mxu0
  %1727 = vdwg.mxu0
  %v1728 = vadd.f32 %v1348, %v1725
  %v1729 = vpack.c.bf16 %v1707, %v1707
  %1731 = vrot.lane.b32.xlu0 %v1729, 64
  %v1732 = vpop.permute.xlu0 %1731
  %v1734 = vsel %vm50, %v1732, 0
  %1736 = vmatpush.bf16.msra.mxu0 0
  %1737 = vmatpush.bf16.msra.mxu0 0
  %1738 = vmatpush.bf16.msra.mxu0 0
  %1739 = vmatpush.bf16.msra.mxu0 0
  %1740 = vmatpush.bf16.msra.mxu0 0
  %1741 = vmatpush.bf16.msra.mxu0 0
  %1742 = vmatpush.bf16.msra.mxu0 %v1493
  %1743 = vmatpush.bf16.msra.mxu0 %v1492
  %1744 = vmatmul.bf16.gmra.mxu0 %v1734
  %v1745 = vpop.f32.mrf.mxu0
  %v1746 = vadd.f32 0.0, %v1745
  %v1747 = vpop.f32.mrf.mxu0
  %1748 = vdwg.mxu0
  %v1749 = vadd.f32 %v1446, %v1746
  %v1750 = vxor.u32 %v1728, 2147483648
  %v1751 = vmul.f32 %v1750, 1.442695
  %v1752 = vpow.pop %v1751
  %v1753 = vadd.f32 %v1752, 1.0
  %v1754 = vrcp.pop %v1753
  %v1755 = vmul.f32 %v1753, %v1754
  %v1756 = vsub.f32 1.0, %v1755
  %v1757 = vmul.f32 %v1754, %v1756
  %v1758 = vadd.f32 %v1754, %v1757
  %vm1759 = vweird.f32 %v1753
  %vm1760 = vweird.f32 %v1754
  %vm1761 = vmor %vm1759, %vm1760
  %v1762 = vsel %vm1761, %v1754, %v1758
  %v1763 = vand.u32 2147483647, %v1753
  %vm1764 = vcmp.eq.f32.partialorder %v1763, 8.507059e+37
  %v1765 = vand.u32 %v1753, 2147483648
  %v1766 = vor.u32 1.1754944e-38, %v1765
  %v1767 = vsel %vm1764, %v1766, %v1762
  %v1768 = vmul.f32 1.0, %v1767
  %v1769 = vtanh.pop %v1728
  %v1770 = vmul.f32 %v1768, %v1667
  %1772 = vrot.lane.b32.xlu0 %v1769, 32
  %v1773 = vpop.permute.xlu0 %1772
  %v1775 = vmul.f32 %v1768, %v1773
  %1777 = vrot.lane.b32.xlu0 %v1775, 32
  %v1778 = vpop.permute.xlu0 %1777
  %v1780 = vadd.f32 %v1770, %v1778
  %v1781 = vtanh.pop %v1780
  %1783 = vrot.lane.b32.xlu0 %v1781, 32
  %v1784 = vpop.permute.xlu0 %1783
  %v1786 = vmul.f32 %v1768, %v1784
  %v1787 = vsel %vm432, %v1780, %v1667
  %v1788 = vsel %vm432, %v1786, %v1668
  %v1789 = vxor.u32 %v1749, 2147483648
  %v1790 = vmul.f32 %v1789, 1.442695
  %v1791 = vpow.pop %v1790
  %v1792 = vadd.f32 %v1791, 1.0
  %v1793 = vrcp.pop %v1792
  %v1794 = vmul.f32 %v1792, %v1793
  %v1795 = vsub.f32 1.0, %v1794
  %v1796 = vmul.f32 %v1793, %v1795
  %v1797 = vadd.f32 %v1793, %v1796
  %vm1798 = vweird.f32 %v1792
  %vm1799 = vweird.f32 %v1793
  %vm1800 = vmor %vm1798, %vm1799
  %v1801 = vsel %vm1800, %v1793, %v1797
  %v1802 = vand.u32 2147483647, %v1792
  %vm1803 = vcmp.eq.f32.partialorder %v1802, 8.507059e+37
  %v1804 = vand.u32 %v1792, 2147483648
  %v1805 = vor.u32 1.1754944e-38, %v1804
  %v1806 = vsel %vm1803, %v1805, %v1801
  %v1807 = vmul.f32 1.0, %v1806
  %v1808 = vtanh.pop %v1749
  %v1809 = vmul.f32 %v1807, %v1706
  %1811 = vrot.lane.b32.xlu0 %v1808, 32
  %v1812 = vpop.permute.xlu0 %1811
  %v1814 = vmul.f32 %v1807, %v1812
  %1816 = vrot.lane.b32.xlu0 %v1814, 32
  %v1817 = vpop.permute.xlu0 %1816
  %v1819 = vadd.f32 %v1809, %v1817
  %v1820 = vtanh.pop %v1819
  %1822 = vrot.lane.b32.xlu0 %v1820, 32
  %v1823 = vpop.permute.xlu0 %1822
  %v1825 = vmul.f32 %v1807, %v1823
  %v1826 = vsel %vm478, %v1819, %v1706
  %v1827 = vsel %vm478, %v1825, %v1707
  %v1828 = vpack.c.bf16 %v1788, %v1788
  %1830 = vrot.lane.b32.xlu0 %v1828, 64
  %v1831 = vpop.permute.xlu0 %1830
  %v1833 = vsel %vm50, %v1831, 0
  %1835 = vmatpush.bf16.msra.mxu0 0
  %1836 = vmatpush.bf16.msra.mxu0 0
  %1837 = vmatpush.bf16.msra.mxu0 0
  %1838 = vmatpush.bf16.msra.mxu0 0
  %1839 = vmatpush.bf16.msra.mxu0 0
  %1840 = vmatpush.bf16.msra.mxu0 0
  %1841 = vmatpush.bf16.msra.mxu0 %v1467
  %1842 = vmatpush.bf16.msra.mxu0 %v1466
  %1843 = vmatmul.bf16.gmra.mxu0 %v1833
  %v1844 = vpop.f32.mrf.mxu0
  %v1845 = vadd.f32 0.0, %v1844
  %v1846 = vpop.f32.mrf.mxu0
  %1847 = vdwg.mxu0
  %v1848 = vadd.f32 %v1349, %v1845
  %v1849 = vpack.c.bf16 %v1827, %v1827
  %1851 = vrot.lane.b32.xlu0 %v1849, 64
  %v1852 = vpop.permute.xlu0 %1851
  %v1854 = vsel %vm50, %v1852, 0
  %1856 = vmatpush.bf16.msra.mxu0 0
  %1857 = vmatpush.bf16.msra.mxu0 0
  %1858 = vmatpush.bf16.msra.mxu0 0
  %1859 = vmatpush.bf16.msra.mxu0 0
  %1860 = vmatpush.bf16.msra.mxu0 0
  %1861 = vmatpush.bf16.msra.mxu0 0
  %1862 = vmatpush.bf16.msra.mxu0 %v1493
  %1863 = vmatpush.bf16.msra.mxu0 %v1492
  %1864 = vmatmul.bf16.gmra.mxu0 %v1854
  %v1865 = vpop.f32.mrf.mxu0
  %v1866 = vadd.f32 0.0, %v1865
  %v1867 = vpop.f32.mrf.mxu0
  %1868 = vdwg.mxu0
  %v1869 = vadd.f32 %v1445, %v1866
  %v1870 = vxor.u32 %v1848, 2147483648
  %v1871 = vmul.f32 %v1870, 1.442695
  %v1872 = vpow.pop %v1871
  %v1873 = vadd.f32 %v1872, 1.0
  %v1874 = vrcp.pop %v1873
  %v1875 = vmul.f32 %v1873, %v1874
  %v1876 = vsub.f32 1.0, %v1875
  %v1877 = vmul.f32 %v1874, %v1876
  %v1878 = vadd.f32 %v1874, %v1877
  %vm1879 = vweird.f32 %v1873
  %vm1880 = vweird.f32 %v1874
  %vm1881 = vmor %vm1879, %vm1880
  %v1882 = vsel %vm1881, %v1874, %v1878
  %v1883 = vand.u32 2147483647, %v1873
  %vm1884 = vcmp.eq.f32.partialorder %v1883, 8.507059e+37
  %v1885 = vand.u32 %v1873, 2147483648
  %v1886 = vor.u32 1.1754944e-38, %v1885
  %v1887 = vsel %vm1884, %v1886, %v1882
  %v1888 = vmul.f32 1.0, %v1887
  %v1889 = vtanh.pop %v1848
  %v1890 = vmul.f32 %v1888, %v1787
  %1892 = vrot.lane.b32.xlu0 %v1889, 32
  %v1893 = vpop.permute.xlu0 %1892
  %v1895 = vmul.f32 %v1888, %v1893
  %1897 = vrot.lane.b32.xlu0 %v1895, 32
  %v1898 = vpop.permute.xlu0 %1897
  %v1900 = vadd.f32 %v1890, %v1898
  %v1901 = vtanh.pop %v1900
  %1903 = vrot.lane.b32.xlu0 %v1901, 32
  %v1904 = vpop.permute.xlu0 %1903
  %v1906 = vmul.f32 %v1888, %v1904
  %v1907 = vsel %vm580, %v1900, %v1787
  %v1908 = vsel %vm580, %v1906, %v1788
  %v1909 = vxor.u32 %v1869, 2147483648
  %v1910 = vmul.f32 %v1909, 1.442695
  %v1911 = vpow.pop %v1910
  %v1912 = vadd.f32 %v1911, 1.0
  %v1913 = vrcp.pop %v1912
  %v1914 = vmul.f32 %v1912, %v1913
  %v1915 = vsub.f32 1.0, %v1914
  %v1916 = vmul.f32 %v1913, %v1915
  %v1917 = vadd.f32 %v1913, %v1916
  %vm1918 = vweird.f32 %v1912
  %vm1919 = vweird.f32 %v1913
  %vm1920 = vmor %vm1918, %vm1919
  %v1921 = vsel %vm1920, %v1913, %v1917
  %v1922 = vand.u32 2147483647, %v1912
  %vm1923 = vcmp.eq.f32.partialorder %v1922, 8.507059e+37
  %v1924 = vand.u32 %v1912, 2147483648
  %v1925 = vor.u32 1.1754944e-38, %v1924
  %v1926 = vsel %vm1923, %v1925, %v1921
  %v1927 = vmul.f32 1.0, %v1926
  %v1928 = vtanh.pop %v1869
  %v1929 = vmul.f32 %v1927, %v1826
  %1931 = vrot.lane.b32.xlu0 %v1928, 32
  %v1932 = vpop.permute.xlu0 %1931
  %v1934 = vmul.f32 %v1927, %v1932
  %1936 = vrot.lane.b32.xlu0 %v1934, 32
  %v1937 = vpop.permute.xlu0 %1936
  %v1939 = vadd.f32 %v1929, %v1937
  %v1940 = vtanh.pop %v1939
  %1942 = vrot.lane.b32.xlu0 %v1940, 32
  %v1943 = vpop.permute.xlu0 %1942
  %v1945 = vmul.f32 %v1927, %v1943
  %v1946 = vsel %vm626, %v1939, %v1826
  %v1947 = vsel %vm626, %v1945, %v1827
  %v1948 = vpack.c.bf16 %v1908, %v1908
  %1950 = vrot.lane.b32.xlu0 %v1948, 64
  %v1951 = vpop.permute.xlu0 %1950
  %v1953 = vsel %vm50, %v1951, 0
  %1955 = vmatpush.bf16.msra.mxu0 0
  %1956 = vmatpush.bf16.msra.mxu0 0
  %1957 = vmatpush.bf16.msra.mxu0 0
  %1958 = vmatpush.bf16.msra.mxu0 0
  %1959 = vmatpush.bf16.msra.mxu0 0
  %1960 = vmatpush.bf16.msra.mxu0 0
  %1961 = vmatpush.bf16.msra.mxu0 %v1467
  %1962 = vmatpush.bf16.msra.mxu0 %v1466
  %1963 = vmatmul.bf16.gmra.mxu0 %v1953
  %v1964 = vpop.f32.mrf.mxu0
  %v1965 = vadd.f32 0.0, %v1964
  %v1966 = vpop.f32.mrf.mxu0
  %1967 = vdwg.mxu0
  %v1968 = vadd.f32 %v1350, %v1965
  %v1969 = vpack.c.bf16 %v1947, %v1947
  %1971 = vrot.lane.b32.xlu0 %v1969, 64
  %v1972 = vpop.permute.xlu0 %1971
  %v1974 = vsel %vm50, %v1972, 0
  %1976 = vmatpush.bf16.msra.mxu0 0
  %1977 = vmatpush.bf16.msra.mxu0 0
  %1978 = vmatpush.bf16.msra.mxu0 0
  %1979 = vmatpush.bf16.msra.mxu0 0
  %1980 = vmatpush.bf16.msra.mxu0 0
  %1981 = vmatpush.bf16.msra.mxu0 0
  %1982 = vmatpush.bf16.msra.mxu0 %v1493
  %1983 = vmatpush.bf16.msra.mxu0 %v1492
  %1984 = vmatmul.bf16.gmra.mxu0 %v1974
  %v1985 = vpop.f32.mrf.mxu0
  %v1986 = vadd.f32 0.0, %v1985
  %v1987 = vpop.f32.mrf.mxu0
  %1988 = vdwg.mxu0
  %v1989 = vadd.f32 %v1444, %v1986
  %v1990 = vxor.u32 %v1968, 2147483648
  %v1991 = vmul.f32 %v1990, 1.442695
  %v1992 = vpow.pop %v1991
  %v1993 = vadd.f32 %v1992, 1.0
  %v1994 = vrcp.pop %v1993
  %v1995 = vmul.f32 %v1993, %v1994
  %v1996 = vsub.f32 1.0, %v1995
  %v1997 = vmul.f32 %v1994, %v1996
  %v1998 = vadd.f32 %v1994, %v1997
  %vm1999 = vweird.f32 %v1993
  %vm2000 = vweird.f32 %v1994
  %vm2001 = vmor %vm1999, %vm2000
  %v2002 = vsel %vm2001, %v1994, %v1998
  %v2003 = vand.u32 2147483647, %v1993
  %vm2004 = vcmp.eq.f32.partialorder %v2003, 8.507059e+37
  %v2005 = vand.u32 %v1993, 2147483648
  %v2006 = vor.u32 1.1754944e-38, %v2005
  %v2007 = vsel %vm2004, %v2006, %v2002
  %v2008 = vmul.f32 1.0, %v2007
  %v2009 = vtanh.pop %v1968
  %v2010 = vmul.f32 %v2008, %v1907
  %2012 = vrot.lane.b32.xlu0 %v2009, 32
  %v2013 = vpop.permute.xlu0 %2012
  %v2015 = vmul.f32 %v2008, %v2013
  %2017 = vrot.lane.b32.xlu0 %v2015, 32
  %v2018 = vpop.permute.xlu0 %2017
  %v2020 = vadd.f32 %v2010, %v2018
  %v2021 = vtanh.pop %v2020
  %2023 = vrot.lane.b32.xlu0 %v2021, 32
  %v2024 = vpop.permute.xlu0 %2023
  %v2026 = vmul.f32 %v2008, %v2024
  %v2027 = vsel %vm626, %v2020, %v1907
  %v2028 = vsel %vm626, %v2026, %v1908
  %v2029 = vxor.u32 %v1989, 2147483648
  %v2030 = vmul.f32 %v2029, 1.442695
  %v2031 = vpow.pop %v2030
  %v2032 = vadd.f32 %v2031, 1.0
  %v2033 = vrcp.pop %v2032
  %v2034 = vmul.f32 %v2032, %v2033
  %v2035 = vsub.f32 1.0, %v2034
  %v2036 = vmul.f32 %v2033, %v2035
  %v2037 = vadd.f32 %v2033, %v2036
  %vm2038 = vweird.f32 %v2032
  %vm2039 = vweird.f32 %v2033
  %vm2040 = vmor %vm2038, %vm2039
  %v2041 = vsel %vm2040, %v2033, %v2037
  %v2042 = vand.u32 2147483647, %v2032
  %vm2043 = vcmp.eq.f32.partialorder %v2042, 8.507059e+37
  %v2044 = vand.u32 %v2032, 2147483648
  %v2045 = vor.u32 1.1754944e-38, %v2044
  %v2046 = vsel %vm2043, %v2045, %v2041
  %v2047 = vmul.f32 1.0, %v2046
  %v2048 = vtanh.pop %v1989
  %v2049 = vmul.f32 %v2047, %v1946
  %2051 = vrot.lane.b32.xlu0 %v2048, 32
  %v2052 = vpop.permute.xlu0 %2051
  %v2054 = vmul.f32 %v2047, %v2052
  %2056 = vrot.lane.b32.xlu0 %v2054, 32
  %v2057 = vpop.permute.xlu0 %2056
  %v2059 = vadd.f32 %v2049, %v2057
  %v2060 = vtanh.pop %v2059
  %2062 = vrot.lane.b32.xlu0 %v2060, 32
  %v2063 = vpop.permute.xlu0 %2062
  %v2065 = vmul.f32 %v2047, %v2063
  %v2066 = vsel %vm580, %v2059, %v1946
  %v2067 = vsel %vm580, %v2065, %v1947
  %v2068 = vpack.c.bf16 %v2028, %v2028
  %2070 = vrot.lane.b32.xlu0 %v2068, 64
  %v2071 = vpop.permute.xlu0 %2070
  %v2073 = vsel %vm50, %v2071, 0
  %2075 = vmatpush.bf16.msra.mxu0 0
  %2076 = vmatpush.bf16.msra.mxu0 0
  %2077 = vmatpush.bf16.msra.mxu0 0
  %2078 = vmatpush.bf16.msra.mxu0 0
  %2079 = vmatpush.bf16.msra.mxu0 0
  %2080 = vmatpush.bf16.msra.mxu0 0
  %2081 = vmatpush.bf16.msra.mxu0 %v1467
  %2082 = vmatpush.bf16.msra.mxu0 %v1466
  %2083 = vmatmul.bf16.gmra.mxu0 %v2073
  %v2084 = vpop.f32.mrf.mxu0
  %v2085 = vadd.f32 0.0, %v2084
  %v2086 = vpop.f32.mrf.mxu0
  %2087 = vdwg.mxu0
  %v2088 = vadd.f32 %v1351, %v2085
  %v2089 = vpack.c.bf16 %v2067, %v2067
  %2091 = vrot.lane.b32.xlu0 %v2089, 64
  %v2092 = vpop.permute.xlu0 %2091
  %v2094 = vsel %vm50, %v2092, 0
  %2096 = vmatpush.bf16.msra.mxu0 0
  %2097 = vmatpush.bf16.msra.mxu0 0
  %2098 = vmatpush.bf16.msra.mxu0 0
  %2099 = vmatpush.bf16.msra.mxu0 0
  %2100 = vmatpush.bf16.msra.mxu0 0
  %2101 = vmatpush.bf16.msra.mxu0 0
  %2102 = vmatpush.bf16.msra.mxu0 %v1493
  %2103 = vmatpush.bf16.msra.mxu0 %v1492
  %2104 = vmatmul.bf16.gmra.mxu0 %v2094
  %v2105 = vpop.f32.mrf.mxu0
  %v2106 = vadd.f32 0.0, %v2105
  %v2107 = vpop.f32.mrf.mxu0
  %2108 = vdwg.mxu0
  %v2109 = vadd.f32 %v1443, %v2106
  %v2110 = vxor.u32 %v2088, 2147483648
  %v2111 = vmul.f32 %v2110, 1.442695
  %v2112 = vpow.pop %v2111
  %v2113 = vadd.f32 %v2112, 1.0
  %v2114 = vrcp.pop %v2113
  %v2115 = vmul.f32 %v2113, %v2114
  %v2116 = vsub.f32 1.0, %v2115
  %v2117 = vmul.f32 %v2114, %v2116
  %v2118 = vadd.f32 %v2114, %v2117
  %vm2119 = vweird.f32 %v2113
  %vm2120 = vweird.f32 %v2114
  %vm2121 = vmor %vm2119, %vm2120
  %v2122 = vsel %vm2121, %v2114, %v2118
  %v2123 = vand.u32 2147483647, %v2113
  %vm2124 = vcmp.eq.f32.partialorder %v2123, 8.507059e+37
  %v2125 = vand.u32 %v2113, 2147483648
  %v2126 = vor.u32 1.1754944e-38, %v2125
  %v2127 = vsel %vm2124, %v2126, %v2122
  %v2128 = vmul.f32 1.0, %v2127
  %v2129 = vtanh.pop %v2088
  %v2130 = vmul.f32 %v2128, %v2027
  %2132 = vrot.lane.b32.xlu0 %v2129, 32
  %v2133 = vpop.permute.xlu0 %2132
  %v2135 = vmul.f32 %v2128, %v2133
  %2137 = vrot.lane.b32.xlu0 %v2135, 32
  %v2138 = vpop.permute.xlu0 %2137
  %v2140 = vadd.f32 %v2130, %v2138
  %v2141 = vtanh.pop %v2140
  %2143 = vrot.lane.b32.xlu0 %v2141, 32
  %v2144 = vpop.permute.xlu0 %2143
  %v2146 = vmul.f32 %v2128, %v2144
  %v2147 = vsel %vm478, %v2140, %v2027
  %v2148 = vsel %vm478, %v2146, %v2028
  %v2149 = vxor.u32 %v2109, 2147483648
  %v2150 = vmul.f32 %v2149, 1.442695
  %v2151 = vpow.pop %v2150
  %v2152 = vadd.f32 %v2151, 1.0
  %v2153 = vrcp.pop %v2152
  %v2154 = vmul.f32 %v2152, %v2153
  %v2155 = vsub.f32 1.0, %v2154
  %v2156 = vmul.f32 %v2153, %v2155
  %v2157 = vadd.f32 %v2153, %v2156
  %vm2158 = vweird.f32 %v2152
  %vm2159 = vweird.f32 %v2153
  %vm2160 = vmor %vm2158, %vm2159
  %v2161 = vsel %vm2160, %v2153, %v2157
  %v2162 = vand.u32 2147483647, %v2152
  %vm2163 = vcmp.eq.f32.partialorder %v2162, 8.507059e+37
  %v2164 = vand.u32 %v2152, 2147483648
  %v2165 = vor.u32 1.1754944e-38, %v2164
  %v2166 = vsel %vm2163, %v2165, %v2161
  %v2167 = vmul.f32 1.0, %v2166
  %v2168 = vtanh.pop %v2109
  %v2169 = vmul.f32 %v2167, %v2066
  %2171 = vrot.lane.b32.xlu0 %v2168, 32
  %v2172 = vpop.permute.xlu0 %2171
  %v2174 = vmul.f32 %v2167, %v2172
  %2176 = vrot.lane.b32.xlu0 %v2174, 32
  %v2177 = vpop.permute.xlu0 %2176
  %v2179 = vadd.f32 %v2169, %v2177
  %v2180 = vtanh.pop %v2179
  %2182 = vrot.lane.b32.xlu0 %v2180, 32
  %v2183 = vpop.permute.xlu0 %2182
  %v2185 = vmul.f32 %v2167, %v2183
  %v2186 = vsel %vm432, %v2179, %v2066
  %v2187 = vsel %vm432, %v2185, %v2067
  %v2188 = vpack.c.bf16 %v2148, %v2148
  %2190 = vrot.lane.b32.xlu0 %v2188, 64
  %v2191 = vpop.permute.xlu0 %2190
  %v2193 = vsel %vm50, %v2191, 0
  %2195 = vmatpush.bf16.msra.mxu0 0
  %2196 = vmatpush.bf16.msra.mxu0 0
  %2197 = vmatpush.bf16.msra.mxu0 0
  %2198 = vmatpush.bf16.msra.mxu0 0
  %2199 = vmatpush.bf16.msra.mxu0 0
  %2200 = vmatpush.bf16.msra.mxu0 0
  %2201 = vmatpush.bf16.msra.mxu0 %v1467
  %2202 = vmatpush.bf16.msra.mxu0 %v1466
  %2203 = vmatmul.bf16.gmra.mxu0 %v2193
  %v2204 = vpop.f32.mrf.mxu0
  %v2205 = vadd.f32 0.0, %v2204
  %v2206 = vpop.f32.mrf.mxu0
  %2207 = vdwg.mxu0
  %v2208 = vadd.f32 %v1352, %v2205
  %v2209 = vpack.c.bf16 %v2187, %v2187
  %2211 = vrot.lane.b32.xlu0 %v2209, 64
  %v2212 = vpop.permute.xlu0 %2211
  %v2214 = vsel %vm50, %v2212, 0
  %2216 = vmatpush.bf16.msra.mxu0 0
  %2217 = vmatpush.bf16.msra.mxu0 0
  %2218 = vmatpush.bf16.msra.mxu0 0
  %2219 = vmatpush.bf16.msra.mxu0 0
  %2220 = vmatpush.bf16.msra.mxu0 0
  %2221 = vmatpush.bf16.msra.mxu0 0
  %2222 = vmatpush.bf16.msra.mxu0 %v1493
  %2223 = vmatpush.bf16.msra.mxu0 %v1492
  %2224 = vmatmul.bf16.gmra.mxu0 %v2214
  %v2225 = vpop.f32.mrf.mxu0
  %v2226 = vadd.f32 0.0, %v2225
  %v2227 = vpop.f32.mrf.mxu0
  %2228 = vdwg.mxu0
  %v2229 = vadd.f32 %v1442, %v2226
  %v2230 = vxor.u32 %v2208, 2147483648
  %v2231 = vmul.f32 %v2230, 1.442695
  %v2232 = vpow.pop %v2231
  %v2233 = vadd.f32 %v2232, 1.0
  %v2234 = vrcp.pop %v2233
  %v2235 = vmul.f32 %v2233, %v2234
  %v2236 = vsub.f32 1.0, %v2235
  %v2237 = vmul.f32 %v2234, %v2236
  %v2238 = vadd.f32 %v2234, %v2237
  %vm2239 = vweird.f32 %v2233
  %vm2240 = vweird.f32 %v2234
  %vm2241 = vmor %vm2239, %vm2240
  %v2242 = vsel %vm2241, %v2234, %v2238
  %v2243 = vand.u32 2147483647, %v2233
  %vm2244 = vcmp.eq.f32.partialorder %v2243, 8.507059e+37
  %v2245 = vand.u32 %v2233, 2147483648
  %v2246 = vor.u32 1.1754944e-38, %v2245
  %v2247 = vsel %vm2244, %v2246, %v2242
  %v2248 = vmul.f32 1.0, %v2247
  %v2249 = vtanh.pop %v2208
  %v2250 = vmul.f32 %v2248, %v2147
  %2252 = vrot.lane.b32.xlu0 %v2249, 32
  %v2253 = vpop.permute.xlu0 %2252
  %v2255 = vmul.f32 %v2248, %v2253
  %2257 = vrot.lane.b32.xlu0 %v2255, 32
  %v2258 = vpop.permute.xlu0 %2257
  %v2260 = vadd.f32 %v2250, %v2258
  %v2261 = vtanh.pop %v2260
  %2263 = vrot.lane.b32.xlu0 %v2261, 32
  %v2264 = vpop.permute.xlu0 %2263
  %v2266 = vmul.f32 %v2248, %v2264
  %v2267 = vsel %vm330, %v2260, %v2147
  %v2268 = vsel %vm330, %v2266, %v2148
  %v2269 = vxor.u32 %v2229, 2147483648
  %v2270 = vmul.f32 %v2269, 1.442695
  %v2271 = vpow.pop %v2270
  %v2272 = vadd.f32 %v2271, 1.0
  %v2273 = vrcp.pop %v2272
  %v2274 = vmul.f32 %v2272, %v2273
  %v2275 = vsub.f32 1.0, %v2274
  %v2276 = vmul.f32 %v2273, %v2275
  %v2277 = vadd.f32 %v2273, %v2276
  %vm2278 = vweird.f32 %v2272
  %vm2279 = vweird.f32 %v2273
  %vm2280 = vmor %vm2278, %vm2279
  %v2281 = vsel %vm2280, %v2273, %v2277
  %v2282 = vand.u32 2147483647, %v2272
  %vm2283 = vcmp.eq.f32.partialorder %v2282, 8.507059e+37
  %v2284 = vand.u32 %v2272, 2147483648
  %v2285 = vor.u32 1.1754944e-38, %v2284
  %v2286 = vsel %vm2283, %v2285, %v2281
  %v2287 = vmul.f32 1.0, %v2286
  %v2288 = vtanh.pop %v2229
  %v2289 = vmul.f32 %v2287, %v2186
  %2291 = vrot.lane.b32.xlu0 %v2288, 32
  %v2292 = vpop.permute.xlu0 %2291
  %v2294 = vmul.f32 %v2287, %v2292
  %2296 = vrot.lane.b32.xlu0 %v2294, 32
  %v2297 = vpop.permute.xlu0 %2296
  %v2299 = vadd.f32 %v2289, %v2297
  %v2300 = vtanh.pop %v2299
  %2302 = vrot.lane.b32.xlu0 %v2300, 32
  %v2303 = vpop.permute.xlu0 %2302
  %v2305 = vmul.f32 %v2287, %v2303
  %v2306 = vsel %vm284, %v2299, %v2186
  %v2307 = vsel %vm284, %v2305, %v2187
  %v2308 = vpack.c.bf16 %v2268, %v2268
  %2310 = vrot.lane.b32.xlu0 %v2308, 64
  %v2311 = vpop.permute.xlu0 %2310
  %v2313 = vsel %vm50, %v2311, 0
  %2315 = vmatpush.bf16.msra.mxu0 0
  %2316 = vmatpush.bf16.msra.mxu0 0
  %2317 = vmatpush.bf16.msra.mxu0 0
  %2318 = vmatpush.bf16.msra.mxu0 0
  %2319 = vmatpush.bf16.msra.mxu0 0
  %2320 = vmatpush.bf16.msra.mxu0 0
  %2321 = vmatpush.bf16.msra.mxu0 %v1467
  %2322 = vmatpush.bf16.msra.mxu0 %v1466
  %2323 = vmatmul.bf16.gmra.mxu0 %v2313
  %v2324 = vpop.f32.mrf.mxu0
  %v2325 = vadd.f32 0.0, %v2324
  %v2326 = vpop.f32.mrf.mxu0
  %2327 = vdwg.mxu0
  %v2328 = vadd.f32 %v1353, %v2325
  %v2329 = vpack.c.bf16 %v2307, %v2307
  %2331 = vrot.lane.b32.xlu0 %v2329, 64
  %v2332 = vpop.permute.xlu0 %2331
  %v2334 = vsel %vm50, %v2332, 0
  %2336 = vmatpush.bf16.msra.mxu0 0
  %2337 = vmatpush.bf16.msra.mxu0 0
  %2338 = vmatpush.bf16.msra.mxu0 0
  %2339 = vmatpush.bf16.msra.mxu0 0
  %2340 = vmatpush.bf16.msra.mxu0 0
  %2341 = vmatpush.bf16.msra.mxu0 0
  %2342 = vmatpush.bf16.msra.mxu0 %v1493
  %2343 = vmatpush.bf16.msra.mxu0 %v1492
  %2344 = vmatmul.bf16.gmra.mxu0 %v2334
  %v2345 = vpop.f32.mrf.mxu0
  %v2346 = vadd.f32 0.0, %v2345
  %v2347 = vpop.f32.mrf.mxu0
  %2348 = vdwg.mxu0
  %v2349 = vadd.f32 %v1441, %v2346
  %v2350 = vxor.u32 %v2328, 2147483648
  %v2351 = vmul.f32 %v2350, 1.442695
  %v2352 = vpow.pop %v2351
  %v2353 = vadd.f32 %v2352, 1.0
  %v2354 = vrcp.pop %v2353
  %v2355 = vmul.f32 %v2353, %v2354
  %v2356 = vsub.f32 1.0, %v2355
  %v2357 = vmul.f32 %v2354, %v2356
  %v2358 = vadd.f32 %v2354, %v2357
  %vm2359 = vweird.f32 %v2353
  %vm2360 = vweird.f32 %v2354
  %vm2361 = vmor %vm2359, %vm2360
  %v2362 = vsel %vm2361, %v2354, %v2358
  %v2363 = vand.u32 2147483647, %v2353
  %vm2364 = vcmp.eq.f32.partialorder %v2363, 8.507059e+37
  %v2365 = vand.u32 %v2353, 2147483648
  %v2366 = vor.u32 1.1754944e-38, %v2365
  %v2367 = vsel %vm2364, %v2366, %v2362
  %v2368 = vmul.f32 1.0, %v2367
  %v2369 = vtanh.pop %v2328
  %v2370 = vmul.f32 %v2368, %v2267
  %2372 = vrot.lane.b32.xlu0 %v2369, 32
  %v2373 = vpop.permute.xlu0 %2372
  %v2375 = vmul.f32 %v2368, %v2373
  %2377 = vrot.lane.b32.xlu0 %v2375, 32
  %v2378 = vpop.permute.xlu0 %2377
  %v2380 = vadd.f32 %v2370, %v2378
  %v2381 = vtanh.pop %v2380
  %2383 = vrot.lane.b32.xlu0 %v2381, 32
  %v2384 = vpop.permute.xlu0 %2383
  %v2386 = vmul.f32 %v2368, %v2384
  %v2387 = vsel %vm183, %v2386, %v2268
  %v2388 = vxor.u32 %v2349, 2147483648
  %v2389 = vmul.f32 %v2388, 1.442695
  %v2390 = vpow.pop %v2389
  %v2391 = vadd.f32 %v2390, 1.0
  %v2392 = vrcp.pop %v2391
  %v2393 = vmul.f32 %v2391, %v2392
  %v2394 = vsub.f32 1.0, %v2393
  %v2395 = vmul.f32 %v2392, %v2394
  %v2396 = vadd.f32 %v2392, %v2395
  %vm2397 = vweird.f32 %v2391
  %vm2398 = vweird.f32 %v2392
  %vm2399 = vmor %vm2397, %vm2398
  %v2400 = vsel %vm2399, %v2392, %v2396
  %v2401 = vand.u32 2147483647, %v2391
  %vm2402 = vcmp.eq.f32.partialorder %v2401, 8.507059e+37
  %v2403 = vand.u32 %v2391, 2147483648
  %v2404 = vor.u32 1.1754944e-38, %v2403
  %v2405 = vsel %vm2402, %v2404, %v2400
  %v2406 = vmul.f32 1.0, %v2405
  %v2407 = vtanh.pop %v2349
  %v2408 = vmul.f32 %v2406, %v2306
  %2410 = vrot.lane.b32.xlu0 %v2407, 32
  %v2411 = vpop.permute.xlu0 %2410
  %v2413 = vmul.f32 %v2406, %v2411
  %2415 = vrot.lane.b32.xlu0 %v2413, 32
  %v2416 = vpop.permute.xlu0 %2415
  %v2418 = vadd.f32 %v2408, %v2416
  %v2419 = vtanh.pop %v2418
  %2421 = vrot.lane.b32.xlu0 %v2419, 32
  %v2422 = vpop.permute.xlu0 %2421
  %v2424 = vmul.f32 %v2406, %v2422
  %v2425 = vsel %vm138, %v2424, %v2307
  %2427 = vrot.lane.b32.xlu0 %v2387, 64
  %v2428 = vpop.permute.xlu0 %2427
  %2430 = vst.msk [vmem:[%s7] sm:$0xff] %vm50, %v2428
  %2432 = vrot.lane.b32.xlu0 %v2425, 64
  %v2433 = vpop.permute.xlu0 %2432
  %s2435 = scalar_lea.vmem %s7, 8
  %2436 = vst.msk [vmem:[%s2435] sm:$0xff] %vm50, %v2433
  // Predicated region
  $region30: #{_lambda_.1} parent=0 // pred_check
    _
  $region31: #{_lambda_.1} parent=0 // pred_check_branch
    %2438 = sbr.rel (0) target = $region33
  $region32: #{_lambda_.1} parent=0 // pred_region
    _
  $region33: #{_lambda_.1} parent=0 // pred_fallthru
    _
  // Predicated region
  $region34: #{_lambda_.1} parent=0 // pred_check
    _
  $region35: #{_lambda_.1} parent=0 // pred_check_branch
    %2440 = sbr.rel (0) target = $region37
  $region36: #{_lambda_.1} parent=0 // pred_region
    _
  $region37: #{_lambda_.1} parent=0 // pred_fallthru
    _

</llo_original>
